<compile_context>
chip_gen: v7x
topology: tpu7x:2x2x1
jax: 0.10.0
libtpu: 0.0.40
codegen_flags: <defaults>
</compile_context>

<pallas_src>
import functools

import jax
import jax.numpy as jnp
from jax import lax
from jax.experimental import pallas as pl
from jax.experimental.pallas import tpu as pltpu

EPS = 1e-5


# ----------------------------- Pallas kernel --------------------------------
def _resblk_kernel(*refs, stride, ho, wo, ph_rows, c_in, c_out, has_proj):
    """Fused ResBlk forward for one batch element (grid axis 0 = batch).

    x_ref  : (1, s*s*ph_rows, ph_cols, Cin) bf16  phase-decomposed padded input
    w1_ref : (9*Cin,  Cout) bf16   conv1 weights with bn1 folded (taps along K)
    b1_ref : (1, Cout) f32
    w2_ref : (9*Cout, Cout) bf16   conv2 weights with bn2 folded
    b2_ref : (1, Cout) f32
    ws_ref : (Cin, Cout) bf16      shortcut 1x1 conv (+bn) weights  [only if proj]
    bs_ref : (1, Cout) f32                                          [only if proj]
    o_ref  : (1, ho, wo, Cout) f32 output block (NHWC)
    pad_ref: (ho+2, wo+2, Cout) bf16 VMEM scratch for the conv2 halo
    """
    if has_proj:
        (x_ref, w1_ref, b1_ref, w2_ref, b2_ref, ws_ref, bs_ref,
         o_ref, pad_ref) = refs
    else:
        (x_ref, w1_ref, b1_ref, w2_ref, b2_ref, o_ref, pad_ref) = refs
        ws_ref = bs_ref = None

    s = stride
    m = ho * wo

    def in_tap(ky, kx):
        # Tap (ky, kx) of the stride-s 3x3 conv over the padded input, read as a
        # contiguous window of phase (ky % s, kx % s) at offset (ky//s, kx//s).
        row0 = ((ky % s) * s + (kx % s)) * ph_rows + ky // s
        col0 = kx // s
        return x_ref[0, row0:row0 + ho, col0:col0 + wo, :]      # (ho, wo, Cin)

    # ---- conv1 (3x3, stride s) + bn1: single (m, 9Cin) x (9Cin, Cout) matmul -
    x9 = jnp.concatenate([in_tap(ky, kx) for ky in range(3) for kx in range(3)],
                         axis=-1).reshape(m, 9 * c_in)
    y1 = jnp.dot(x9, w1_ref[...], preferred_element_type=jnp.float32)
    y1 = y1 + b1_ref[...]

    # ---- stage conv1 output in padded scratch; zero only the halo ring ------
    zrow = jnp.zeros((1, wo + 2, c_out), jnp.bfloat16)
    zcol = jnp.zeros((ho, 1, c_out), jnp.bfloat16)
    pad_ref[0:1, :, :] = zrow
    pad_ref[ho + 1:ho + 2, :, :] = zrow
    pad_ref[1:ho + 1, 0:1, :] = zcol
    pad_ref[1:ho + 1, wo + 1:wo + 2, :] = zcol
    pad_ref[1:ho + 1, 1:wo + 1, :] = y1.reshape(ho, wo, c_out).astype(jnp.bfloat16)

    # ---- conv2 (3x3, stride 1) + bn2: single (m, 9Cout) x (9Cout, Cout) matmul
    p9 = jnp.concatenate(
        [pad_ref[ky:ky + ho, kx:kx + wo, :] for ky in range(3) for kx in range(3)],
        axis=-1).reshape(m, 9 * c_out)
    y2 = jnp.dot(p9, w2_ref[...], preferred_element_type=jnp.float32)
    y2 = y2 + b2_ref[...]

    # ---- shortcut: 1x1 conv (+bn) projection, or identity (no matmul) -------
    xc = in_tap(1, 1).reshape(m, c_in)      # center tap = strided input samples
    if has_proj:
        sc = jnp.dot(xc, ws_ref[...], preferred_element_type=jnp.float32)
        sc = sc + bs_ref[...]
    else:
        sc = xc.astype(jnp.float32)

    o_ref[0] = (y2 + sc).reshape(ho, wo, c_out).astype(o_ref.dtype)


# ------------------------------ JAX glue -------------------------------------
def _fold_bn_into_conv(w_oihw, b_o, gamma, beta, mean, var):
    """Fold eval-mode BN into conv weights.  Returns (w', b') in OIHW layout."""
    s = gamma / jnp.sqrt(var + EPS)
    return w_oihw * s[:, None, None, None], (b_o - mean) * s + beta


def _phase_decompose(x_nhwc, stride, ho, wo):
    """Zero-pad (pad=1) and space-to-depth so every 3x3/stride-s tap is a
    contiguous (ho, wo) window.  Returns (n, s*s*ph_rows, ph_cols, c), ph_rows,
    ph_cols.  Total bytes stay ~1x the input (no im2col duplication)."""
    n, h, w, c = x_nhwc.shape
    s = stride
    ph_rows = ho + 2 // s
    ph_cols = wo + 2 // s
    hp, wp = s * ph_rows, s * ph_cols
    xp = jnp.pad(x_nhwc, ((0, 0), (1, max(1, hp - h - 1)),
                          (1, max(1, wp - w - 1)), (0, 0)))
    xp = xp[:, :hp, :wp, :]
    xph = xp.reshape(n, ph_rows, s, ph_cols, s, c).transpose(0, 2, 4, 1, 3, 5)
    return xph.reshape(n, s * s * ph_rows, ph_cols, c), ph_rows, ph_cols


def resblk_pallas(x_nchw, params, *, ch_in, ch_out, stride=1):
    """Pallas ResBlk forward.  x_nchw: (N, Cin, H, W) f32 -> (N, Cout, Ho, Wo)."""
    if ch_in == ch_out and stride != 1:
        # Matches the PyTorch module: with an identity `extra`, the residual add
        # would shape-mismatch for stride != 1.
        raise ValueError("identity shortcut requires stride == 1")

    n, _, h, w = x_nchw.shape
    ho = (h + 2 - 3) // stride + 1
    wo = (w + 2 - 3) // stride + 1
    has_proj = ch_in != ch_out

    x_nhwc = jnp.transpose(x_nchw, (0, 2, 3, 1))
    xph, ph_rows, ph_cols = _phase_decompose(x_nhwc, stride, ho, wo)
    xph = xph.astype(jnp.bfloat16)

    # Fold eval-mode BN into the convs; bf16 weights for the MXU, f32 biases.
    w1, b1 = _fold_bn_into_conv(params["w1"], params["b1"], params["g1"],
                                params["be1"], params["m1"], params["v1"])
    w2, b2 = _fold_bn_into_conv(params["w2"], params["b2"], params["g2"],
                                params["be2"], params["m2"], params["v2"])
    w1k = jnp.transpose(w1, (2, 3, 1, 0)).reshape(9 * ch_in, ch_out).astype(jnp.bfloat16)
    w2k = jnp.transpose(w2, (2, 3, 1, 0)).reshape(9 * ch_out, ch_out).astype(jnp.bfloat16)
    b1k = b1.reshape(1, ch_out).astype(jnp.float32)
    b2k = b2.reshape(1, ch_out).astype(jnp.float32)

    args = [xph, w1k, b1k, w2k, b2k]
    in_specs = [
        pl.BlockSpec((1, stride * stride * ph_rows, ph_cols, ch_in),
                     lambda b: (b, 0, 0, 0)),
        pl.BlockSpec((9 * ch_in, ch_out), lambda b: (0, 0)),
        pl.BlockSpec((1, ch_out), lambda b: (0, 0)),
        pl.BlockSpec((9 * ch_out, ch_out), lambda b: (0, 0)),
        pl.BlockSpec((1, ch_out), lambda b: (0, 0)),
    ]
    if has_proj:
        ws, bs = _fold_bn_into_conv(params["ws"], params["bs"], params["gs"],
                                    params["bes"], params["ms"], params["vs"])
        args += [jnp.transpose(ws[:, :, 0, 0], (1, 0)).astype(jnp.bfloat16),
                 bs.reshape(1, ch_out).astype(jnp.float32)]
        in_specs += [pl.BlockSpec((ch_in, ch_out), lambda b: (0, 0)),
                     pl.BlockSpec((1, ch_out), lambda b: (0, 0))]

    kernel = functools.partial(_resblk_kernel, stride=stride, ho=ho, wo=wo,
                               ph_rows=ph_rows, c_in=ch_in, c_out=ch_out,
                               has_proj=has_proj)

    out_nhwc = pl.pallas_call(
        kernel,
        grid=(n,),
        out_shape=jax.ShapeDtypeStruct((n, ho, wo, ch_out), jnp.float32),
        in_specs=in_specs,
        out_specs=pl.BlockSpec((1, ho, wo, ch_out), lambda b: (b, 0, 0, 0)),
        scratch_shapes=[pltpu.VMEM((ho + 2, wo + 2, ch_out), jnp.bfloat16)],
        compiler_params=pltpu.CompilerParams(
            dimension_semantics=("parallel",),        # v7x megacore: split batch
            vmem_limit_bytes=32 * 1024 * 1024),       # explicit budget, fits v7x
    )(*args)

    return jnp.transpose(out_nhwc, (0, 3, 1, 2))


# --------------------------- pure-JAX reference ------------------------------
def resblk_ref(x, params, *, ch_in, ch_out, stride=1):
    """Reference with the SAME operand precision as the kernel: eval-mode BN
    folded into the convs, bf16 matmul operands, f32 accumulation."""
    def conv(inp, w, b, s, pad):
        y = lax.conv_general_dilated(
            inp.astype(jnp.bfloat16), w.astype(jnp.bfloat16), (s, s),
            [(pad, pad), (pad, pad)],
            dimension_numbers=("NCHW", "OIHW", "NCHW"),
            preferred_element_type=jnp.float32)
        return y + b[None, :, None, None]

    w1, b1 = _fold_bn_into_conv(params["w1"], params["b1"], params["g1"],
                                params["be1"], params["m1"], params["v1"])
    w2, b2 = _fold_bn_into_conv(params["w2"], params["b2"], params["g2"],
                                params["be2"], params["m2"], params["v2"])
    out = conv(x, w1, b1, stride, 1)
    out = conv(out, w2, b2, 1, 1)
    if ch_in != ch_out:
        ws, bs = _fold_bn_into_conv(params["ws"], params["bs"], params["gs"],
                                    params["bes"], params["ms"], params["vs"])
        sc = conv(x, ws, bs, stride, 0)
    else:
        sc = x.astype(jnp.bfloat16).astype(jnp.float32)
    return out + sc


# ------------------------------- init / main ---------------------------------
def init_params(key, ch_in, ch_out):
    ks = jax.random.split(key, 16)
    u = lambda k, shape, lo, hi: jax.random.uniform(k, shape, jnp.float32, lo, hi)
    p = {
        "w1": u(ks[0], (ch_out, ch_in, 3, 3), -0.2, 0.2),
        "b1": u(ks[1], (ch_out,), -0.1, 0.1),
        "g1": u(ks[2], (ch_out,), 0.8, 1.2),
        "be1": u(ks[3], (ch_out,), -0.1, 0.1),
        "m1": u(ks[4], (ch_out,), -0.1, 0.1),
        "v1": u(ks[5], (ch_out,), 0.5, 1.5),
        "w2": u(ks[6], (ch_out, ch_out, 3, 3), -0.2, 0.2),
        "b2": u(ks[7], (ch_out,), -0.1, 0.1),
        "g2": u(ks[8], (ch_out,), 0.8, 1.2),
        "be2": u(ks[9], (ch_out,), -0.1, 0.1),
        "m2": u(ks[10], (ch_out,), -0.1, 0.1),
        "v2": u(ks[11], (ch_out,), 0.5, 1.5),
    }
    if ch_in != ch_out:
        ks2 = jax.random.split(ks[12], 6)
        p.update({
            "ws": u(ks2[0], (ch_out, ch_in, 1, 1), -0.3, 0.3),
            "bs": u(ks2[1], (ch_out,), -0.1, 0.1),
            "gs": u(ks2[2], (ch_out,), 0.8, 1.2),
            "bes": u(ks2[3], (ch_out,), -0.1, 0.1),
            "ms": u(ks2[4], (ch_out,), -0.1, 0.1),
            "vs": u(ks2[5], (ch_out,), 0.5, 1.5),
        })
    return p


if __name__ == "__main__":
    key = jax.random.PRNGKey(0)
    N, H, W = 2, 16, 16
    configs = [
        (4, 8, 1),   # projection shortcut
        (4, 8, 2),   # projection shortcut + stride-2 downsample
        (8, 8, 1),   # identity shortcut
    ]
    for i, (ci, co, s) in enumerate(configs):
        k_x, k_p = jax.random.split(jax.random.fold_in(key, i))
        x = jax.random.normal(k_x, (N, ci, H, W), jnp.float32)
        params = init_params(k_p, ci, co)

        out = jax.block_until_ready(
            resblk_pallas(x, params, ch_in=ci, ch_out=co, stride=s))
        ref = jax.block_until_ready(
            resblk_ref(x, params, ch_in=ci, ch_out=co, stride=s))

        assert out.shape == ref.shape, (out.shape, ref.shape)
        err = float(jnp.max(jnp.abs(out - ref)))
        assert jnp.allclose(out, ref, atol=1e-2, rtol=1e-2), (ci, co, s, err)

    print("KERNEL_OK")
</pallas_src>

<mosaic_0001>
module attributes {stable_mosaic.version = 11 : i64} {
  func.func @_resblk_kernel(%arg0: i32, %arg1: memref<1x18x18x4xbf16, #tpu.memory_space<vmem>>, %arg2: memref<36x8xbf16, #tpu.memory_space<vmem>>, %arg3: memref<1x8xf32, #tpu.memory_space<vmem>>, %arg4: memref<72x8xbf16, #tpu.memory_space<vmem>>, %arg5: memref<1x8xf32, #tpu.memory_space<vmem>>, %arg6: memref<4x8xbf16, #tpu.memory_space<vmem>>, %arg7: memref<1x8xf32, #tpu.memory_space<vmem>>, %arg8: memref<1x16x16x8xf32, #tpu.memory_space<vmem>>, %arg9: memref<18x18x8xbf16, #tpu.memory_space<vmem>>) attributes {dimension_semantics = [#tpu.dimension_semantics<parallel>], iteration_bounds = array<i64: 2>, scalar_prefetch = 0 : i64, scratch_operands = 1 : i64, tpu.core_type = #tpu.core_type<tc>, window_params = [{transform_indices = @transform_0, window_bounds = array<i64: 1, 18, 18, 4>}, {pipeline_mode = #tpu.pipeline_mode<synchronous>, transform_indices = @transform_1, window_bounds = array<i64: 36, 8>}, {pipeline_mode = #tpu.pipeline_mode<synchronous>, transform_indices = @transform_2, window_bounds = array<i64: 1, 8>}, {pipeline_mode = #tpu.pipeline_mode<synchronous>, transform_indices = @transform_3, window_bounds = array<i64: 72, 8>}, {pipeline_mode = #tpu.pipeline_mode<synchronous>, transform_indices = @transform_4, window_bounds = array<i64: 1, 8>}, {pipeline_mode = #tpu.pipeline_mode<synchronous>, transform_indices = @transform_5, window_bounds = array<i64: 4, 8>}, {pipeline_mode = #tpu.pipeline_mode<synchronous>, transform_indices = @transform_6, window_bounds = array<i64: 1, 8>}, {transform_indices = @transform_7, window_bounds = array<i64: 1, 16, 16, 8>}]} {
    %c0 = arith.constant 0 : index
    %c0_0 = arith.constant 0 : index
    %c0_1 = arith.constant 0 : index
    %c0_2 = arith.constant 0 : index
    %0 = vector.load %arg1[%c0, %c0_0, %c0_1, %c0_2] : memref<1x18x18x4xbf16, #tpu.memory_space<vmem>>, vector<1x16x16x4xbf16>
    %1 = vector.shape_cast %0 : vector<1x16x16x4xbf16> to vector<16x16x4xbf16>
    %c0_3 = arith.constant 0 : index
    %c0_4 = arith.constant 0 : index
    %c1 = arith.constant 1 : index
    %c0_5 = arith.constant 0 : index
    %2 = vector.load %arg1[%c0_3, %c0_4, %c1, %c0_5] : memref<1x18x18x4xbf16, #tpu.memory_space<vmem>>, vector<1x16x16x4xbf16>
    %3 = vector.shape_cast %2 : vector<1x16x16x4xbf16> to vector<16x16x4xbf16>
    %c0_6 = arith.constant 0 : index
    %c0_7 = arith.constant 0 : index
    %c2 = arith.constant 2 : index
    %c0_8 = arith.constant 0 : index
    %4 = vector.load %arg1[%c0_6, %c0_7, %c2, %c0_8] : memref<1x18x18x4xbf16, #tpu.memory_space<vmem>>, vector<1x16x16x4xbf16>
    %5 = vector.shape_cast %4 : vector<1x16x16x4xbf16> to vector<16x16x4xbf16>
    %c0_9 = arith.constant 0 : index
    %c1_10 = arith.constant 1 : index
    %c0_11 = arith.constant 0 : index
    %c0_12 = arith.constant 0 : index
    %6 = vector.load %arg1[%c0_9, %c1_10, %c0_11, %c0_12] : memref<1x18x18x4xbf16, #tpu.memory_space<vmem>>, vector<1x16x16x4xbf16>
    %7 = vector.shape_cast %6 : vector<1x16x16x4xbf16> to vector<16x16x4xbf16>
    %c0_13 = arith.constant 0 : index
    %c1_14 = arith.constant 1 : index
    %c1_15 = arith.constant 1 : index
    %c0_16 = arith.constant 0 : index
    %8 = vector.load %arg1[%c0_13, %c1_14, %c1_15, %c0_16] : memref<1x18x18x4xbf16, #tpu.memory_space<vmem>>, vector<1x16x16x4xbf16>
    %9 = vector.shape_cast %8 : vector<1x16x16x4xbf16> to vector<16x16x4xbf16>
    %c0_17 = arith.constant 0 : index
    %c1_18 = arith.constant 1 : index
    %c2_19 = arith.constant 2 : index
    %c0_20 = arith.constant 0 : index
    %10 = vector.load %arg1[%c0_17, %c1_18, %c2_19, %c0_20] : memref<1x18x18x4xbf16, #tpu.memory_space<vmem>>, vector<1x16x16x4xbf16>
    %11 = vector.shape_cast %10 : vector<1x16x16x4xbf16> to vector<16x16x4xbf16>
    %c0_21 = arith.constant 0 : index
    %c2_22 = arith.constant 2 : index
    %c0_23 = arith.constant 0 : index
    %c0_24 = arith.constant 0 : index
    %12 = vector.load %arg1[%c0_21, %c2_22, %c0_23, %c0_24] : memref<1x18x18x4xbf16, #tpu.memory_space<vmem>>, vector<1x16x16x4xbf16>
    %13 = vector.shape_cast %12 : vector<1x16x16x4xbf16> to vector<16x16x4xbf16>
    %c0_25 = arith.constant 0 : index
    %c2_26 = arith.constant 2 : index
    %c1_27 = arith.constant 1 : index
    %c0_28 = arith.constant 0 : index
    %14 = vector.load %arg1[%c0_25, %c2_26, %c1_27, %c0_28] : memref<1x18x18x4xbf16, #tpu.memory_space<vmem>>, vector<1x16x16x4xbf16>
    %15 = vector.shape_cast %14 : vector<1x16x16x4xbf16> to vector<16x16x4xbf16>
    %c0_29 = arith.constant 0 : index
    %c2_30 = arith.constant 2 : index
    %c2_31 = arith.constant 2 : index
    %c0_32 = arith.constant 0 : index
    %16 = vector.load %arg1[%c0_29, %c2_30, %c2_31, %c0_32] : memref<1x18x18x4xbf16, #tpu.memory_space<vmem>>, vector<1x16x16x4xbf16>
    %17 = vector.shape_cast %16 : vector<1x16x16x4xbf16> to vector<16x16x4xbf16>
    %18 = tpu.concatenate %1, %3, %5, %7, %9, %11, %13, %15, %17 in 2 : vector<16x16x4xbf16>, vector<16x16x4xbf16>, vector<16x16x4xbf16>, vector<16x16x4xbf16>, vector<16x16x4xbf16>, vector<16x16x4xbf16>, vector<16x16x4xbf16>, vector<16x16x4xbf16>, vector<16x16x4xbf16> -> vector<16x16x36xbf16>
    %19 = vector.shape_cast %18 : vector<16x16x36xbf16> to vector<256x36xbf16>
    %c0_33 = arith.constant 0 : index
    %c0_34 = arith.constant 0 : index
    %20 = vector.load %arg2[%c0_33, %c0_34] : memref<36x8xbf16, #tpu.memory_space<vmem>>, vector<36x8xbf16>
    %cst = arith.constant dense<0.000000e+00> : vector<256x8xf32>
    %21 = tpu.matmul %19, %20, %cst {dimension_numbers = #tpu.dot_dimension_numbers<[1], [0], [0], [1], [0, 0, 1, 1], [], []>} : vector<256x36xbf16>, vector<36x8xbf16>, vector<256x8xf32> -> vector<256x8xf32>
    %c0_35 = arith.constant 0 : index
    %c0_36 = arith.constant 0 : index
    %22 = vector.load %arg3[%c0_35, %c0_36] : memref<1x8xf32, #tpu.memory_space<vmem>>, vector<1x8xf32>
    %23 = vector.broadcast %22 : vector<1x8xf32> to vector<256x8xf32>
    %24 = arith.addf %21, %23 : vector<256x8xf32>
    %cst_37 = arith.constant 0.000000e+00 : bf16
    %25 = vector.broadcast %cst_37 : bf16 to vector<1x18x8xbf16>
    %cst_38 = arith.constant 0.000000e+00 : bf16
    %26 = vector.broadcast %cst_38 : bf16 to vector<16x1x8xbf16>
    %c0_39 = arith.constant 0 : index
    %c0_40 = arith.constant 0 : index
    %c0_41 = arith.constant 0 : index
    %27 = vector.load %arg9[%c0_39, %c0_40, %c0_41] : memref<18x18x8xbf16, #tpu.memory_space<vmem>>, vector<1x18x8xbf16>
    tpu.vector_store %arg9[%c0_39, %c0_40, %c0_41], %25 {strides = array<i32>} : memref<18x18x8xbf16, #tpu.memory_space<vmem>>, vector<1x18x8xbf16>,
    %c17 = arith.constant 17 : index
    %c0_42 = arith.constant 0 : index
    %c0_43 = arith.constant 0 : index
    %28 = vector.load %arg9[%c17, %c0_42, %c0_43] : memref<18x18x8xbf16, #tpu.memory_space<vmem>>, vector<1x18x8xbf16>
    tpu.vector_store %arg9[%c17, %c0_42, %c0_43], %25 {strides = array<i32>} : memref<18x18x8xbf16, #tpu.memory_space<vmem>>, vector<1x18x8xbf16>,
    %c1_44 = arith.constant 1 : index
    %c0_45 = arith.constant 0 : index
    %c0_46 = arith.constant 0 : index
    %29 = vector.load %arg9[%c1_44, %c0_45, %c0_46] : memref<18x18x8xbf16, #tpu.memory_space<vmem>>, vector<16x1x8xbf16>
    tpu.vector_store %arg9[%c1_44, %c0_45, %c0_46], %26 {strides = array<i32>} : memref<18x18x8xbf16, #tpu.memory_space<vmem>>, vector<16x1x8xbf16>,
    %c1_47 = arith.constant 1 : index
    %c17_48 = arith.constant 17 : index
    %c0_49 = arith.constant 0 : index
    %30 = vector.load %arg9[%c1_47, %c17_48, %c0_49] : memref<18x18x8xbf16, #tpu.memory_space<vmem>>, vector<16x1x8xbf16>
    tpu.vector_store %arg9[%c1_47, %c17_48, %c0_49], %26 {strides = array<i32>} : memref<18x18x8xbf16, #tpu.memory_space<vmem>>, vector<16x1x8xbf16>,
    %31 = vector.shape_cast %24 : vector<256x8xf32> to vector<16x16x8xf32>
    %32 = arith.truncf %31 : vector<16x16x8xf32> to vector<16x16x8xbf16>
    %c1_50 = arith.constant 1 : index
    %c1_51 = arith.constant 1 : index
    %c0_52 = arith.constant 0 : index
    %33 = vector.load %arg9[%c1_50, %c1_51, %c0_52] : memref<18x18x8xbf16, #tpu.memory_space<vmem>>, vector<16x16x8xbf16>
    tpu.vector_store %arg9[%c1_50, %c1_51, %c0_52], %32 {strides = array<i32>} : memref<18x18x8xbf16, #tpu.memory_space<vmem>>, vector<16x16x8xbf16>,
    %c0_53 = arith.constant 0 : index
    %c0_54 = arith.constant 0 : index
    %c0_55 = arith.constant 0 : index
    %34 = vector.load %arg9[%c0_53, %c0_54, %c0_55] : memref<18x18x8xbf16, #tpu.memory_space<vmem>>, vector<16x16x8xbf16>
    %c0_56 = arith.constant 0 : index
    %c1_57 = arith.constant 1 : index
    %c0_58 = arith.constant 0 : index
    %35 = vector.load %arg9[%c0_56, %c1_57, %c0_58] : memref<18x18x8xbf16, #tpu.memory_space<vmem>>, vector<16x16x8xbf16>
    %c0_59 = arith.constant 0 : index
    %c2_60 = arith.constant 2 : index
    %c0_61 = arith.constant 0 : index
    %36 = vector.load %arg9[%c0_59, %c2_60, %c0_61] : memref<18x18x8xbf16, #tpu.memory_space<vmem>>, vector<16x16x8xbf16>
    %c1_62 = arith.constant 1 : index
    %c0_63 = arith.constant 0 : index
    %c0_64 = arith.constant 0 : index
    %37 = vector.load %arg9[%c1_62, %c0_63, %c0_64] : memref<18x18x8xbf16, #tpu.memory_space<vmem>>, vector<16x16x8xbf16>
    %c1_65 = arith.constant 1 : index
    %c1_66 = arith.constant 1 : index
    %c0_67 = arith.constant 0 : index
    %38 = vector.load %arg9[%c1_65, %c1_66, %c0_67] : memref<18x18x8xbf16, #tpu.memory_space<vmem>>, vector<16x16x8xbf16>
    %c1_68 = arith.constant 1 : index
    %c2_69 = arith.constant 2 : index
    %c0_70 = arith.constant 0 : index
    %39 = vector.load %arg9[%c1_68, %c2_69, %c0_70] : memref<18x18x8xbf16, #tpu.memory_space<vmem>>, vector<16x16x8xbf16>
    %c2_71 = arith.constant 2 : index
    %c0_72 = arith.constant 0 : index
    %c0_73 = arith.constant 0 : index
    %40 = vector.load %arg9[%c2_71, %c0_72, %c0_73] : memref<18x18x8xbf16, #tpu.memory_space<vmem>>, vector<16x16x8xbf16>
    %c2_74 = arith.constant 2 : index
    %c1_75 = arith.constant 1 : index
    %c0_76 = arith.constant 0 : index
    %41 = vector.load %arg9[%c2_74, %c1_75, %c0_76] : memref<18x18x8xbf16, #tpu.memory_space<vmem>>, vector<16x16x8xbf16>
    %c2_77 = arith.constant 2 : index
    %c2_78 = arith.constant 2 : index
    %c0_79 = arith.constant 0 : index
    %42 = vector.load %arg9[%c2_77, %c2_78, %c0_79] : memref<18x18x8xbf16, #tpu.memory_space<vmem>>, vector<16x16x8xbf16>
    %43 = tpu.concatenate %34, %35, %36, %37, %38, %39, %40, %41, %42 in 2 : vector<16x16x8xbf16>, vector<16x16x8xbf16>, vector<16x16x8xbf16>, vector<16x16x8xbf16>, vector<16x16x8xbf16>, vector<16x16x8xbf16>, vector<16x16x8xbf16>, vector<16x16x8xbf16>, vector<16x16x8xbf16> -> vector<16x16x72xbf16>
    %44 = vector.shape_cast %43 : vector<16x16x72xbf16> to vector<256x72xbf16>
    %c0_80 = arith.constant 0 : index
    %c0_81 = arith.constant 0 : index
    %45 = vector.load %arg4[%c0_80, %c0_81] : memref<72x8xbf16, #tpu.memory_space<vmem>>, vector<72x8xbf16>
    %cst_82 = arith.constant dense<0.000000e+00> : vector<256x8xf32>
    %46 = tpu.matmul %44, %45, %cst_82 {dimension_numbers = #tpu.dot_dimension_numbers<[1], [0], [0], [1], [0, 0, 1, 1], [], []>} : vector<256x72xbf16>, vector<72x8xbf16>, vector<256x8xf32> -> vector<256x8xf32>
    %c0_83 = arith.constant 0 : index
    %c0_84 = arith.constant 0 : index
    %47 = vector.load %arg5[%c0_83, %c0_84] : memref<1x8xf32, #tpu.memory_space<vmem>>, vector<1x8xf32>
    %48 = vector.broadcast %47 : vector<1x8xf32> to vector<256x8xf32>
    %49 = arith.addf %46, %48 : vector<256x8xf32>
    %c0_85 = arith.constant 0 : index
    %c1_86 = arith.constant 1 : index
    %c1_87 = arith.constant 1 : index
    %c0_88 = arith.constant 0 : index
    %50 = vector.load %arg1[%c0_85, %c1_86, %c1_87, %c0_88] : memref<1x18x18x4xbf16, #tpu.memory_space<vmem>>, vector<1x16x16x4xbf16>
    %51 = vector.shape_cast %50 : vector<1x16x16x4xbf16> to vector<16x16x4xbf16>
    %52 = vector.shape_cast %51 : vector<16x16x4xbf16> to vector<256x4xbf16>
    %c0_89 = arith.constant 0 : index
    %c0_90 = arith.constant 0 : index
    %53 = vector.load %arg6[%c0_89, %c0_90] : memref<4x8xbf16, #tpu.memory_space<vmem>>, vector<4x8xbf16>
    %cst_91 = arith.constant dense<0.000000e+00> : vector<256x8xf32>
    %54 = tpu.matmul %52, %53, %cst_91 {dimension_numbers = #tpu.dot_dimension_numbers<[1], [0], [0], [1], [0, 0, 1, 1], [], []>} : vector<256x4xbf16>, vector<4x8xbf16>, vector<256x8xf32> -> vector<256x8xf32>
    %c0_92 = arith.constant 0 : index
    %c0_93 = arith.constant 0 : index
    %55 = vector.load %arg7[%c0_92, %c0_93] : memref<1x8xf32, #tpu.memory_space<vmem>>, vector<1x8xf32>
    %56 = vector.broadcast %55 : vector<1x8xf32> to vector<256x8xf32>
    %57 = arith.addf %54, %56 : vector<256x8xf32>
    %58 = arith.addf %49, %57 : vector<256x8xf32>
    %59 = vector.shape_cast %58 : vector<256x8xf32> to vector<16x16x8xf32>
    %c0_94 = arith.constant 0 : index
    %c0_95 = arith.constant 0 : index
    %c0_96 = arith.constant 0 : index
    %c0_97 = arith.constant 0 : index
    %60 = vector.load %arg8[%c0_94, %c0_95, %c0_96, %c0_97] : memref<1x16x16x8xf32, #tpu.memory_space<vmem>>, vector<1x16x16x8xf32>
    %61 = vector.shape_cast %60 : vector<1x16x16x8xf32> to vector<16x16x8xf32>
    %62 = vector.shape_cast %59 : vector<16x16x8xf32> to vector<1x16x16x8xf32>
    tpu.vector_store %arg8[%c0_94, %c0_95, %c0_96, %c0_97], %62 {strides = array<i32>} : memref<1x16x16x8xf32, #tpu.memory_space<vmem>>, vector<1x16x16x8xf32>,
    return
  }
  func.func @transform_0(%arg0: i32) -> (i32, i32, i32, i32) {
    %c0_i32 = arith.constant 0 : i32
    %c0_i32_0 = arith.constant 0 : i32
    %c0_i32_1 = arith.constant 0 : i32
    %c0_i32_2 = arith.constant 0 : i32
    return %arg0, %c0_i32, %c0_i32_0, %c0_i32_1 : i32, i32, i32, i32
  }
  func.func @transform_1(%arg0: i32) -> (i32, i32) {
    %c0_i32 = arith.constant 0 : i32
    %c0_i32_0 = arith.constant 0 : i32
    %c0_i32_1 = arith.constant 0 : i32
    return %c0_i32, %c0_i32_0 : i32, i32
  }
  func.func @transform_2(%arg0: i32) -> (i32, i32) {
    %c0_i32 = arith.constant 0 : i32
    %c0_i32_0 = arith.constant 0 : i32
    %c0_i32_1 = arith.constant 0 : i32
    return %c0_i32, %c0_i32_0 : i32, i32
  }
  func.func @transform_3(%arg0: i32) -> (i32, i32) {
    %c0_i32 = arith.constant 0 : i32
    %c0_i32_0 = arith.constant 0 : i32
    %c0_i32_1 = arith.constant 0 : i32
    return %c0_i32, %c0_i32_0 : i32, i32
  }
  func.func @transform_4(%arg0: i32) -> (i32, i32) {
    %c0_i32 = arith.constant 0 : i32
    %c0_i32_0 = arith.constant 0 : i32
    %c0_i32_1 = arith.constant 0 : i32
    return %c0_i32, %c0_i32_0 : i32, i32
  }
  func.func @transform_5(%arg0: i32) -> (i32, i32) {
    %c0_i32 = arith.constant 0 : i32
    %c0_i32_0 = arith.constant 0 : i32
    %c0_i32_1 = arith.constant 0 : i32
    return %c0_i32, %c0_i32_0 : i32, i32
  }
  func.func @transform_6(%arg0: i32) -> (i32, i32) {
    %c0_i32 = arith.constant 0 : i32
    %c0_i32_0 = arith.constant 0 : i32
    %c0_i32_1 = arith.constant 0 : i32
    return %c0_i32, %c0_i32_0 : i32, i32
  }
  func.func @transform_7(%arg0: i32) -> (i32, i32, i32, i32) {
    %c0_i32 = arith.constant 0 : i32
    %c0_i32_0 = arith.constant 0 : i32
    %c0_i32_1 = arith.constant 0 : i32
    %c0_i32_2 = arith.constant 0 : i32
    return %arg0, %c0_i32, %c0_i32_0, %c0_i32_1 : i32, i32, i32, i32
  }
}

</mosaic_0001>

<llo_original>
// kernel: tpu_custom_call.1
$region0: #{tpu_custom_call.1}
  #allocation0 [shape = 'u32[]', space=smem, size = 0x4, offset = 0x4, fixed_abs, tag = 'smem constant byte address 0x4 - core index']
  #allocation1 [shape = 'u32[144,128]{1,0:T(1,128)}', space=vmem, size = 0x12000, scoped, tag = 'internal scratch']
  #allocation2 [shape = 'bf16[18,18,8]{2,1,0:T(8,128)(2,1)}', space=vmem, size = 0x1b000, scoped, tag = 'scratch operand']
  %s0 = inlined_call_operand.vmem [shape: bf16[2,18,18,4], index: 0, kind: input, shape index: {}]
  %s1 = inlined_call_operand.vmem [shape: bf16[36,8], index: 1, kind: input, shape index: {}]
  %s2 = inlined_call_operand.vmem [shape: f32[1,8], index: 2, kind: input, shape index: {}]
  %s3 = inlined_call_operand.vmem [shape: bf16[72,8], index: 3, kind: input, shape index: {}]
  %s4 = inlined_call_operand.vmem [shape: f32[1,8], index: 4, kind: input, shape index: {}]
  %s5 = inlined_call_operand.vmem [shape: bf16[4,8], index: 5, kind: input, shape index: {}]
  %s6 = inlined_call_operand.vmem [shape: f32[1,8], index: 6, kind: input, shape index: {}]
  %s7 = inlined_call_operand.vmem [shape: f32[2,16,16,8], index: 7, kind: output, shape index: {}]
  %s8 = sld [smem:[#allocation0]]
  $region61: #{tpu_custom_call.1} parent=0
    _
  %s10 = ssub.s32 1, %s8
  %s11 = scalar_select 0, %s10, %s8
  loop: start=0, step=1, limit=4
  $region2: #{tpu_custom_call.1} parent=0 // loop_pre_header
    _
  $region3: #{tpu_custom_call.1} parent=0 // loop_header
    %s13 = sphi 0, %s17
    %p14 = scmp.ge.s32.totalorder %s13, 4
    %s23 = sphi 0, %s25
    %s26 = sphi 0, %s23
    %s27 = sphi 0, %s26
    %s43 = sphi 0, %s27
    %s47 = sphi 0, %s47
    %s49 = sphi 0, %s47
    %s50 = sphi 0, %s49
    %s64 = sphi 0, %s50
    %s68 = sphi 0, %s68
    %s70 = sphi 0, %s68
    %s71 = sphi 0, %s70
    %s85 = sphi 0, %s71
    %s89 = sphi 0, %s89
    %s91 = sphi 0, %s89
    %s92 = sphi 0, %s91
    %s106 = sphi 0, %s92
    %s110 = sphi 0, %s110
    %s112 = sphi 0, %s110
    %s113 = sphi 0, %s112
    %s127 = sphi 0, %s113
    %s131 = sphi 0, %s131
    %s133 = sphi 0, %s131
    %s134 = sphi 0, %s133
    %s148 = sphi 0, %s134
    %s152 = sphi 0, %s152
    %s154 = sphi 0, %s152
    %s155 = sphi 0, %s154
    %s169 = sphi 0, %s155
    %s175 = sphi 0, %s177
    %s178 = sphi 0, %s175
    %s179 = sphi 0, %s178
    %s195 = sphi 0, %s179
  $region4: #{tpu_custom_call.1} parent=0 // loop_header_branch
    %16 = sbr.rel (%p14) target = $region8
  $region5: #{tpu_custom_call.1} parent=0 // loop_body
    %s18 = ssub.s32 %s13, 1
    %s19 = ssub.s32 %s13, 2
    %s20 = sadd.s32 %s13, 1
    %s21 = ssub.s32 %s13, %s20
    %p22 = scmp.eq.s32.totalorder %s21, 0
    %s24 = sadd.s32 %s23, 1
    %s25 = scalar_select %p22, %s23, %s24
    %p28 = pneg %p22
    %p29 = scmp.eq.s32.totalorder %s13, 1
    %p30 = por %p28, %p29
    %p31 = scmp.ne.s32.totalorder %s23, %s26
    %p32 = scmp.eq.s32.totalorder %s13, 0
    %p33 = por %p31, %p32
    %p34 = scmp.ne.s32.totalorder %s23, %s26
    %p35 = scmp.eq.s32.totalorder %s18, 1
    %p36 = por %p34, %p35
    %p37 = scmp.ne.s32.totalorder %s26, %s27
    %p38 = scmp.eq.s32.totalorder %s18, 0
    %p39 = por %p37, %p38
    %p40 = scmp.ne.s32.totalorder %s26, %s27
    %p41 = scmp.eq.s32.totalorder %s19, 1
    %p42 = por %p40, %p41
    %p44 = scmp.ne.s32.totalorder %s27, %s43
    %p45 = scmp.eq.s32.totalorder %s19, 0
    %p46 = por %p44, %p45
    %s48 = sadd.s32 %s47, 1
    %p51 = scmp.eq.s32.totalorder %s13, 1
    %p52 = scmp.ne.s32.totalorder %s47, %s49
    %p53 = scmp.eq.s32.totalorder %s13, 0
    %p54 = por %p52, %p53
    %p55 = scmp.ne.s32.totalorder %s47, %s49
    %p56 = scmp.eq.s32.totalorder %s18, 1
    %p57 = por %p55, %p56
    %p58 = scmp.ne.s32.totalorder %s49, %s50
    %p59 = scmp.eq.s32.totalorder %s18, 0
    %p60 = por %p58, %p59
    %p61 = scmp.ne.s32.totalorder %s49, %s50
    %p62 = scmp.eq.s32.totalorder %s19, 1
    %p63 = por %p61, %p62
    %p65 = scmp.ne.s32.totalorder %s50, %s64
    %p66 = scmp.eq.s32.totalorder %s19, 0
    %p67 = por %p65, %p66
    %s69 = sadd.s32 %s68, 1
    %p72 = scmp.eq.s32.totalorder %s13, 1
    %p73 = scmp.ne.s32.totalorder %s68, %s70
    %p74 = scmp.eq.s32.totalorder %s13, 0
    %p75 = por %p73, %p74
    %p76 = scmp.ne.s32.totalorder %s68, %s70
    %p77 = scmp.eq.s32.totalorder %s18, 1
    %p78 = por %p76, %p77
    %p79 = scmp.ne.s32.totalorder %s70, %s71
    %p80 = scmp.eq.s32.totalorder %s18, 0
    %p81 = por %p79, %p80
    %p82 = scmp.ne.s32.totalorder %s70, %s71
    %p83 = scmp.eq.s32.totalorder %s19, 1
    %p84 = por %p82, %p83
    %p86 = scmp.ne.s32.totalorder %s71, %s85
    %p87 = scmp.eq.s32.totalorder %s19, 0
    %p88 = por %p86, %p87
    %s90 = sadd.s32 %s89, 1
    %p93 = scmp.eq.s32.totalorder %s13, 1
    %p94 = scmp.ne.s32.totalorder %s89, %s91
    %p95 = scmp.eq.s32.totalorder %s13, 0
    %p96 = por %p94, %p95
    %p97 = scmp.ne.s32.totalorder %s89, %s91
    %p98 = scmp.eq.s32.totalorder %s18, 1
    %p99 = por %p97, %p98
    %p100 = scmp.ne.s32.totalorder %s91, %s92
    %p101 = scmp.eq.s32.totalorder %s18, 0
    %p102 = por %p100, %p101
    %p103 = scmp.ne.s32.totalorder %s91, %s92
    %p104 = scmp.eq.s32.totalorder %s19, 1
    %p105 = por %p103, %p104
    %p107 = scmp.ne.s32.totalorder %s92, %s106
    %p108 = scmp.eq.s32.totalorder %s19, 0
    %p109 = por %p107, %p108
    %s111 = sadd.s32 %s110, 1
    %p114 = scmp.eq.s32.totalorder %s13, 1
    %p115 = scmp.ne.s32.totalorder %s110, %s112
    %p116 = scmp.eq.s32.totalorder %s13, 0
    %p117 = por %p115, %p116
    %p118 = scmp.ne.s32.totalorder %s110, %s112
    %p119 = scmp.eq.s32.totalorder %s18, 1
    %p120 = por %p118, %p119
    %p121 = scmp.ne.s32.totalorder %s112, %s113
    %p122 = scmp.eq.s32.totalorder %s18, 0
    %p123 = por %p121, %p122
    %p124 = scmp.ne.s32.totalorder %s112, %s113
    %p125 = scmp.eq.s32.totalorder %s19, 1
    %p126 = por %p124, %p125
    %p128 = scmp.ne.s32.totalorder %s113, %s127
    %p129 = scmp.eq.s32.totalorder %s19, 0
    %p130 = por %p128, %p129
    %s132 = sadd.s32 %s131, 1
    %p135 = scmp.eq.s32.totalorder %s13, 1
    %p136 = scmp.ne.s32.totalorder %s131, %s133
    %p137 = scmp.eq.s32.totalorder %s13, 0
    %p138 = por %p136, %p137
    %p139 = scmp.ne.s32.totalorder %s131, %s133
    %p140 = scmp.eq.s32.totalorder %s18, 1
    %p141 = por %p139, %p140
    %p142 = scmp.ne.s32.totalorder %s133, %s134
    %p143 = scmp.eq.s32.totalorder %s18, 0
    %p144 = por %p142, %p143
    %p145 = scmp.ne.s32.totalorder %s133, %s134
    %p146 = scmp.eq.s32.totalorder %s19, 1
    %p147 = por %p145, %p146
    %p149 = scmp.ne.s32.totalorder %s134, %s148
    %p150 = scmp.eq.s32.totalorder %s19, 0
    %p151 = por %p149, %p150
    %s153 = sadd.s32 %s152, 1
    %p156 = scmp.eq.s32.totalorder %s13, 1
    %p157 = scmp.ne.s32.totalorder %s152, %s154
    %p158 = scmp.eq.s32.totalorder %s13, 0
    %p159 = por %p157, %p158
    %p160 = scmp.ne.s32.totalorder %s152, %s154
    %p161 = scmp.eq.s32.totalorder %s18, 1
    %p162 = por %p160, %p161
    %p163 = scmp.ne.s32.totalorder %s154, %s155
    %p164 = scmp.eq.s32.totalorder %s18, 0
    %p165 = por %p163, %p164
    %p166 = scmp.ne.s32.totalorder %s154, %s155
    %p167 = scmp.eq.s32.totalorder %s19, 1
    %p168 = por %p166, %p167
    %p170 = scmp.ne.s32.totalorder %s155, %s169
    %p171 = scmp.eq.s32.totalorder %s19, 0
    %p172 = por %p170, %p171
    %s173 = ssub.s32 %s13, %s20
    %p174 = scmp.eq.s32.totalorder %s173, 0
    %s176 = sadd.s32 %s175, 1
    %s177 = scalar_select %p174, %s175, %s176
    %p180 = pneg %p174
    %p181 = scmp.eq.s32.totalorder %s13, 1
    %p182 = por %p180, %p181
    %p183 = scmp.ne.s32.totalorder %s175, %s178
    %p184 = scmp.eq.s32.totalorder %s13, 0
    %p185 = por %p183, %p184
    %p186 = scmp.ne.s32.totalorder %s175, %s178
    %p187 = scmp.eq.s32.totalorder %s18, 1
    %p188 = por %p186, %p187
    %p189 = scmp.ne.s32.totalorder %s178, %s179
    %p190 = scmp.eq.s32.totalorder %s18, 0
    %p191 = por %p189, %p190
    %p192 = scmp.ne.s32.totalorder %s178, %s179
    %p193 = scmp.eq.s32.totalorder %s19, 1
    %p194 = por %p192, %p193
    %p196 = scmp.ne.s32.totalorder %s179, %s195
    %p197 = scmp.eq.s32.totalorder %s19, 0
    %p198 = por %p196, %p197
    %p199 = scmp.le.s32.totalorder 1, %s13
    %p200 = scmp.lt.s32.totalorder %s13, 3
    %p201 = pnand %p199, %p200
    %p202 = pneg %p201
    // Predicated region
    $region9: #{tpu_custom_call.1} parent=5 // pred_check
      _
    $region10: #{tpu_custom_call.1} parent=5 // pred_check_branch
      %204 = sbr.rel (%p201) target = $region12
    $region11: #{tpu_custom_call.1} parent=5 // pred_region
      %s205 = ssub.s32 %s13, 1
      // Predicated region
      $region13: #{tpu_custom_call.1} parent=11 // pred_check
        %p206 = pneg %p60
      $region14: #{tpu_custom_call.1} parent=11 // pred_check_branch
        %208 = sbr.rel (%p206) target = $region16
      $region15: #{tpu_custom_call.1} parent=11 // pred_region
        _
      $region16: #{tpu_custom_call.1} parent=11 // pred_fallthru
        _
      // Predicated region
      $region17: #{tpu_custom_call.1} parent=11 // pred_check
        %p209 = pneg %p81
      $region18: #{tpu_custom_call.1} parent=11 // pred_check_branch
        %211 = sbr.rel (%p209) target = $region20
      $region19: #{tpu_custom_call.1} parent=11 // pred_region
        _
      $region20: #{tpu_custom_call.1} parent=11 // pred_fallthru
        _
      // Predicated region
      $region21: #{tpu_custom_call.1} parent=11 // pred_check
        %p212 = pneg %p102
      $region22: #{tpu_custom_call.1} parent=11 // pred_check_branch
        %214 = sbr.rel (%p212) target = $region24
      $region23: #{tpu_custom_call.1} parent=11 // pred_region
        _
      $region24: #{tpu_custom_call.1} parent=11 // pred_fallthru
        _
      // Predicated region
      $region25: #{tpu_custom_call.1} parent=11 // pred_check
        %p215 = pneg %p123
      $region26: #{tpu_custom_call.1} parent=11 // pred_check_branch
        %217 = sbr.rel (%p215) target = $region28
      $region27: #{tpu_custom_call.1} parent=11 // pred_region
        _
      $region28: #{tpu_custom_call.1} parent=11 // pred_fallthru
        _
      // Predicated region
      $region29: #{tpu_custom_call.1} parent=11 // pred_check
        %p218 = pneg %p144
      $region30: #{tpu_custom_call.1} parent=11 // pred_check_branch
        %220 = sbr.rel (%p218) target = $region32
      $region31: #{tpu_custom_call.1} parent=11 // pred_region
        _
      $region32: #{tpu_custom_call.1} parent=11 // pred_fallthru
        _
      // Predicated region
      $region33: #{tpu_custom_call.1} parent=11 // pred_check
        %p221 = pneg %p165
      $region34: #{tpu_custom_call.1} parent=11 // pred_check_branch
        %223 = sbr.rel (%p221) target = $region36
      $region35: #{tpu_custom_call.1} parent=11 // pred_region
        _
      $region36: #{tpu_custom_call.1} parent=11 // pred_fallthru
        _
    $region12: #{tpu_custom_call.1} parent=5 // pred_fallthru
      _
    %p224 = scmp.lt.s32.totalorder %s13, 2
    // Predicated region
    $region37: #{tpu_custom_call.1} parent=5 // pred_check
      %p225 = pneg %p224
    $region38: #{tpu_custom_call.1} parent=5 // pred_check_branch
      %227 = sbr.rel (%p225) target = $region40
    $region39: #{tpu_custom_call.1} parent=5 // pred_region
      // Predicated region
      $region41: #{tpu_custom_call.1} parent=39 // pred_check
        %p228 = pneg %p33
      $region42: #{tpu_custom_call.1} parent=39 // pred_check_branch
        %230 = sbr.rel (%p228) target = $region44
      $region43: #{tpu_custom_call.1} parent=39 // pred_region
        %p231 = scmp.lt.s32.totalorder %s13, 1
        %s232 = scalar_select %p231, %s13, 1
        %s233 = smul.addr %s232, 54
        %s234 = smul.addr %s233, 4
        %s235 = scalar_lea.vmem %s0, %s234
      $region44: #{tpu_custom_call.1} parent=39 // pred_fallthru
        _
    $region40: #{tpu_custom_call.1} parent=5 // pred_fallthru
      _
    %p236 = scmp.le.s32.totalorder 1, %s13
    %p237 = scmp.lt.s32.totalorder %s13, 3
    %p238 = pnand %p236, %p237
    %p239 = pneg %p238
    // Predicated region
    $region45: #{tpu_custom_call.1} parent=5 // pred_check
      _
    $region46: #{tpu_custom_call.1} parent=5 // pred_check_branch
      %241 = sbr.rel (%p238) target = $region48
    $region47: #{tpu_custom_call.1} parent=5 // pred_region
      %s242 = ssub.s32 %s13, 1
      %p243 = scmp.lt.s32.totalorder %s18, 1
      %s244 = scalar_select %p243, %s18, 1
      %s245 = smul.addr %s244, 54
      %s246 = smul.addr %s245, 4
      %s247 = scalar_lea.vmem %s0, %s246
      %p248 = pneg %p39
      %p249 = pneg %p36
      %p250 = pneg %p60
      %p251 = pneg %p57
      %p252 = pneg %p81
      %p253 = pneg %p78
      %p254 = pneg %p102
      %p255 = pneg %p99
      %p256 = pneg %p123
      %p257 = pneg %p120
      %p258 = pneg %p144
      %p259 = pneg %p141
      %p260 = pneg %p165
      %p261 = pneg %p162
      %p262 = pneg %p191
      %p263 = pneg %p188
      %p264 = scmp.lt.s32.totalorder %s18, 1
      %s265 = scalar_select %p264, %s18, 1
      %s266 = smul.addr %s265, 32
      %s267 = smul.addr %s266, 8
      %s268 = scalar_lea.vmem %s7, %s267
      %p269 = scmp.lt.s32.totalorder %s18, 1
      %s270 = scalar_select %p269, %s18, 1
      %s271 = smul.addr %s270, 54
      %s272 = smul.addr %s271, 4
      %s273 = scalar_lea.vmem %s0, %s272
      %p274 = scmp.lt.s32.totalorder %s18, 1
      %s275 = scalar_select %p274, %s18, 1
      %s276 = smul.addr %s275, 32
      %s277 = smul.addr %s276, 8
      %s278 = scalar_lea.vmem %s7, %s277
      %v280 = vld [vmem:[%s273] sm:$0xf]
      %v281 = vld [vmem:[%s273 + $0x4] sm:$0xf]
      %v282 = vld [vmem:[%s273 + $0xc] sm:$0xf]
      %v283 = vld [vmem:[%s273 + $0x10] sm:$0xf]
      %v284 = vld [vmem:[%s273 + $0x18] sm:$0xf]
      %v285 = vld [vmem:[%s273 + $0x1c] sm:$0xf]
      %v286 = vld [vmem:[%s273 + $0x24] sm:$0xf]
      %v287 = vld [vmem:[%s273 + $0x28] sm:$0xf]
      %v288 = vld [vmem:[%s273 + $0x30] sm:$0xf]
      %v289 = vld [vmem:[%s273 + $0x34] sm:$0xf]
      %v290 = vld [vmem:[%s273 + $0x3c] sm:$0xf]
      %v291 = vld [vmem:[%s273 + $0x40] sm:$0xf]
      %v292 = vld [vmem:[%s273 + $0x48] sm:$0xf]
      %v293 = vld [vmem:[%s273 + $0x4c] sm:$0xf]
      %v294 = vld [vmem:[%s273 + $0x54] sm:$0xf]
      %v295 = vld [vmem:[%s273 + $0x58] sm:$0xf]
      %v296 = vld [vmem:[%s273 + $0x60] sm:$0xf]
      %v297 = vld [vmem:[%s273 + $0x64] sm:$0xf]
      %v298 = vld [vmem:[%s273 + $0x6c] sm:$0xf]
      %v299 = vld [vmem:[%s273 + $0x70] sm:$0xf]
      %v300 = vld [vmem:[%s273 + $0x78] sm:$0xf]
      %v301 = vld [vmem:[%s273 + $0x7c] sm:$0xf]
      %v302 = vld [vmem:[%s273 + $0x84] sm:$0xf]
      %v303 = vld [vmem:[%s273 + $0x88] sm:$0xf]
      %v304 = vld [vmem:[%s273 + $0x90] sm:$0xf]
      %v305 = vld [vmem:[%s273 + $0x94] sm:$0xf]
      %v306 = vld [vmem:[%s273 + $0x9c] sm:$0xf]
      %v307 = vld [vmem:[%s273 + $0xa0] sm:$0xf]
      %v308 = vld [vmem:[%s273 + $0xa8] sm:$0xf]
      %v309 = vld [vmem:[%s273 + $0xac] sm:$0xf]
      %v310 = vld [vmem:[%s273 + $0xb4] sm:$0xf]
      %v311 = vld [vmem:[%s273 + $0xb8] sm:$0xf]
      %v312 = vld [vmem:[%s273 + $0x8] sm:$0x1]
      %v313 = vld [vmem:[%s273 + $0x14] sm:$0x1]
      %v314 = vld [vmem:[%s273 + $0x20] sm:$0x1]
      %v315 = vld [vmem:[%s273 + $0x2c] sm:$0x1]
      %v316 = vld [vmem:[%s273 + $0x38] sm:$0x1]
      %v317 = vld [vmem:[%s273 + $0x44] sm:$0x1]
      %v318 = vld [vmem:[%s273 + $0x50] sm:$0x1]
      %v319 = vld [vmem:[%s273 + $0x5c] sm:$0x1]
      %v320 = vld [vmem:[%s273 + $0x68] sm:$0x1]
      %v321 = vld [vmem:[%s273 + $0x74] sm:$0x1]
      %v322 = vld [vmem:[%s273 + $0x80] sm:$0x1]
      %v323 = vld [vmem:[%s273 + $0x8c] sm:$0x1]
      %v324 = vld [vmem:[%s273 + $0x98] sm:$0x1]
      %v325 = vld [vmem:[%s273 + $0xa4] sm:$0x1]
      %v326 = vld [vmem:[%s273 + $0xb0] sm:$0x1]
      %v327 = vld [vmem:[%s273 + $0xbc] sm:$0x1]
      %v328 = vld [vmem:[%s273] sm:$0xe]
      %v329 = vld [vmem:[%s273 + $0xc] sm:$0xe]
      %v330 = vld [vmem:[%s273 + $0x18] sm:$0xe]
      %v331 = vld [vmem:[%s273 + $0x24] sm:$0xe]
      %v332 = vld [vmem:[%s273 + $0x30] sm:$0xe]
      %v333 = vld [vmem:[%s273 + $0x3c] sm:$0xe]
      %v334 = vld [vmem:[%s273 + $0x48] sm:$0xe]
      %v335 = vld [vmem:[%s273 + $0x54] sm:$0xe]
      %v336 = vld [vmem:[%s273 + $0x60] sm:$0xe]
      %v337 = vld [vmem:[%s273 + $0x6c] sm:$0xe]
      %v338 = vld [vmem:[%s273 + $0x78] sm:$0xe]
      %v339 = vld [vmem:[%s273 + $0x84] sm:$0xe]
      %v340 = vld [vmem:[%s273 + $0x90] sm:$0xe]
      %v341 = vld [vmem:[%s273 + $0x9c] sm:$0xe]
      %v342 = vld [vmem:[%s273 + $0xa8] sm:$0xe]
      %v343 = vld [vmem:[%s273 + $0xb4] sm:$0xe]
      %s344 = scalar_lea.vmem %s273, 12
      %v345 = vld [vmem:[%s344] sm:$0xf]
      %v346 = vld [vmem:[%s344 + $0x4] sm:$0xf]
      %v347 = vld [vmem:[%s344 + $0xc] sm:$0xf]
      %v348 = vld [vmem:[%s344 + $0x10] sm:$0xf]
      %v349 = vld [vmem:[%s344 + $0x18] sm:$0xf]
      %v350 = vld [vmem:[%s344 + $0x1c] sm:$0xf]
      %v351 = vld [vmem:[%s344 + $0x24] sm:$0xf]
      %v352 = vld [vmem:[%s344 + $0x28] sm:$0xf]
      %v353 = vld [vmem:[%s344 + $0x30] sm:$0xf]
      %v354 = vld [vmem:[%s344 + $0x34] sm:$0xf]
      %v355 = vld [vmem:[%s344 + $0x3c] sm:$0xf]
      %v356 = vld [vmem:[%s344 + $0x40] sm:$0xf]
      %v357 = vld [vmem:[%s344 + $0x48] sm:$0xf]
      %v358 = vld [vmem:[%s344 + $0x4c] sm:$0xf]
      %v359 = vld [vmem:[%s344 + $0x54] sm:$0xf]
      %v360 = vld [vmem:[%s344 + $0x58] sm:$0xf]
      %v361 = vld [vmem:[%s344 + $0x60] sm:$0xf]
      %v362 = vld [vmem:[%s344 + $0x64] sm:$0xf]
      %v363 = vld [vmem:[%s344 + $0x6c] sm:$0xf]
      %v364 = vld [vmem:[%s344 + $0x70] sm:$0xf]
      %v365 = vld [vmem:[%s344 + $0x78] sm:$0xf]
      %v366 = vld [vmem:[%s344 + $0x7c] sm:$0xf]
      %v367 = vld [vmem:[%s344 + $0x84] sm:$0xf]
      %v368 = vld [vmem:[%s344 + $0x88] sm:$0xf]
      %v369 = vld [vmem:[%s344 + $0x90] sm:$0xf]
      %v370 = vld [vmem:[%s344 + $0x94] sm:$0xf]
      %v371 = vld [vmem:[%s344 + $0x9c] sm:$0xf]
      %v372 = vld [vmem:[%s344 + $0xa0] sm:$0xf]
      %v373 = vld [vmem:[%s344 + $0xa8] sm:$0xf]
      %v374 = vld [vmem:[%s344 + $0xac] sm:$0xf]
      %v375 = vld [vmem:[%s344 + $0xb4] sm:$0xf]
      %v376 = vld [vmem:[%s344 + $0xb8] sm:$0xf]
      %v377 = vld [vmem:[%s344 + $0x8] sm:$0x1]
      %v378 = vld [vmem:[%s344 + $0x14] sm:$0x1]
      %v379 = vld [vmem:[%s344 + $0x20] sm:$0x1]
      %v380 = vld [vmem:[%s344 + $0x2c] sm:$0x1]
      %v381 = vld [vmem:[%s344 + $0x38] sm:$0x1]
      %v382 = vld [vmem:[%s344 + $0x44] sm:$0x1]
      %v383 = vld [vmem:[%s344 + $0x50] sm:$0x1]
      %v384 = vld [vmem:[%s344 + $0x5c] sm:$0x1]
      %v385 = vld [vmem:[%s344 + $0x68] sm:$0x1]
      %v386 = vld [vmem:[%s344 + $0x74] sm:$0x1]
      %v387 = vld [vmem:[%s344 + $0x80] sm:$0x1]
      %v388 = vld [vmem:[%s344 + $0x8c] sm:$0x1]
      %v389 = vld [vmem:[%s344 + $0x98] sm:$0x1]
      %v390 = vld [vmem:[%s344 + $0xa4] sm:$0x1]
      %v391 = vld [vmem:[%s344 + $0xb0] sm:$0x1]
      %v392 = vld [vmem:[%s344 + $0xbc] sm:$0x1]
      %v393 = vld [vmem:[%s344] sm:$0xe]
      %v394 = vld [vmem:[%s344 + $0xc] sm:$0xe]
      %v395 = vld [vmem:[%s344 + $0x18] sm:$0xe]
      %v396 = vld [vmem:[%s344 + $0x24] sm:$0xe]
      %v397 = vld [vmem:[%s344 + $0x30] sm:$0xe]
      %v398 = vld [vmem:[%s344 + $0x3c] sm:$0xe]
      %v399 = vld [vmem:[%s344 + $0x48] sm:$0xe]
      %v400 = vld [vmem:[%s344 + $0x54] sm:$0xe]
      %v401 = vld [vmem:[%s344 + $0x60] sm:$0xe]
      %v402 = vld [vmem:[%s344 + $0x6c] sm:$0xe]
      %v403 = vld [vmem:[%s344 + $0x78] sm:$0xe]
      %v404 = vld [vmem:[%s344 + $0x84] sm:$0xe]
      %v405 = vld [vmem:[%s344 + $0x90] sm:$0xe]
      %v406 = vld [vmem:[%s344 + $0x9c] sm:$0xe]
      %v407 = vld [vmem:[%s344 + $0xa8] sm:$0xe]
      %v408 = vld [vmem:[%s344 + $0xb4] sm:$0xe]
      %s409 = scalar_lea.vmem %s273, 24
      %v410 = vld [vmem:[%s409] sm:$0xf]
      %v411 = vld [vmem:[%s409 + $0x4] sm:$0xf]
      %v412 = vld [vmem:[%s409 + $0xc] sm:$0xf]
      %v413 = vld [vmem:[%s409 + $0x10] sm:$0xf]
      %v414 = vld [vmem:[%s409 + $0x18] sm:$0xf]
      %v415 = vld [vmem:[%s409 + $0x1c] sm:$0xf]
      %v416 = vld [vmem:[%s409 + $0x24] sm:$0xf]
      %v417 = vld [vmem:[%s409 + $0x28] sm:$0xf]
      %v418 = vld [vmem:[%s409 + $0x30] sm:$0xf]
      %v419 = vld [vmem:[%s409 + $0x34] sm:$0xf]
      %v420 = vld [vmem:[%s409 + $0x3c] sm:$0xf]
      %v421 = vld [vmem:[%s409 + $0x40] sm:$0xf]
      %v422 = vld [vmem:[%s409 + $0x48] sm:$0xf]
      %v423 = vld [vmem:[%s409 + $0x4c] sm:$0xf]
      %v424 = vld [vmem:[%s409 + $0x54] sm:$0xf]
      %v425 = vld [vmem:[%s409 + $0x58] sm:$0xf]
      %v426 = vld [vmem:[%s409 + $0x60] sm:$0xf]
      %v427 = vld [vmem:[%s409 + $0x64] sm:$0xf]
      %v428 = vld [vmem:[%s409 + $0x6c] sm:$0xf]
      %v429 = vld [vmem:[%s409 + $0x70] sm:$0xf]
      %v430 = vld [vmem:[%s409 + $0x78] sm:$0xf]
      %v431 = vld [vmem:[%s409 + $0x7c] sm:$0xf]
      %v432 = vld [vmem:[%s409 + $0x84] sm:$0xf]
      %v433 = vld [vmem:[%s409 + $0x88] sm:$0xf]
      %v434 = vld [vmem:[%s409 + $0x90] sm:$0xf]
      %v435 = vld [vmem:[%s409 + $0x94] sm:$0xf]
      %v436 = vld [vmem:[%s409 + $0x9c] sm:$0xf]
      %v437 = vld [vmem:[%s409 + $0xa0] sm:$0xf]
      %v438 = vld [vmem:[%s409 + $0xa8] sm:$0xf]
      %v439 = vld [vmem:[%s409 + $0xac] sm:$0xf]
      %v440 = vld [vmem:[%s409 + $0xb4] sm:$0xf]
      %v441 = vld [vmem:[%s409 + $0xb8] sm:$0xf]
      %v442 = vld [vmem:[%s409 + $0x8] sm:$0x1]
      %v443 = vld [vmem:[%s409 + $0x14] sm:$0x1]
      %v444 = vld [vmem:[%s409 + $0x20] sm:$0x1]
      %v445 = vld [vmem:[%s409 + $0x2c] sm:$0x1]
      %v446 = vld [vmem:[%s409 + $0x38] sm:$0x1]
      %v447 = vld [vmem:[%s409 + $0x44] sm:$0x1]
      %v448 = vld [vmem:[%s409 + $0x50] sm:$0x1]
      %v449 = vld [vmem:[%s409 + $0x5c] sm:$0x1]
      %v450 = vld [vmem:[%s409 + $0x68] sm:$0x1]
      %v451 = vld [vmem:[%s409 + $0x74] sm:$0x1]
      %v452 = vld [vmem:[%s409 + $0x80] sm:$0x1]
      %v453 = vld [vmem:[%s409 + $0x8c] sm:$0x1]
      %v454 = vld [vmem:[%s409 + $0x98] sm:$0x1]
      %v455 = vld [vmem:[%s409 + $0xa4] sm:$0x1]
      %v456 = vld [vmem:[%s409 + $0xb0] sm:$0x1]
      %v457 = vld [vmem:[%s409 + $0xbc] sm:$0x1]
      %v458 = vld [vmem:[%s409] sm:$0xe]
      %v459 = vld [vmem:[%s409 + $0xc] sm:$0xe]
      %v460 = vld [vmem:[%s409 + $0x18] sm:$0xe]
      %v461 = vld [vmem:[%s409 + $0x24] sm:$0xe]
      %v462 = vld [vmem:[%s409 + $0x30] sm:$0xe]
      %v463 = vld [vmem:[%s409 + $0x3c] sm:$0xe]
      %v464 = vld [vmem:[%s409 + $0x48] sm:$0xe]
      %v465 = vld [vmem:[%s409 + $0x54] sm:$0xe]
      %v466 = vld [vmem:[%s409 + $0x60] sm:$0xe]
      %v467 = vld [vmem:[%s409 + $0x6c] sm:$0xe]
      %v468 = vld [vmem:[%s409 + $0x78] sm:$0xe]
      %v469 = vld [vmem:[%s409 + $0x84] sm:$0xe]
      %v470 = vld [vmem:[%s409 + $0x90] sm:$0xe]
      %v471 = vld [vmem:[%s409 + $0x9c] sm:$0xe]
      %v472 = vld [vmem:[%s409 + $0xa8] sm:$0xe]
      %v473 = vld [vmem:[%s409 + $0xb4] sm:$0xe]
      %v506 = vunpack.c.l.b16 %v280
      %v507 = vunpack.c.l.b16 %v281
      %v508 = vunpack.c.l.b16 %v282
      %v509 = vunpack.c.l.b16 %v283
      %v510 = vunpack.c.l.b16 %v284
      %v511 = vunpack.c.l.b16 %v285
      %v512 = vunpack.c.l.b16 %v286
      %v513 = vunpack.c.l.b16 %v287
      %v514 = vunpack.c.l.b16 %v288
      %v515 = vunpack.c.l.b16 %v289
      %v516 = vunpack.c.l.b16 %v290
      %v517 = vunpack.c.l.b16 %v291
      %v518 = vunpack.c.l.b16 %v292
      %v519 = vunpack.c.l.b16 %v293
      %v520 = vunpack.c.l.b16 %v294
      %v521 = vunpack.c.l.b16 %v295
      %v522 = vunpack.c.l.b16 %v296
      %v523 = vunpack.c.l.b16 %v297
      %v524 = vunpack.c.l.b16 %v298
      %v525 = vunpack.c.l.b16 %v299
      %v526 = vunpack.c.l.b16 %v300
      %v527 = vunpack.c.l.b16 %v301
      %v528 = vunpack.c.l.b16 %v302
      %v529 = vunpack.c.l.b16 %v303
      %v530 = vunpack.c.l.b16 %v304
      %v531 = vunpack.c.l.b16 %v305
      %v532 = vunpack.c.l.b16 %v306
      %v533 = vunpack.c.l.b16 %v307
      %v534 = vunpack.c.l.b16 %v308
      %v535 = vunpack.c.l.b16 %v309
      %v536 = vunpack.c.l.b16 %v310
      %v537 = vunpack.c.l.b16 %v311
      %v538 = vpack.c.b16 %v507, %v506
      %v539 = vpack.c.b16 %v509, %v508
      %v540 = vpack.c.b16 %v511, %v510
      %v541 = vpack.c.b16 %v513, %v512
      %v542 = vpack.c.b16 %v515, %v514
      %v543 = vpack.c.b16 %v517, %v516
      %v544 = vpack.c.b16 %v519, %v518
      %v545 = vpack.c.b16 %v521, %v520
      %v546 = vpack.c.b16 %v523, %v522
      %v547 = vpack.c.b16 %v525, %v524
      %v548 = vpack.c.b16 %v527, %v526
      %v549 = vpack.c.b16 %v529, %v528
      %v550 = vpack.c.b16 %v531, %v530
      %v551 = vpack.c.b16 %v533, %v532
      %v552 = vpack.c.b16 %v535, %v534
      %v553 = vpack.c.b16 %v537, %v536
      %v570 = vunpack.c.l.b16 %v312
      %v571 = vunpack.c.l.b16 %v313
      %v572 = vunpack.c.l.b16 %v314
      %v573 = vunpack.c.l.b16 %v315
      %v574 = vunpack.c.l.b16 %v316
      %v575 = vunpack.c.l.b16 %v317
      %v576 = vunpack.c.l.b16 %v318
      %v577 = vunpack.c.l.b16 %v319
      %v578 = vunpack.c.l.b16 %v320
      %v579 = vunpack.c.l.b16 %v321
      %v580 = vunpack.c.l.b16 %v322
      %v581 = vunpack.c.l.b16 %v323
      %v582 = vunpack.c.l.b16 %v324
      %v583 = vunpack.c.l.b16 %v325
      %v584 = vunpack.c.l.b16 %v326
      %v585 = vunpack.c.l.b16 %v327
      %v586 = vpack.c.b16 %v570, %v570
      %v587 = vpack.c.b16 %v571, %v571
      %v588 = vpack.c.b16 %v572, %v572
      %v589 = vpack.c.b16 %v573, %v573
      %v590 = vpack.c.b16 %v574, %v574
      %v591 = vpack.c.b16 %v575, %v575
      %v592 = vpack.c.b16 %v576, %v576
      %v593 = vpack.c.b16 %v577, %v577
      %v594 = vpack.c.b16 %v578, %v578
      %v595 = vpack.c.b16 %v579, %v579
      %v596 = vpack.c.b16 %v580, %v580
      %v597 = vpack.c.b16 %v581, %v581
      %v598 = vpack.c.b16 %v582, %v582
      %v599 = vpack.c.b16 %v583, %v583
      %v600 = vpack.c.b16 %v584, %v584
      %v601 = vpack.c.b16 %v585, %v585
      %vm602 = vsmask.f32 7424
      %v604 = vshrl.u32 %v538, 16
      %v606 = vshll.u32 %v538, 16
      %v608 = vrot.slane %v606, 1
      %v609 = vor.u32 %v604, %v608
      %v611 = vshll.u32 %v586, 16
      %v613 = vrot.slane %v611, 1
      %v614 = vsel %vm602, %v609, %v613
      %v616 = vshrl.u32 %v539, 16
      %v618 = vshll.u32 %v539, 16
      %v620 = vrot.slane %v618, 1
      %v621 = vor.u32 %v616, %v620
      %v623 = vshll.u32 %v587, 16
      %v625 = vrot.slane %v623, 1
      %v626 = vsel %vm602, %v621, %v625
      %v628 = vshrl.u32 %v540, 16
      %v630 = vshll.u32 %v540, 16
      %v632 = vrot.slane %v630, 1
      %v633 = vor.u32 %v628, %v632
      %v635 = vshll.u32 %v588, 16
      %v637 = vrot.slane %v635, 1
      %v638 = vsel %vm602, %v633, %v637
      %v640 = vshrl.u32 %v541, 16
      %v642 = vshll.u32 %v541, 16
      %v644 = vrot.slane %v642, 1
      %v645 = vor.u32 %v640, %v644
      %v647 = vshll.u32 %v589, 16
      %v649 = vrot.slane %v647, 1
      %v650 = vsel %vm602, %v645, %v649
      %v652 = vshrl.u32 %v542, 16
      %v654 = vshll.u32 %v542, 16
      %v656 = vrot.slane %v654, 1
      %v657 = vor.u32 %v652, %v656
      %v659 = vshll.u32 %v590, 16
      %v661 = vrot.slane %v659, 1
      %v662 = vsel %vm602, %v657, %v661
      %v664 = vshrl.u32 %v543, 16
      %v666 = vshll.u32 %v543, 16
      %v668 = vrot.slane %v666, 1
      %v669 = vor.u32 %v664, %v668
      %v671 = vshll.u32 %v591, 16
      %v673 = vrot.slane %v671, 1
      %v674 = vsel %vm602, %v669, %v673
      %v676 = vshrl.u32 %v544, 16
      %v678 = vshll.u32 %v544, 16
      %v680 = vrot.slane %v678, 1
      %v681 = vor.u32 %v676, %v680
      %v683 = vshll.u32 %v592, 16
      %v685 = vrot.slane %v683, 1
      %v686 = vsel %vm602, %v681, %v685
      %v688 = vshrl.u32 %v545, 16
      %v690 = vshll.u32 %v545, 16
      %v692 = vrot.slane %v690, 1
      %v693 = vor.u32 %v688, %v692
      %v695 = vshll.u32 %v593, 16
      %v697 = vrot.slane %v695, 1
      %v698 = vsel %vm602, %v693, %v697
      %v700 = vshrl.u32 %v546, 16
      %v702 = vshll.u32 %v546, 16
      %v704 = vrot.slane %v702, 1
      %v705 = vor.u32 %v700, %v704
      %v707 = vshll.u32 %v594, 16
      %v709 = vrot.slane %v707, 1
      %v710 = vsel %vm602, %v705, %v709
      %v712 = vshrl.u32 %v547, 16
      %v714 = vshll.u32 %v547, 16
      %v716 = vrot.slane %v714, 1
      %v717 = vor.u32 %v712, %v716
      %v719 = vshll.u32 %v595, 16
      %v721 = vrot.slane %v719, 1
      %v722 = vsel %vm602, %v717, %v721
      %v724 = vshrl.u32 %v548, 16
      %v726 = vshll.u32 %v548, 16
      %v728 = vrot.slane %v726, 1
      %v729 = vor.u32 %v724, %v728
      %v731 = vshll.u32 %v596, 16
      %v733 = vrot.slane %v731, 1
      %v734 = vsel %vm602, %v729, %v733
      %v736 = vshrl.u32 %v549, 16
      %v738 = vshll.u32 %v549, 16
      %v740 = vrot.slane %v738, 1
      %v741 = vor.u32 %v736, %v740
      %v743 = vshll.u32 %v597, 16
      %v745 = vrot.slane %v743, 1
      %v746 = vsel %vm602, %v741, %v745
      %v748 = vshrl.u32 %v550, 16
      %v750 = vshll.u32 %v550, 16
      %v752 = vrot.slane %v750, 1
      %v753 = vor.u32 %v748, %v752
      %v755 = vshll.u32 %v598, 16
      %v757 = vrot.slane %v755, 1
      %v758 = vsel %vm602, %v753, %v757
      %v760 = vshrl.u32 %v551, 16
      %v762 = vshll.u32 %v551, 16
      %v764 = vrot.slane %v762, 1
      %v765 = vor.u32 %v760, %v764
      %v767 = vshll.u32 %v599, 16
      %v769 = vrot.slane %v767, 1
      %v770 = vsel %vm602, %v765, %v769
      %v772 = vshrl.u32 %v552, 16
      %v774 = vshll.u32 %v552, 16
      %v776 = vrot.slane %v774, 1
      %v777 = vor.u32 %v772, %v776
      %v779 = vshll.u32 %v600, 16
      %v781 = vrot.slane %v779, 1
      %v782 = vsel %vm602, %v777, %v781
      %v784 = vshrl.u32 %v553, 16
      %v786 = vshll.u32 %v553, 16
      %v788 = vrot.slane %v786, 1
      %v789 = vor.u32 %v784, %v788
      %v791 = vshll.u32 %v601, 16
      %v793 = vrot.slane %v791, 1
      %v794 = vsel %vm602, %v789, %v793
      %795 = vrot.lane.b32.xlu0 %v614, 4
      %v796 = vpop.permute.xlu0 %795
      %797 = vrot.lane.b32.xlu0 %v626, 4
      %v798 = vpop.permute.xlu0 %797
      %799 = vrot.lane.b32.xlu0 %v638, 4
      %v800 = vpop.permute.xlu0 %799
      %801 = vrot.lane.b32.xlu0 %v650, 4
      %v802 = vpop.permute.xlu0 %801
      %803 = vrot.lane.b32.xlu0 %v662, 4
      %v804 = vpop.permute.xlu0 %803
      %805 = vrot.lane.b32.xlu0 %v674, 4
      %v806 = vpop.permute.xlu0 %805
      %807 = vrot.lane.b32.xlu0 %v686, 4
      %v808 = vpop.permute.xlu0 %807
      %809 = vrot.lane.b32.xlu0 %v698, 4
      %v810 = vpop.permute.xlu0 %809
      %811 = vrot.lane.b32.xlu0 %v710, 4
      %v812 = vpop.permute.xlu0 %811
      %813 = vrot.lane.b32.xlu0 %v722, 4
      %v814 = vpop.permute.xlu0 %813
      %815 = vrot.lane.b32.xlu0 %v734, 4
      %v816 = vpop.permute.xlu0 %815
      %817 = vrot.lane.b32.xlu0 %v746, 4
      %v818 = vpop.permute.xlu0 %817
      %819 = vrot.lane.b32.xlu0 %v758, 4
      %v820 = vpop.permute.xlu0 %819
      %821 = vrot.lane.b32.xlu0 %v770, 4
      %v822 = vpop.permute.xlu0 %821
      %823 = vrot.lane.b32.xlu0 %v782, 4
      %v824 = vpop.permute.xlu0 %823
      %825 = vrot.lane.b32.xlu0 %v794, 4
      %v826 = vpop.permute.xlu0 %825
      %v843 = vunpack.c.l.b16 %v328
      %v844 = vunpack.c.l.b16 %v329
      %v845 = vunpack.c.l.b16 %v330
      %v846 = vunpack.c.l.b16 %v331
      %v847 = vunpack.c.l.b16 %v332
      %v848 = vunpack.c.l.b16 %v333
      %v849 = vunpack.c.l.b16 %v334
      %v850 = vunpack.c.l.b16 %v335
      %v851 = vunpack.c.l.b16 %v336
      %v852 = vunpack.c.l.b16 %v337
      %v853 = vunpack.c.l.b16 %v338
      %v854 = vunpack.c.l.b16 %v339
      %v855 = vunpack.c.l.b16 %v340
      %v856 = vunpack.c.l.b16 %v341
      %v857 = vunpack.c.l.b16 %v342
      %v858 = vunpack.c.l.b16 %v343
      %v859 = vpack.c.b16 %v507, %v843
      %v860 = vpack.c.b16 %v509, %v844
      %v861 = vpack.c.b16 %v511, %v845
      %v862 = vpack.c.b16 %v513, %v846
      %v863 = vpack.c.b16 %v515, %v847
      %v864 = vpack.c.b16 %v517, %v848
      %v865 = vpack.c.b16 %v519, %v849
      %v866 = vpack.c.b16 %v521, %v850
      %v867 = vpack.c.b16 %v523, %v851
      %v868 = vpack.c.b16 %v525, %v852
      %v869 = vpack.c.b16 %v527, %v853
      %v870 = vpack.c.b16 %v529, %v854
      %v871 = vpack.c.b16 %v531, %v855
      %v872 = vpack.c.b16 %v533, %v856
      %v873 = vpack.c.b16 %v535, %v857
      %v874 = vpack.c.b16 %v537, %v858
      %vm875 = vcmask 1046528
      %v876 = vrot.slane %v859, 1
      %v877 = vrot.slane %v586, 1
      %v878 = vsel %vm875, %v876, %v877
      %v879 = vrot.slane %v860, 1
      %v880 = vrot.slane %v587, 1
      %v881 = vsel %vm875, %v879, %v880
      %v882 = vrot.slane %v861, 1
      %v883 = vrot.slane %v588, 1
      %v884 = vsel %vm875, %v882, %v883
      %v885 = vrot.slane %v862, 1
      %v886 = vrot.slane %v589, 1
      %v887 = vsel %vm875, %v885, %v886
      %v888 = vrot.slane %v863, 1
      %v889 = vrot.slane %v590, 1
      %v890 = vsel %vm875, %v888, %v889
      %v891 = vrot.slane %v864, 1
      %v892 = vrot.slane %v591, 1
      %v893 = vsel %vm875, %v891, %v892
      %v894 = vrot.slane %v865, 1
      %v895 = vrot.slane %v592, 1
      %v896 = vsel %vm875, %v894, %v895
      %v897 = vrot.slane %v866, 1
      %v898 = vrot.slane %v593, 1
      %v899 = vsel %vm875, %v897, %v898
      %v900 = vrot.slane %v867, 1
      %v901 = vrot.slane %v594, 1
      %v902 = vsel %vm875, %v900, %v901
      %v903 = vrot.slane %v868, 1
      %v904 = vrot.slane %v595, 1
      %v905 = vsel %vm875, %v903, %v904
      %v906 = vrot.slane %v869, 1
      %v907 = vrot.slane %v596, 1
      %v908 = vsel %vm875, %v906, %v907
      %v909 = vrot.slane %v870, 1
      %v910 = vrot.slane %v597, 1
      %v911 = vsel %vm875, %v909, %v910
      %v912 = vrot.slane %v871, 1
      %v913 = vrot.slane %v598, 1
      %v914 = vsel %vm875, %v912, %v913
      %v915 = vrot.slane %v872, 1
      %v916 = vrot.slane %v599, 1
      %v917 = vsel %vm875, %v915, %v916
      %v918 = vrot.slane %v873, 1
      %v919 = vrot.slane %v600, 1
      %v920 = vsel %vm875, %v918, %v919
      %v921 = vrot.slane %v874, 1
      %v922 = vrot.slane %v601, 1
      %v923 = vsel %vm875, %v921, %v922
      %924 = vrot.lane.b32.xlu0 %v878, 8
      %v925 = vpop.permute.xlu0 %924
      %926 = vrot.lane.b32.xlu0 %v881, 8
      %v927 = vpop.permute.xlu0 %926
      %928 = vrot.lane.b32.xlu0 %v884, 8
      %v929 = vpop.permute.xlu0 %928
      %930 = vrot.lane.b32.xlu0 %v887, 8
      %v931 = vpop.permute.xlu0 %930
      %932 = vrot.lane.b32.xlu0 %v890, 8
      %v933 = vpop.permute.xlu0 %932
      %934 = vrot.lane.b32.xlu0 %v893, 8
      %v935 = vpop.permute.xlu0 %934
      %936 = vrot.lane.b32.xlu0 %v896, 8
      %v937 = vpop.permute.xlu0 %936
      %938 = vrot.lane.b32.xlu0 %v899, 8
      %v939 = vpop.permute.xlu0 %938
      %940 = vrot.lane.b32.xlu0 %v902, 8
      %v941 = vpop.permute.xlu0 %940
      %942 = vrot.lane.b32.xlu0 %v905, 8
      %v943 = vpop.permute.xlu0 %942
      %944 = vrot.lane.b32.xlu0 %v908, 8
      %v945 = vpop.permute.xlu0 %944
      %946 = vrot.lane.b32.xlu0 %v911, 8
      %v947 = vpop.permute.xlu0 %946
      %948 = vrot.lane.b32.xlu0 %v914, 8
      %v949 = vpop.permute.xlu0 %948
      %950 = vrot.lane.b32.xlu0 %v917, 8
      %v951 = vpop.permute.xlu0 %950
      %952 = vrot.lane.b32.xlu0 %v920, 8
      %v953 = vpop.permute.xlu0 %952
      %954 = vrot.lane.b32.xlu0 %v923, 8
      %v955 = vpop.permute.xlu0 %954
      %v988 = vunpack.c.l.b16 %v345
      %v989 = vunpack.c.l.b16 %v346
      %v990 = vunpack.c.l.b16 %v347
      %v991 = vunpack.c.l.b16 %v348
      %v992 = vunpack.c.l.b16 %v349
      %v993 = vunpack.c.l.b16 %v350
      %v994 = vunpack.c.l.b16 %v351
      %v995 = vunpack.c.l.b16 %v352
      %v996 = vunpack.c.l.b16 %v353
      %v997 = vunpack.c.l.b16 %v354
      %v998 = vunpack.c.l.b16 %v355
      %v999 = vunpack.c.l.b16 %v356
      %v1000 = vunpack.c.l.b16 %v357
      %v1001 = vunpack.c.l.b16 %v358
      %v1002 = vunpack.c.l.b16 %v359
      %v1003 = vunpack.c.l.b16 %v360
      %v1004 = vunpack.c.l.b16 %v361
      %v1005 = vunpack.c.l.b16 %v362
      %v1006 = vunpack.c.l.b16 %v363
      %v1007 = vunpack.c.l.b16 %v364
      %v1008 = vunpack.c.l.b16 %v365
      %v1009 = vunpack.c.l.b16 %v366
      %v1010 = vunpack.c.l.b16 %v367
      %v1011 = vunpack.c.l.b16 %v368
      %v1012 = vunpack.c.l.b16 %v369
      %v1013 = vunpack.c.l.b16 %v370
      %v1014 = vunpack.c.l.b16 %v371
      %v1015 = vunpack.c.l.b16 %v372
      %v1016 = vunpack.c.l.b16 %v373
      %v1017 = vunpack.c.l.b16 %v374
      %v1018 = vunpack.c.l.b16 %v375
      %v1019 = vunpack.c.l.b16 %v376
      %v1020 = vpack.c.b16 %v989, %v988
      %v1021 = vpack.c.b16 %v991, %v990
      %v1022 = vpack.c.b16 %v993, %v992
      %v1023 = vpack.c.b16 %v995, %v994
      %v1024 = vpack.c.b16 %v997, %v996
      %v1025 = vpack.c.b16 %v999, %v998
      %v1026 = vpack.c.b16 %v1001, %v1000
      %v1027 = vpack.c.b16 %v1003, %v1002
      %v1028 = vpack.c.b16 %v1005, %v1004
      %v1029 = vpack.c.b16 %v1007, %v1006
      %v1030 = vpack.c.b16 %v1009, %v1008
      %v1031 = vpack.c.b16 %v1011, %v1010
      %v1032 = vpack.c.b16 %v1013, %v1012
      %v1033 = vpack.c.b16 %v1015, %v1014
      %v1034 = vpack.c.b16 %v1017, %v1016
      %v1035 = vpack.c.b16 %v1019, %v1018
      %1036 = vrot.lane.b32.xlu0 %v1020, 12
      %v1037 = vpop.permute.xlu0 %1036
      %1038 = vrot.lane.b32.xlu0 %v1021, 12
      %v1039 = vpop.permute.xlu0 %1038
      %1040 = vrot.lane.b32.xlu0 %v1022, 12
      %v1041 = vpop.permute.xlu0 %1040
      %1042 = vrot.lane.b32.xlu0 %v1023, 12
      %v1043 = vpop.permute.xlu0 %1042
      %1044 = vrot.lane.b32.xlu0 %v1024, 12
      %v1045 = vpop.permute.xlu0 %1044
      %1046 = vrot.lane.b32.xlu0 %v1025, 12
      %v1047 = vpop.permute.xlu0 %1046
      %1048 = vrot.lane.b32.xlu0 %v1026, 12
      %v1049 = vpop.permute.xlu0 %1048
      %1050 = vrot.lane.b32.xlu0 %v1027, 12
      %v1051 = vpop.permute.xlu0 %1050
      %1052 = vrot.lane.b32.xlu0 %v1028, 12
      %v1053 = vpop.permute.xlu0 %1052
      %1054 = vrot.lane.b32.xlu0 %v1029, 12
      %v1055 = vpop.permute.xlu0 %1054
      %1056 = vrot.lane.b32.xlu0 %v1030, 12
      %v1057 = vpop.permute.xlu0 %1056
      %1058 = vrot.lane.b32.xlu0 %v1031, 12
      %v1059 = vpop.permute.xlu0 %1058
      %1060 = vrot.lane.b32.xlu0 %v1032, 12
      %v1061 = vpop.permute.xlu0 %1060
      %1062 = vrot.lane.b32.xlu0 %v1033, 12
      %v1063 = vpop.permute.xlu0 %1062
      %1064 = vrot.lane.b32.xlu0 %v1034, 12
      %v1065 = vpop.permute.xlu0 %1064
      %1066 = vrot.lane.b32.xlu0 %v1035, 12
      %v1067 = vpop.permute.xlu0 %1066
      %v1084 = vunpack.c.l.b16 %v377
      %v1085 = vunpack.c.l.b16 %v378
      %v1086 = vunpack.c.l.b16 %v379
      %v1087 = vunpack.c.l.b16 %v380
      %v1088 = vunpack.c.l.b16 %v381
      %v1089 = vunpack.c.l.b16 %v382
      %v1090 = vunpack.c.l.b16 %v383
      %v1091 = vunpack.c.l.b16 %v384
      %v1092 = vunpack.c.l.b16 %v385
      %v1093 = vunpack.c.l.b16 %v386
      %v1094 = vunpack.c.l.b16 %v387
      %v1095 = vunpack.c.l.b16 %v388
      %v1096 = vunpack.c.l.b16 %v389
      %v1097 = vunpack.c.l.b16 %v390
      %v1098 = vunpack.c.l.b16 %v391
      %v1099 = vunpack.c.l.b16 %v392
      %v1100 = vpack.c.b16 %v1084, %v1084
      %v1101 = vpack.c.b16 %v1085, %v1085
      %v1102 = vpack.c.b16 %v1086, %v1086
      %v1103 = vpack.c.b16 %v1087, %v1087
      %v1104 = vpack.c.b16 %v1088, %v1088
      %v1105 = vpack.c.b16 %v1089, %v1089
      %v1106 = vpack.c.b16 %v1090, %v1090
      %v1107 = vpack.c.b16 %v1091, %v1091
      %v1108 = vpack.c.b16 %v1092, %v1092
      %v1109 = vpack.c.b16 %v1093, %v1093
      %v1110 = vpack.c.b16 %v1094, %v1094
      %v1111 = vpack.c.b16 %v1095, %v1095
      %v1112 = vpack.c.b16 %v1096, %v1096
      %v1113 = vpack.c.b16 %v1097, %v1097
      %v1114 = vpack.c.b16 %v1098, %v1098
      %v1115 = vpack.c.b16 %v1099, %v1099
      %v1117 = vshrl.u32 %v1020, 16
      %v1119 = vshll.u32 %v1020, 16
      %v1121 = vrot.slane %v1119, 1
      %v1122 = vor.u32 %v1117, %v1121
      %v1124 = vshll.u32 %v1100, 16
      %v1126 = vrot.slane %v1124, 1
      %v1127 = vsel %vm602, %v1122, %v1126
      %v1129 = vshrl.u32 %v1021, 16
      %v1131 = vshll.u32 %v1021, 16
      %v1133 = vrot.slane %v1131, 1
      %v1134 = vor.u32 %v1129, %v1133
      %v1136 = vshll.u32 %v1101, 16
      %v1138 = vrot.slane %v1136, 1
      %v1139 = vsel %vm602, %v1134, %v1138
      %v1141 = vshrl.u32 %v1022, 16
      %v1143 = vshll.u32 %v1022, 16
      %v1145 = vrot.slane %v1143, 1
      %v1146 = vor.u32 %v1141, %v1145
      %v1148 = vshll.u32 %v1102, 16
      %v1150 = vrot.slane %v1148, 1
      %v1151 = vsel %vm602, %v1146, %v1150
      %v1153 = vshrl.u32 %v1023, 16
      %v1155 = vshll.u32 %v1023, 16
      %v1157 = vrot.slane %v1155, 1
      %v1158 = vor.u32 %v1153, %v1157
      %v1160 = vshll.u32 %v1103, 16
      %v1162 = vrot.slane %v1160, 1
      %v1163 = vsel %vm602, %v1158, %v1162
      %v1165 = vshrl.u32 %v1024, 16
      %v1167 = vshll.u32 %v1024, 16
      %v1169 = vrot.slane %v1167, 1
      %v1170 = vor.u32 %v1165, %v1169
      %v1172 = vshll.u32 %v1104, 16
      %v1174 = vrot.slane %v1172, 1
      %v1175 = vsel %vm602, %v1170, %v1174
      %v1177 = vshrl.u32 %v1025, 16
      %v1179 = vshll.u32 %v1025, 16
      %v1181 = vrot.slane %v1179, 1
      %v1182 = vor.u32 %v1177, %v1181
      %v1184 = vshll.u32 %v1105, 16
      %v1186 = vrot.slane %v1184, 1
      %v1187 = vsel %vm602, %v1182, %v1186
      %v1189 = vshrl.u32 %v1026, 16
      %v1191 = vshll.u32 %v1026, 16
      %v1193 = vrot.slane %v1191, 1
      %v1194 = vor.u32 %v1189, %v1193
      %v1196 = vshll.u32 %v1106, 16
      %v1198 = vrot.slane %v1196, 1
      %v1199 = vsel %vm602, %v1194, %v1198
      %v1201 = vshrl.u32 %v1027, 16
      %v1203 = vshll.u32 %v1027, 16
      %v1205 = vrot.slane %v1203, 1
      %v1206 = vor.u32 %v1201, %v1205
      %v1208 = vshll.u32 %v1107, 16
      %v1210 = vrot.slane %v1208, 1
      %v1211 = vsel %vm602, %v1206, %v1210
      %v1213 = vshrl.u32 %v1028, 16
      %v1215 = vshll.u32 %v1028, 16
      %v1217 = vrot.slane %v1215, 1
      %v1218 = vor.u32 %v1213, %v1217
      %v1220 = vshll.u32 %v1108, 16
      %v1222 = vrot.slane %v1220, 1
      %v1223 = vsel %vm602, %v1218, %v1222
      %v1225 = vshrl.u32 %v1029, 16
      %v1227 = vshll.u32 %v1029, 16
      %v1229 = vrot.slane %v1227, 1
      %v1230 = vor.u32 %v1225, %v1229
      %v1232 = vshll.u32 %v1109, 16
      %v1234 = vrot.slane %v1232, 1
      %v1235 = vsel %vm602, %v1230, %v1234
      %v1237 = vshrl.u32 %v1030, 16
      %v1239 = vshll.u32 %v1030, 16
      %v1241 = vrot.slane %v1239, 1
      %v1242 = vor.u32 %v1237, %v1241
      %v1244 = vshll.u32 %v1110, 16
      %v1246 = vrot.slane %v1244, 1
      %v1247 = vsel %vm602, %v1242, %v1246
      %v1249 = vshrl.u32 %v1031, 16
      %v1251 = vshll.u32 %v1031, 16
      %v1253 = vrot.slane %v1251, 1
      %v1254 = vor.u32 %v1249, %v1253
      %v1256 = vshll.u32 %v1111, 16
      %v1258 = vrot.slane %v1256, 1
      %v1259 = vsel %vm602, %v1254, %v1258
      %v1261 = vshrl.u32 %v1032, 16
      %v1263 = vshll.u32 %v1032, 16
      %v1265 = vrot.slane %v1263, 1
      %v1266 = vor.u32 %v1261, %v1265
      %v1268 = vshll.u32 %v1112, 16
      %v1270 = vrot.slane %v1268, 1
      %v1271 = vsel %vm602, %v1266, %v1270
      %v1273 = vshrl.u32 %v1033, 16
      %v1275 = vshll.u32 %v1033, 16
      %v1277 = vrot.slane %v1275, 1
      %v1278 = vor.u32 %v1273, %v1277
      %v1280 = vshll.u32 %v1113, 16
      %v1282 = vrot.slane %v1280, 1
      %v1283 = vsel %vm602, %v1278, %v1282
      %v1285 = vshrl.u32 %v1034, 16
      %v1287 = vshll.u32 %v1034, 16
      %v1289 = vrot.slane %v1287, 1
      %v1290 = vor.u32 %v1285, %v1289
      %v1292 = vshll.u32 %v1114, 16
      %v1294 = vrot.slane %v1292, 1
      %v1295 = vsel %vm602, %v1290, %v1294
      %v1297 = vshrl.u32 %v1035, 16
      %v1299 = vshll.u32 %v1035, 16
      %v1301 = vrot.slane %v1299, 1
      %v1302 = vor.u32 %v1297, %v1301
      %v1304 = vshll.u32 %v1115, 16
      %v1306 = vrot.slane %v1304, 1
      %v1307 = vsel %vm602, %v1302, %v1306
      %1308 = vrot.lane.b32.xlu0 %v1127, 16
      %v1309 = vpop.permute.xlu0 %1308
      %1310 = vrot.lane.b32.xlu0 %v1139, 16
      %v1311 = vpop.permute.xlu0 %1310
      %1312 = vrot.lane.b32.xlu0 %v1151, 16
      %v1313 = vpop.permute.xlu0 %1312
      %1314 = vrot.lane.b32.xlu0 %v1163, 16
      %v1315 = vpop.permute.xlu0 %1314
      %1316 = vrot.lane.b32.xlu0 %v1175, 16
      %v1317 = vpop.permute.xlu0 %1316
      %1318 = vrot.lane.b32.xlu0 %v1187, 16
      %v1319 = vpop.permute.xlu0 %1318
      %1320 = vrot.lane.b32.xlu0 %v1199, 16
      %v1321 = vpop.permute.xlu0 %1320
      %1322 = vrot.lane.b32.xlu0 %v1211, 16
      %v1323 = vpop.permute.xlu0 %1322
      %1324 = vrot.lane.b32.xlu0 %v1223, 16
      %v1325 = vpop.permute.xlu0 %1324
      %1326 = vrot.lane.b32.xlu0 %v1235, 16
      %v1327 = vpop.permute.xlu0 %1326
      %1328 = vrot.lane.b32.xlu0 %v1247, 16
      %v1329 = vpop.permute.xlu0 %1328
      %1330 = vrot.lane.b32.xlu0 %v1259, 16
      %v1331 = vpop.permute.xlu0 %1330
      %1332 = vrot.lane.b32.xlu0 %v1271, 16
      %v1333 = vpop.permute.xlu0 %1332
      %1334 = vrot.lane.b32.xlu0 %v1283, 16
      %v1335 = vpop.permute.xlu0 %1334
      %1336 = vrot.lane.b32.xlu0 %v1295, 16
      %v1337 = vpop.permute.xlu0 %1336
      %1338 = vrot.lane.b32.xlu0 %v1307, 16
      %v1339 = vpop.permute.xlu0 %1338
      %v1356 = vunpack.c.l.b16 %v393
      %v1357 = vunpack.c.l.b16 %v394
      %v1358 = vunpack.c.l.b16 %v395
      %v1359 = vunpack.c.l.b16 %v396
      %v1360 = vunpack.c.l.b16 %v397
      %v1361 = vunpack.c.l.b16 %v398
      %v1362 = vunpack.c.l.b16 %v399
      %v1363 = vunpack.c.l.b16 %v400
      %v1364 = vunpack.c.l.b16 %v401
      %v1365 = vunpack.c.l.b16 %v402
      %v1366 = vunpack.c.l.b16 %v403
      %v1367 = vunpack.c.l.b16 %v404
      %v1368 = vunpack.c.l.b16 %v405
      %v1369 = vunpack.c.l.b16 %v406
      %v1370 = vunpack.c.l.b16 %v407
      %v1371 = vunpack.c.l.b16 %v408
      %v1372 = vpack.c.b16 %v989, %v1356
      %v1373 = vpack.c.b16 %v991, %v1357
      %v1374 = vpack.c.b16 %v993, %v1358
      %v1375 = vpack.c.b16 %v995, %v1359
      %v1376 = vpack.c.b16 %v997, %v1360
      %v1377 = vpack.c.b16 %v999, %v1361
      %v1378 = vpack.c.b16 %v1001, %v1362
      %v1379 = vpack.c.b16 %v1003, %v1363
      %v1380 = vpack.c.b16 %v1005, %v1364
      %v1381 = vpack.c.b16 %v1007, %v1365
      %v1382 = vpack.c.b16 %v1009, %v1366
      %v1383 = vpack.c.b16 %v1011, %v1367
      %v1384 = vpack.c.b16 %v1013, %v1368
      %v1385 = vpack.c.b16 %v1015, %v1369
      %v1386 = vpack.c.b16 %v1017, %v1370
      %v1387 = vpack.c.b16 %v1019, %v1371
      %v1388 = vrot.slane %v1372, 1
      %v1389 = vrot.slane %v1100, 1
      %v1390 = vsel %vm875, %v1388, %v1389
      %v1391 = vrot.slane %v1373, 1
      %v1392 = vrot.slane %v1101, 1
      %v1393 = vsel %vm875, %v1391, %v1392
      %v1394 = vrot.slane %v1374, 1
      %v1395 = vrot.slane %v1102, 1
      %v1396 = vsel %vm875, %v1394, %v1395
      %v1397 = vrot.slane %v1375, 1
      %v1398 = vrot.slane %v1103, 1
      %v1399 = vsel %vm875, %v1397, %v1398
      %v1400 = vrot.slane %v1376, 1
      %v1401 = vrot.slane %v1104, 1
      %v1402 = vsel %vm875, %v1400, %v1401
      %v1403 = vrot.slane %v1377, 1
      %v1404 = vrot.slane %v1105, 1
      %v1405 = vsel %vm875, %v1403, %v1404
      %v1406 = vrot.slane %v1378, 1
      %v1407 = vrot.slane %v1106, 1
      %v1408 = vsel %vm875, %v1406, %v1407
      %v1409 = vrot.slane %v1379, 1
      %v1410 = vrot.slane %v1107, 1
      %v1411 = vsel %vm875, %v1409, %v1410
      %v1412 = vrot.slane %v1380, 1
      %v1413 = vrot.slane %v1108, 1
      %v1414 = vsel %vm875, %v1412, %v1413
      %v1415 = vrot.slane %v1381, 1
      %v1416 = vrot.slane %v1109, 1
      %v1417 = vsel %vm875, %v1415, %v1416
      %v1418 = vrot.slane %v1382, 1
      %v1419 = vrot.slane %v1110, 1
      %v1420 = vsel %vm875, %v1418, %v1419
      %v1421 = vrot.slane %v1383, 1
      %v1422 = vrot.slane %v1111, 1
      %v1423 = vsel %vm875, %v1421, %v1422
      %v1424 = vrot.slane %v1384, 1
      %v1425 = vrot.slane %v1112, 1
      %v1426 = vsel %vm875, %v1424, %v1425
      %v1427 = vrot.slane %v1385, 1
      %v1428 = vrot.slane %v1113, 1
      %v1429 = vsel %vm875, %v1427, %v1428
      %v1430 = vrot.slane %v1386, 1
      %v1431 = vrot.slane %v1114, 1
      %v1432 = vsel %vm875, %v1430, %v1431
      %v1433 = vrot.slane %v1387, 1
      %v1434 = vrot.slane %v1115, 1
      %v1435 = vsel %vm875, %v1433, %v1434
      %1436 = vrot.lane.b32.xlu0 %v1390, 20
      %v1437 = vpop.permute.xlu0 %1436
      %1438 = vrot.lane.b32.xlu0 %v1393, 20
      %v1439 = vpop.permute.xlu0 %1438
      %1440 = vrot.lane.b32.xlu0 %v1396, 20
      %v1441 = vpop.permute.xlu0 %1440
      %1442 = vrot.lane.b32.xlu0 %v1399, 20
      %v1443 = vpop.permute.xlu0 %1442
      %1444 = vrot.lane.b32.xlu0 %v1402, 20
      %v1445 = vpop.permute.xlu0 %1444
      %1446 = vrot.lane.b32.xlu0 %v1405, 20
      %v1447 = vpop.permute.xlu0 %1446
      %1448 = vrot.lane.b32.xlu0 %v1408, 20
      %v1449 = vpop.permute.xlu0 %1448
      %1450 = vrot.lane.b32.xlu0 %v1411, 20
      %v1451 = vpop.permute.xlu0 %1450
      %1452 = vrot.lane.b32.xlu0 %v1414, 20
      %v1453 = vpop.permute.xlu0 %1452
      %1454 = vrot.lane.b32.xlu0 %v1417, 20
      %v1455 = vpop.permute.xlu0 %1454
      %1456 = vrot.lane.b32.xlu0 %v1420, 20
      %v1457 = vpop.permute.xlu0 %1456
      %1458 = vrot.lane.b32.xlu0 %v1423, 20
      %v1459 = vpop.permute.xlu0 %1458
      %1460 = vrot.lane.b32.xlu0 %v1426, 20
      %v1461 = vpop.permute.xlu0 %1460
      %1462 = vrot.lane.b32.xlu0 %v1429, 20
      %v1463 = vpop.permute.xlu0 %1462
      %1464 = vrot.lane.b32.xlu0 %v1432, 20
      %v1465 = vpop.permute.xlu0 %1464
      %1466 = vrot.lane.b32.xlu0 %v1435, 20
      %v1467 = vpop.permute.xlu0 %1466
      %v1500 = vunpack.c.l.b16 %v410
      %v1501 = vunpack.c.l.b16 %v411
      %v1502 = vunpack.c.l.b16 %v412
      %v1503 = vunpack.c.l.b16 %v413
      %v1504 = vunpack.c.l.b16 %v414
      %v1505 = vunpack.c.l.b16 %v415
      %v1506 = vunpack.c.l.b16 %v416
      %v1507 = vunpack.c.l.b16 %v417
      %v1508 = vunpack.c.l.b16 %v418
      %v1509 = vunpack.c.l.b16 %v419
      %v1510 = vunpack.c.l.b16 %v420
      %v1511 = vunpack.c.l.b16 %v421
      %v1512 = vunpack.c.l.b16 %v422
      %v1513 = vunpack.c.l.b16 %v423
      %v1514 = vunpack.c.l.b16 %v424
      %v1515 = vunpack.c.l.b16 %v425
      %v1516 = vunpack.c.l.b16 %v426
      %v1517 = vunpack.c.l.b16 %v427
      %v1518 = vunpack.c.l.b16 %v428
      %v1519 = vunpack.c.l.b16 %v429
      %v1520 = vunpack.c.l.b16 %v430
      %v1521 = vunpack.c.l.b16 %v431
      %v1522 = vunpack.c.l.b16 %v432
      %v1523 = vunpack.c.l.b16 %v433
      %v1524 = vunpack.c.l.b16 %v434
      %v1525 = vunpack.c.l.b16 %v435
      %v1526 = vunpack.c.l.b16 %v436
      %v1527 = vunpack.c.l.b16 %v437
      %v1528 = vunpack.c.l.b16 %v438
      %v1529 = vunpack.c.l.b16 %v439
      %v1530 = vunpack.c.l.b16 %v440
      %v1531 = vunpack.c.l.b16 %v441
      %v1532 = vpack.c.b16 %v1501, %v1500
      %v1533 = vpack.c.b16 %v1503, %v1502
      %v1534 = vpack.c.b16 %v1505, %v1504
      %v1535 = vpack.c.b16 %v1507, %v1506
      %v1536 = vpack.c.b16 %v1509, %v1508
      %v1537 = vpack.c.b16 %v1511, %v1510
      %v1538 = vpack.c.b16 %v1513, %v1512
      %v1539 = vpack.c.b16 %v1515, %v1514
      %v1540 = vpack.c.b16 %v1517, %v1516
      %v1541 = vpack.c.b16 %v1519, %v1518
      %v1542 = vpack.c.b16 %v1521, %v1520
      %v1543 = vpack.c.b16 %v1523, %v1522
      %v1544 = vpack.c.b16 %v1525, %v1524
      %v1545 = vpack.c.b16 %v1527, %v1526
      %v1546 = vpack.c.b16 %v1529, %v1528
      %v1547 = vpack.c.b16 %v1531, %v1530
      %1548 = vrot.lane.b32.xlu0 %v1532, 24
      %v1549 = vpop.permute.xlu0 %1548
      %1550 = vrot.lane.b32.xlu0 %v1533, 24
      %v1551 = vpop.permute.xlu0 %1550
      %1552 = vrot.lane.b32.xlu0 %v1534, 24
      %v1553 = vpop.permute.xlu0 %1552
      %1554 = vrot.lane.b32.xlu0 %v1535, 24
      %v1555 = vpop.permute.xlu0 %1554
      %1556 = vrot.lane.b32.xlu0 %v1536, 24
      %v1557 = vpop.permute.xlu0 %1556
      %1558 = vrot.lane.b32.xlu0 %v1537, 24
      %v1559 = vpop.permute.xlu0 %1558
      %1560 = vrot.lane.b32.xlu0 %v1538, 24
      %v1561 = vpop.permute.xlu0 %1560
      %1562 = vrot.lane.b32.xlu0 %v1539, 24
      %v1563 = vpop.permute.xlu0 %1562
      %1564 = vrot.lane.b32.xlu0 %v1540, 24
      %v1565 = vpop.permute.xlu0 %1564
      %1566 = vrot.lane.b32.xlu0 %v1541, 24
      %v1567 = vpop.permute.xlu0 %1566
      %1568 = vrot.lane.b32.xlu0 %v1542, 24
      %v1569 = vpop.permute.xlu0 %1568
      %1570 = vrot.lane.b32.xlu0 %v1543, 24
      %v1571 = vpop.permute.xlu0 %1570
      %1572 = vrot.lane.b32.xlu0 %v1544, 24
      %v1573 = vpop.permute.xlu0 %1572
      %1574 = vrot.lane.b32.xlu0 %v1545, 24
      %v1575 = vpop.permute.xlu0 %1574
      %1576 = vrot.lane.b32.xlu0 %v1546, 24
      %v1577 = vpop.permute.xlu0 %1576
      %1578 = vrot.lane.b32.xlu0 %v1547, 24
      %v1579 = vpop.permute.xlu0 %1578
      %v1596 = vunpack.c.l.b16 %v442
      %v1597 = vunpack.c.l.b16 %v443
      %v1598 = vunpack.c.l.b16 %v444
      %v1599 = vunpack.c.l.b16 %v445
      %v1600 = vunpack.c.l.b16 %v446
      %v1601 = vunpack.c.l.b16 %v447
      %v1602 = vunpack.c.l.b16 %v448
      %v1603 = vunpack.c.l.b16 %v449
      %v1604 = vunpack.c.l.b16 %v450
      %v1605 = vunpack.c.l.b16 %v451
      %v1606 = vunpack.c.l.b16 %v452
      %v1607 = vunpack.c.l.b16 %v453
      %v1608 = vunpack.c.l.b16 %v454
      %v1609 = vunpack.c.l.b16 %v455
      %v1610 = vunpack.c.l.b16 %v456
      %v1611 = vunpack.c.l.b16 %v457
      %v1612 = vpack.c.b16 %v1596, %v1596
      %v1613 = vpack.c.b16 %v1597, %v1597
      %v1614 = vpack.c.b16 %v1598, %v1598
      %v1615 = vpack.c.b16 %v1599, %v1599
      %v1616 = vpack.c.b16 %v1600, %v1600
      %v1617 = vpack.c.b16 %v1601, %v1601
      %v1618 = vpack.c.b16 %v1602, %v1602
      %v1619 = vpack.c.b16 %v1603, %v1603
      %v1620 = vpack.c.b16 %v1604, %v1604
      %v1621 = vpack.c.b16 %v1605, %v1605
      %v1622 = vpack.c.b16 %v1606, %v1606
      %v1623 = vpack.c.b16 %v1607, %v1607
      %v1624 = vpack.c.b16 %v1608, %v1608
      %v1625 = vpack.c.b16 %v1609, %v1609
      %v1626 = vpack.c.b16 %v1610, %v1610
      %v1627 = vpack.c.b16 %v1611, %v1611
      %v1629 = vshrl.u32 %v1532, 16
      %v1631 = vshll.u32 %v1532, 16
      %v1633 = vrot.slane %v1631, 1
      %v1634 = vor.u32 %v1629, %v1633
      %v1636 = vshll.u32 %v1612, 16
      %v1638 = vrot.slane %v1636, 1
      %v1639 = vsel %vm602, %v1634, %v1638
      %v1641 = vshrl.u32 %v1533, 16
      %v1643 = vshll.u32 %v1533, 16
      %v1645 = vrot.slane %v1643, 1
      %v1646 = vor.u32 %v1641, %v1645
      %v1648 = vshll.u32 %v1613, 16
      %v1650 = vrot.slane %v1648, 1
      %v1651 = vsel %vm602, %v1646, %v1650
      %v1653 = vshrl.u32 %v1534, 16
      %v1655 = vshll.u32 %v1534, 16
      %v1657 = vrot.slane %v1655, 1
      %v1658 = vor.u32 %v1653, %v1657
      %v1660 = vshll.u32 %v1614, 16
      %v1662 = vrot.slane %v1660, 1
      %v1663 = vsel %vm602, %v1658, %v1662
      %v1665 = vshrl.u32 %v1535, 16
      %v1667 = vshll.u32 %v1535, 16
      %v1669 = vrot.slane %v1667, 1
      %v1670 = vor.u32 %v1665, %v1669
      %v1672 = vshll.u32 %v1615, 16
      %v1674 = vrot.slane %v1672, 1
      %v1675 = vsel %vm602, %v1670, %v1674
      %v1677 = vshrl.u32 %v1536, 16
      %v1679 = vshll.u32 %v1536, 16
      %v1681 = vrot.slane %v1679, 1
      %v1682 = vor.u32 %v1677, %v1681
      %v1684 = vshll.u32 %v1616, 16
      %v1686 = vrot.slane %v1684, 1
      %v1687 = vsel %vm602, %v1682, %v1686
      %v1689 = vshrl.u32 %v1537, 16
      %v1691 = vshll.u32 %v1537, 16
      %v1693 = vrot.slane %v1691, 1
      %v1694 = vor.u32 %v1689, %v1693
      %v1696 = vshll.u32 %v1617, 16
      %v1698 = vrot.slane %v1696, 1
      %v1699 = vsel %vm602, %v1694, %v1698
      %v1701 = vshrl.u32 %v1538, 16
      %v1703 = vshll.u32 %v1538, 16
      %v1705 = vrot.slane %v1703, 1
      %v1706 = vor.u32 %v1701, %v1705
      %v1708 = vshll.u32 %v1618, 16
      %v1710 = vrot.slane %v1708, 1
      %v1711 = vsel %vm602, %v1706, %v1710
      %v1713 = vshrl.u32 %v1539, 16
      %v1715 = vshll.u32 %v1539, 16
      %v1717 = vrot.slane %v1715, 1
      %v1718 = vor.u32 %v1713, %v1717
      %v1720 = vshll.u32 %v1619, 16
      %v1722 = vrot.slane %v1720, 1
      %v1723 = vsel %vm602, %v1718, %v1722
      %v1725 = vshrl.u32 %v1540, 16
      %v1727 = vshll.u32 %v1540, 16
      %v1729 = vrot.slane %v1727, 1
      %v1730 = vor.u32 %v1725, %v1729
      %v1732 = vshll.u32 %v1620, 16
      %v1734 = vrot.slane %v1732, 1
      %v1735 = vsel %vm602, %v1730, %v1734
      %v1737 = vshrl.u32 %v1541, 16
      %v1739 = vshll.u32 %v1541, 16
      %v1741 = vrot.slane %v1739, 1
      %v1742 = vor.u32 %v1737, %v1741
      %v1744 = vshll.u32 %v1621, 16
      %v1746 = vrot.slane %v1744, 1
      %v1747 = vsel %vm602, %v1742, %v1746
      %v1749 = vshrl.u32 %v1542, 16
      %v1751 = vshll.u32 %v1542, 16
      %v1753 = vrot.slane %v1751, 1
      %v1754 = vor.u32 %v1749, %v1753
      %v1756 = vshll.u32 %v1622, 16
      %v1758 = vrot.slane %v1756, 1
      %v1759 = vsel %vm602, %v1754, %v1758
      %v1761 = vshrl.u32 %v1543, 16
      %v1763 = vshll.u32 %v1543, 16
      %v1765 = vrot.slane %v1763, 1
      %v1766 = vor.u32 %v1761, %v1765
      %v1768 = vshll.u32 %v1623, 16
      %v1770 = vrot.slane %v1768, 1
      %v1771 = vsel %vm602, %v1766, %v1770
      %v1773 = vshrl.u32 %v1544, 16
      %v1775 = vshll.u32 %v1544, 16
      %v1777 = vrot.slane %v1775, 1
      %v1778 = vor.u32 %v1773, %v1777
      %v1780 = vshll.u32 %v1624, 16
      %v1782 = vrot.slane %v1780, 1
      %v1783 = vsel %vm602, %v1778, %v1782
      %v1785 = vshrl.u32 %v1545, 16
      %v1787 = vshll.u32 %v1545, 16
      %v1789 = vrot.slane %v1787, 1
      %v1790 = vor.u32 %v1785, %v1789
      %v1792 = vshll.u32 %v1625, 16
      %v1794 = vrot.slane %v1792, 1
      %v1795 = vsel %vm602, %v1790, %v1794
      %v1797 = vshrl.u32 %v1546, 16
      %v1799 = vshll.u32 %v1546, 16
      %v1801 = vrot.slane %v1799, 1
      %v1802 = vor.u32 %v1797, %v1801
      %v1804 = vshll.u32 %v1626, 16
      %v1806 = vrot.slane %v1804, 1
      %v1807 = vsel %vm602, %v1802, %v1806
      %v1809 = vshrl.u32 %v1547, 16
      %v1811 = vshll.u32 %v1547, 16
      %v1813 = vrot.slane %v1811, 1
      %v1814 = vor.u32 %v1809, %v1813
      %v1816 = vshll.u32 %v1627, 16
      %v1818 = vrot.slane %v1816, 1
      %v1819 = vsel %vm602, %v1814, %v1818
      %1820 = vrot.lane.b32.xlu0 %v1639, 28
      %v1821 = vpop.permute.xlu0 %1820
      %1822 = vrot.lane.b32.xlu0 %v1651, 28
      %v1823 = vpop.permute.xlu0 %1822
      %1824 = vrot.lane.b32.xlu0 %v1663, 28
      %v1825 = vpop.permute.xlu0 %1824
      %1826 = vrot.lane.b32.xlu0 %v1675, 28
      %v1827 = vpop.permute.xlu0 %1826
      %1828 = vrot.lane.b32.xlu0 %v1687, 28
      %v1829 = vpop.permute.xlu0 %1828
      %1830 = vrot.lane.b32.xlu0 %v1699, 28
      %v1831 = vpop.permute.xlu0 %1830
      %1832 = vrot.lane.b32.xlu0 %v1711, 28
      %v1833 = vpop.permute.xlu0 %1832
      %1834 = vrot.lane.b32.xlu0 %v1723, 28
      %v1835 = vpop.permute.xlu0 %1834
      %1836 = vrot.lane.b32.xlu0 %v1735, 28
      %v1837 = vpop.permute.xlu0 %1836
      %1838 = vrot.lane.b32.xlu0 %v1747, 28
      %v1839 = vpop.permute.xlu0 %1838
      %1840 = vrot.lane.b32.xlu0 %v1759, 28
      %v1841 = vpop.permute.xlu0 %1840
      %1842 = vrot.lane.b32.xlu0 %v1771, 28
      %v1843 = vpop.permute.xlu0 %1842
      %1844 = vrot.lane.b32.xlu0 %v1783, 28
      %v1845 = vpop.permute.xlu0 %1844
      %1846 = vrot.lane.b32.xlu0 %v1795, 28
      %v1847 = vpop.permute.xlu0 %1846
      %1848 = vrot.lane.b32.xlu0 %v1807, 28
      %v1849 = vpop.permute.xlu0 %1848
      %1850 = vrot.lane.b32.xlu0 %v1819, 28
      %v1851 = vpop.permute.xlu0 %1850
      %v1868 = vunpack.c.l.b16 %v458
      %v1869 = vunpack.c.l.b16 %v459
      %v1870 = vunpack.c.l.b16 %v460
      %v1871 = vunpack.c.l.b16 %v461
      %v1872 = vunpack.c.l.b16 %v462
      %v1873 = vunpack.c.l.b16 %v463
      %v1874 = vunpack.c.l.b16 %v464
      %v1875 = vunpack.c.l.b16 %v465
      %v1876 = vunpack.c.l.b16 %v466
      %v1877 = vunpack.c.l.b16 %v467
      %v1878 = vunpack.c.l.b16 %v468
      %v1879 = vunpack.c.l.b16 %v469
      %v1880 = vunpack.c.l.b16 %v470
      %v1881 = vunpack.c.l.b16 %v471
      %v1882 = vunpack.c.l.b16 %v472
      %v1883 = vunpack.c.l.b16 %v473
      %v1884 = vpack.c.b16 %v1501, %v1868
      %v1885 = vpack.c.b16 %v1503, %v1869
      %v1886 = vpack.c.b16 %v1505, %v1870
      %v1887 = vpack.c.b16 %v1507, %v1871
      %v1888 = vpack.c.b16 %v1509, %v1872
      %v1889 = vpack.c.b16 %v1511, %v1873
      %v1890 = vpack.c.b16 %v1513, %v1874
      %v1891 = vpack.c.b16 %v1515, %v1875
      %v1892 = vpack.c.b16 %v1517, %v1876
      %v1893 = vpack.c.b16 %v1519, %v1877
      %v1894 = vpack.c.b16 %v1521, %v1878
      %v1895 = vpack.c.b16 %v1523, %v1879
      %v1896 = vpack.c.b16 %v1525, %v1880
      %v1897 = vpack.c.b16 %v1527, %v1881
      %v1898 = vpack.c.b16 %v1529, %v1882
      %v1899 = vpack.c.b16 %v1531, %v1883
      %v1900 = vrot.slane %v1884, 1
      %v1901 = vrot.slane %v1612, 1
      %v1902 = vsel %vm875, %v1900, %v1901
      %v1903 = vrot.slane %v1885, 1
      %v1904 = vrot.slane %v1613, 1
      %v1905 = vsel %vm875, %v1903, %v1904
      %v1906 = vrot.slane %v1886, 1
      %v1907 = vrot.slane %v1614, 1
      %v1908 = vsel %vm875, %v1906, %v1907
      %v1909 = vrot.slane %v1887, 1
      %v1910 = vrot.slane %v1615, 1
      %v1911 = vsel %vm875, %v1909, %v1910
      %v1912 = vrot.slane %v1888, 1
      %v1913 = vrot.slane %v1616, 1
      %v1914 = vsel %vm875, %v1912, %v1913
      %v1915 = vrot.slane %v1889, 1
      %v1916 = vrot.slane %v1617, 1
      %v1917 = vsel %vm875, %v1915, %v1916
      %v1918 = vrot.slane %v1890, 1
      %v1919 = vrot.slane %v1618, 1
      %v1920 = vsel %vm875, %v1918, %v1919
      %v1921 = vrot.slane %v1891, 1
      %v1922 = vrot.slane %v1619, 1
      %v1923 = vsel %vm875, %v1921, %v1922
      %v1924 = vrot.slane %v1892, 1
      %v1925 = vrot.slane %v1620, 1
      %v1926 = vsel %vm875, %v1924, %v1925
      %v1927 = vrot.slane %v1893, 1
      %v1928 = vrot.slane %v1621, 1
      %v1929 = vsel %vm875, %v1927, %v1928
      %v1930 = vrot.slane %v1894, 1
      %v1931 = vrot.slane %v1622, 1
      %v1932 = vsel %vm875, %v1930, %v1931
      %v1933 = vrot.slane %v1895, 1
      %v1934 = vrot.slane %v1623, 1
      %v1935 = vsel %vm875, %v1933, %v1934
      %v1936 = vrot.slane %v1896, 1
      %v1937 = vrot.slane %v1624, 1
      %v1938 = vsel %vm875, %v1936, %v1937
      %v1939 = vrot.slane %v1897, 1
      %v1940 = vrot.slane %v1625, 1
      %v1941 = vsel %vm875, %v1939, %v1940
      %v1942 = vrot.slane %v1898, 1
      %v1943 = vrot.slane %v1626, 1
      %v1944 = vsel %vm875, %v1942, %v1943
      %v1945 = vrot.slane %v1899, 1
      %v1946 = vrot.slane %v1627, 1
      %v1947 = vsel %vm875, %v1945, %v1946
      %1948 = vrot.lane.b32.xlu0 %v1902, 32
      %v1949 = vpop.permute.xlu0 %1948
      %1950 = vrot.lane.b32.xlu0 %v1905, 32
      %v1951 = vpop.permute.xlu0 %1950
      %1952 = vrot.lane.b32.xlu0 %v1908, 32
      %v1953 = vpop.permute.xlu0 %1952
      %1954 = vrot.lane.b32.xlu0 %v1911, 32
      %v1955 = vpop.permute.xlu0 %1954
      %1956 = vrot.lane.b32.xlu0 %v1914, 32
      %v1957 = vpop.permute.xlu0 %1956
      %1958 = vrot.lane.b32.xlu0 %v1917, 32
      %v1959 = vpop.permute.xlu0 %1958
      %1960 = vrot.lane.b32.xlu0 %v1920, 32
      %v1961 = vpop.permute.xlu0 %1960
      %1962 = vrot.lane.b32.xlu0 %v1923, 32
      %v1963 = vpop.permute.xlu0 %1962
      %1964 = vrot.lane.b32.xlu0 %v1926, 32
      %v1965 = vpop.permute.xlu0 %1964
      %1966 = vrot.lane.b32.xlu0 %v1929, 32
      %v1967 = vpop.permute.xlu0 %1966
      %1968 = vrot.lane.b32.xlu0 %v1932, 32
      %v1969 = vpop.permute.xlu0 %1968
      %1970 = vrot.lane.b32.xlu0 %v1935, 32
      %v1971 = vpop.permute.xlu0 %1970
      %1972 = vrot.lane.b32.xlu0 %v1938, 32
      %v1973 = vpop.permute.xlu0 %1972
      %1974 = vrot.lane.b32.xlu0 %v1941, 32
      %v1975 = vpop.permute.xlu0 %1974
      %1976 = vrot.lane.b32.xlu0 %v1944, 32
      %v1977 = vpop.permute.xlu0 %1976
      %1978 = vrot.lane.b32.xlu0 %v1947, 32
      %v1979 = vpop.permute.xlu0 %1978
      %vm1980 = vcmask 31744
      %v1982 = vsel %vm1980, %v538, %v796
      %v1984 = vsel %vm1980, %v539, %v798
      %v1986 = vsel %vm1980, %v540, %v800
      %v1988 = vsel %vm1980, %v541, %v802
      %v1990 = vsel %vm1980, %v542, %v804
      %v1992 = vsel %vm1980, %v543, %v806
      %v1994 = vsel %vm1980, %v544, %v808
      %v1996 = vsel %vm1980, %v545, %v810
      %v1998 = vsel %vm1980, %v546, %v812
      %v2000 = vsel %vm1980, %v547, %v814
      %v2002 = vsel %vm1980, %v548, %v816
      %v2004 = vsel %vm1980, %v549, %v818
      %v2006 = vsel %vm1980, %v550, %v820
      %v2008 = vsel %vm1980, %v551, %v822
      %v2010 = vsel %vm1980, %v552, %v824
      %v2012 = vsel %vm1980, %v553, %v826
      %vm2013 = vcmask 64512
      %v2015 = vsel %vm2013, %v1982, %v925
      %v2017 = vsel %vm2013, %v1984, %v927
      %v2019 = vsel %vm2013, %v1986, %v929
      %v2021 = vsel %vm2013, %v1988, %v931
      %v2023 = vsel %vm2013, %v1990, %v933
      %v2025 = vsel %vm2013, %v1992, %v935
      %v2027 = vsel %vm2013, %v1994, %v937
      %v2029 = vsel %vm2013, %v1996, %v939
      %v2031 = vsel %vm2013, %v1998, %v941
      %v2033 = vsel %vm2013, %v2000, %v943
      %v2035 = vsel %vm2013, %v2002, %v945
      %v2037 = vsel %vm2013, %v2004, %v947
      %v2039 = vsel %vm2013, %v2006, %v949
      %v2041 = vsel %vm2013, %v2008, %v951
      %v2043 = vsel %vm2013, %v2010, %v953
      %v2045 = vsel %vm2013, %v2012, %v955
      %vm2046 = vcmask 97280
      %v2048 = vsel %vm2046, %v2015, %v1037
      %v2050 = vsel %vm2046, %v2017, %v1039
      %v2052 = vsel %vm2046, %v2019, %v1041
      %v2054 = vsel %vm2046, %v2021, %v1043
      %v2056 = vsel %vm2046, %v2023, %v1045
      %v2058 = vsel %vm2046, %v2025, %v1047
      %v2060 = vsel %vm2046, %v2027, %v1049
      %v2062 = vsel %vm2046, %v2029, %v1051
      %v2064 = vsel %vm2046, %v2031, %v1053
      %v2066 = vsel %vm2046, %v2033, %v1055
      %v2068 = vsel %vm2046, %v2035, %v1057
      %v2070 = vsel %vm2046, %v2037, %v1059
      %v2072 = vsel %vm2046, %v2039, %v1061
      %v2074 = vsel %vm2046, %v2041, %v1063
      %v2076 = vsel %vm2046, %v2043, %v1065
      %v2078 = vsel %vm2046, %v2045, %v1067
      %vm2079 = vcmask 130048
      %v2081 = vsel %vm2079, %v2048, %v1309
      %v2083 = vsel %vm2079, %v2050, %v1311
      %v2085 = vsel %vm2079, %v2052, %v1313
      %v2087 = vsel %vm2079, %v2054, %v1315
      %v2089 = vsel %vm2079, %v2056, %v1317
      %v2091 = vsel %vm2079, %v2058, %v1319
      %v2093 = vsel %vm2079, %v2060, %v1321
      %v2095 = vsel %vm2079, %v2062, %v1323
      %v2097 = vsel %vm2079, %v2064, %v1325
      %v2099 = vsel %vm2079, %v2066, %v1327
      %v2101 = vsel %vm2079, %v2068, %v1329
      %v2103 = vsel %vm2079, %v2070, %v1331
      %v2105 = vsel %vm2079, %v2072, %v1333
      %v2107 = vsel %vm2079, %v2074, %v1335
      %v2109 = vsel %vm2079, %v2076, %v1337
      %v2111 = vsel %vm2079, %v2078, %v1339
      %vm2112 = vcmask 162816
      %v2114 = vsel %vm2112, %v2081, %v1437
      %v2116 = vsel %vm2112, %v2083, %v1439
      %v2118 = vsel %vm2112, %v2085, %v1441
      %v2120 = vsel %vm2112, %v2087, %v1443
      %v2122 = vsel %vm2112, %v2089, %v1445
      %v2124 = vsel %vm2112, %v2091, %v1447
      %v2126 = vsel %vm2112, %v2093, %v1449
      %v2128 = vsel %vm2112, %v2095, %v1451
      %v2130 = vsel %vm2112, %v2097, %v1453
      %v2132 = vsel %vm2112, %v2099, %v1455
      %v2134 = vsel %vm2112, %v2101, %v1457
      %v2136 = vsel %vm2112, %v2103, %v1459
      %v2138 = vsel %vm2112, %v2105, %v1461
      %v2140 = vsel %vm2112, %v2107, %v1463
      %v2142 = vsel %vm2112, %v2109, %v1465
      %v2144 = vsel %vm2112, %v2111, %v1467
      %vm2145 = vcmask 195584
      %v2147 = vsel %vm2145, %v2114, %v1549
      %v2149 = vsel %vm2145, %v2116, %v1551
      %v2151 = vsel %vm2145, %v2118, %v1553
      %v2153 = vsel %vm2145, %v2120, %v1555
      %v2155 = vsel %vm2145, %v2122, %v1557
      %v2157 = vsel %vm2145, %v2124, %v1559
      %v2159 = vsel %vm2145, %v2126, %v1561
      %v2161 = vsel %vm2145, %v2128, %v1563
      %v2163 = vsel %vm2145, %v2130, %v1565
      %v2165 = vsel %vm2145, %v2132, %v1567
      %v2167 = vsel %vm2145, %v2134, %v1569
      %v2169 = vsel %vm2145, %v2136, %v1571
      %v2171 = vsel %vm2145, %v2138, %v1573
      %v2173 = vsel %vm2145, %v2140, %v1575
      %v2175 = vsel %vm2145, %v2142, %v1577
      %v2177 = vsel %vm2145, %v2144, %v1579
      %vm2178 = vcmask 228352
      %v2180 = vsel %vm2178, %v2147, %v1821
      %v2182 = vsel %vm2178, %v2149, %v1823
      %v2184 = vsel %vm2178, %v2151, %v1825
      %v2186 = vsel %vm2178, %v2153, %v1827
      %v2188 = vsel %vm2178, %v2155, %v1829
      %v2190 = vsel %vm2178, %v2157, %v1831
      %v2192 = vsel %vm2178, %v2159, %v1833
      %v2194 = vsel %vm2178, %v2161, %v1835
      %v2196 = vsel %vm2178, %v2163, %v1837
      %v2198 = vsel %vm2178, %v2165, %v1839
      %v2200 = vsel %vm2178, %v2167, %v1841
      %v2202 = vsel %vm2178, %v2169, %v1843
      %v2204 = vsel %vm2178, %v2171, %v1845
      %v2206 = vsel %vm2178, %v2173, %v1847
      %v2208 = vsel %vm2178, %v2175, %v1849
      %v2210 = vsel %vm2178, %v2177, %v1851
      %vm2211 = vcmask 261120
      %v2213 = vsel %vm2211, %v2180, %v1949
      %v2215 = vsel %vm2211, %v2182, %v1951
      %v2217 = vsel %vm2211, %v2184, %v1953
      %v2219 = vsel %vm2211, %v2186, %v1955
      %v2221 = vsel %vm2211, %v2188, %v1957
      %v2223 = vsel %vm2211, %v2190, %v1959
      %v2225 = vsel %vm2211, %v2192, %v1961
      %v2227 = vsel %vm2211, %v2194, %v1963
      %v2229 = vsel %vm2211, %v2196, %v1965
      %v2231 = vsel %vm2211, %v2198, %v1967
      %v2233 = vsel %vm2211, %v2200, %v1969
      %v2235 = vsel %vm2211, %v2202, %v1971
      %v2237 = vsel %vm2211, %v2204, %v1973
      %v2239 = vsel %vm2211, %v2206, %v1975
      %v2241 = vsel %vm2211, %v2208, %v1977
      %v2243 = vsel %vm2211, %v2210, %v1979
      %v2244 = vld [vmem:[%s1] sm:$0xf]
      %v2245 = vld [vmem:[%s1 + $0x4] sm:$0xf]
      %v2246 = vld [vmem:[%s1 + $0x8] sm:$0xf]
      %v2247 = vld [vmem:[%s1 + $0xc] sm:$0xf]
      %v2248 = vld [vmem:[%s1 + $0x10] sm:$0x3]
      %v2249 = vld [vmem:[%s2] sm:$0x1]
      %v2251 = vlaneseq
      %v2252 = vshrl.u32 %v2251, 7
      %v2253 = vsub.s32 0, %v2252
      %v2254 = vrot.slane %v2249, %v2253
      %v2261 = vunpack.c.l.b16 %v2244
      %v2262 = vunpack.c.l.b16 %v2245
      %v2263 = vunpack.c.l.b16 %v2246
      %v2264 = vunpack.c.l.b16 %v2247
      %v2265 = vunpack.c.l.b16 %v2248
      %v2266 = vpack.c.b16 %v2262, %v2261
      %v2267 = vpack.c.b16 %v2264, %v2263
      %v2268 = vpack.c.b16 %v2265, %v2265
      %vm2271 = vcmask 293888
      %v2272 = vsel %vm2271, %v2213, 0
      %v2274 = vsel %vm2271, %v2215, 0
      %v2276 = vsel %vm2271, %v2217, 0
      %v2278 = vsel %vm2271, %v2219, 0
      %v2280 = vsel %vm2271, %v2221, 0
      %v2282 = vsel %vm2271, %v2223, 0
      %v2284 = vsel %vm2271, %v2225, 0
      %v2286 = vsel %vm2271, %v2227, 0
      %v2288 = vsel %vm2271, %v2229, 0
      %v2290 = vsel %vm2271, %v2231, 0
      %v2292 = vsel %vm2271, %v2233, 0
      %v2294 = vsel %vm2271, %v2235, 0
      %v2296 = vsel %vm2271, %v2237, 0
      %v2298 = vsel %vm2271, %v2239, 0
      %v2300 = vsel %vm2271, %v2241, 0
      %v2302 = vsel %vm2271, %v2243, 0
      %vm2304 = vcmask 1041408
      %v2306 = vsel %vm2304, %v2268, 0
      %2308 = vmatprep.subr.bf16.mxu0 0
      %2309 = vmatpush1.bf16.msra.mxu0 %v2266
      %2310 = vmatprep.subr.bf16.mxu0 0
      %2311 = vmatpush1.bf16.msra.mxu0 %v2267
      %2312 = vmatprep.subr.bf16.mxu0 0
      %2313 = vmatpush1.bf16.msra.mxu0 %v2306
      %2314 = vmatprep.subr.bf16.mxu0 0
      %2315 = vmatpush1.bf16.msra.mxu0 0
      %2316 = vmatprep.subr.bf16.mxu0 0
      %2317 = vmatpush1.bf16.msra.mxu0 0
      %2318 = vmatprep.subr.bf16.mxu0 0
      %2319 = vmatpush1.bf16.msra.mxu0 0
      %2320 = vmatprep.subr.bf16.mxu0 0
      %2321 = vmatpush1.bf16.msra.mxu0 0
      %2322 = vmatprep.subr.bf16.mxu0 0
      %2323 = vmatpush1.bf16.msra.mxu0 0
      %2324 = vmatprep.subr.bf16.mxu0 0
      %2325 = vmatpush1.bf16.msra.mxu0 0
      %2326 = vmatprep.subr.bf16.mxu0 0
      %2327 = vmatpush1.bf16.msra.mxu0 0
      %2328 = vmatprep.subr.bf16.mxu0 0
      %2329 = vmatpush1.bf16.msra.mxu0 0
      %2330 = vmatprep.subr.bf16.mxu0 0
      %2331 = vmatpush1.bf16.msra.mxu0 0
      %2332 = vmatprep.subr.bf16.mxu0 0
      %2333 = vmatpush1.bf16.msra.mxu0 0
      %2334 = vmatprep.subr.bf16.mxu0 0
      %2335 = vmatpush1.bf16.msra.mxu0 0
      %2336 = vmatprep.subr.bf16.mxu0 0
      %2337 = vmatpush1.bf16.msra.mxu0 0
      %2338 = vmatprep.subr.bf16.mxu0 0
      %2339 = vmatpush1.bf16.msra.mxu0 0
      %2340 = vmatprep.mubr.bf16.mxu0 0
      %2341 = vmatmul.mubr.bf16.gmra.mrb[0].mxu0 %v2272
      %v2342 = vpop.f32.mrb[0].mxu0
      %v2343 = vadd.f32 %v2254, %v2342
      %v2344 = vpop.f32.mrb[0].mxu0
      %v2345 = vpop.f32.mrb[0].mxu0
      %v2346 = vadd.f32 %v2254, %v2345
      %v2347 = vpop.f32.mrb[0].mxu0
      %2348 = vmatprep.mubr.bf16.mxu0 0
      %2349 = vmatmul.mubr.bf16.gmra.mrb[0].mxu0 %v2274
      %v2350 = vpop.f32.mrb[0].mxu0
      %v2351 = vadd.f32 %v2254, %v2350
      %v2352 = vpop.f32.mrb[0].mxu0
      %v2353 = vpop.f32.mrb[0].mxu0
      %v2354 = vadd.f32 %v2254, %v2353
      %v2355 = vpop.f32.mrb[0].mxu0
      %2356 = vmatprep.mubr.bf16.mxu0 0
      %2357 = vmatmul.mubr.bf16.gmra.mrb[0].mxu0 %v2276
      %v2358 = vpop.f32.mrb[0].mxu0
      %v2359 = vadd.f32 %v2254, %v2358
      %v2360 = vpop.f32.mrb[0].mxu0
      %v2361 = vpop.f32.mrb[0].mxu0
      %v2362 = vadd.f32 %v2254, %v2361
      %v2363 = vpop.f32.mrb[0].mxu0
      %2364 = vmatprep.mubr.bf16.mxu0 0
      %2365 = vmatmul.mubr.bf16.gmra.mrb[0].mxu0 %v2278
      %v2366 = vpop.f32.mrb[0].mxu0
      %v2367 = vadd.f32 %v2254, %v2366
      %v2368 = vpop.f32.mrb[0].mxu0
      %v2369 = vpop.f32.mrb[0].mxu0
      %v2370 = vadd.f32 %v2254, %v2369
      %v2371 = vpop.f32.mrb[0].mxu0
      %2372 = vmatprep.mubr.bf16.mxu0 0
      %2373 = vmatmul.mubr.bf16.gmra.mrb[0].mxu0 %v2280
      %v2374 = vpop.f32.mrb[0].mxu0
      %v2375 = vadd.f32 %v2254, %v2374
      %v2376 = vpop.f32.mrb[0].mxu0
      %v2377 = vpop.f32.mrb[0].mxu0
      %v2378 = vadd.f32 %v2254, %v2377
      %v2379 = vpop.f32.mrb[0].mxu0
      %2380 = vmatprep.mubr.bf16.mxu0 0
      %2381 = vmatmul.mubr.bf16.gmra.mrb[0].mxu0 %v2282
      %v2382 = vpop.f32.mrb[0].mxu0
      %v2383 = vadd.f32 %v2254, %v2382
      %v2384 = vpop.f32.mrb[0].mxu0
      %v2385 = vpop.f32.mrb[0].mxu0
      %v2386 = vadd.f32 %v2254, %v2385
      %v2387 = vpop.f32.mrb[0].mxu0
      %2388 = vmatprep.mubr.bf16.mxu0 0
      %2389 = vmatmul.mubr.bf16.gmra.mrb[0].mxu0 %v2284
      %v2390 = vpop.f32.mrb[0].mxu0
      %v2391 = vadd.f32 %v2254, %v2390
      %v2392 = vpop.f32.mrb[0].mxu0
      %v2393 = vpop.f32.mrb[0].mxu0
      %v2394 = vadd.f32 %v2254, %v2393
      %v2395 = vpop.f32.mrb[0].mxu0
      %2396 = vmatprep.mubr.bf16.mxu0 0
      %2397 = vmatmul.mubr.bf16.gmra.mrb[0].mxu0 %v2286
      %v2398 = vpop.f32.mrb[0].mxu0
      %v2399 = vadd.f32 %v2254, %v2398
      %v2400 = vpop.f32.mrb[0].mxu0
      %v2401 = vpop.f32.mrb[0].mxu0
      %v2402 = vadd.f32 %v2254, %v2401
      %v2403 = vpop.f32.mrb[0].mxu0
      %2404 = vmatprep.mubr.bf16.mxu0 0
      %2405 = vmatmul.mubr.bf16.gmra.mrb[0].mxu0 %v2288
      %v2406 = vpop.f32.mrb[0].mxu0
      %v2407 = vadd.f32 %v2254, %v2406
      %v2408 = vpop.f32.mrb[0].mxu0
      %v2409 = vpop.f32.mrb[0].mxu0
      %v2410 = vadd.f32 %v2254, %v2409
      %v2411 = vpop.f32.mrb[0].mxu0
      %2412 = vmatprep.mubr.bf16.mxu0 0
      %2413 = vmatmul.mubr.bf16.gmra.mrb[0].mxu0 %v2290
      %v2414 = vpop.f32.mrb[0].mxu0
      %v2415 = vadd.f32 %v2254, %v2414
      %v2416 = vpop.f32.mrb[0].mxu0
      %v2417 = vpop.f32.mrb[0].mxu0
      %v2418 = vadd.f32 %v2254, %v2417
      %v2419 = vpop.f32.mrb[0].mxu0
      %2420 = vmatprep.mubr.bf16.mxu0 0
      %2421 = vmatmul.mubr.bf16.gmra.mrb[0].mxu0 %v2292
      %v2422 = vpop.f32.mrb[0].mxu0
      %v2423 = vadd.f32 %v2254, %v2422
      %v2424 = vpop.f32.mrb[0].mxu0
      %v2425 = vpop.f32.mrb[0].mxu0
      %v2426 = vadd.f32 %v2254, %v2425
      %v2427 = vpop.f32.mrb[0].mxu0
      %2428 = vmatprep.mubr.bf16.mxu0 0
      %2429 = vmatmul.mubr.bf16.gmra.mrb[0].mxu0 %v2294
      %v2430 = vpop.f32.mrb[0].mxu0
      %v2431 = vadd.f32 %v2254, %v2430
      %v2432 = vpop.f32.mrb[0].mxu0
      %v2433 = vpop.f32.mrb[0].mxu0
      %v2434 = vadd.f32 %v2254, %v2433
      %v2435 = vpop.f32.mrb[0].mxu0
      %2436 = vmatprep.mubr.bf16.mxu0 0
      %2437 = vmatmul.mubr.bf16.gmra.mrb[0].mxu0 %v2296
      %v2438 = vpop.f32.mrb[0].mxu0
      %v2439 = vadd.f32 %v2254, %v2438
      %v2440 = vpop.f32.mrb[0].mxu0
      %v2441 = vpop.f32.mrb[0].mxu0
      %v2442 = vadd.f32 %v2254, %v2441
      %v2443 = vpop.f32.mrb[0].mxu0
      %2444 = vmatprep.mubr.bf16.mxu0 0
      %2445 = vmatmul.mubr.bf16.gmra.mrb[0].mxu0 %v2298
      %v2446 = vpop.f32.mrb[0].mxu0
      %v2447 = vadd.f32 %v2254, %v2446
      %v2448 = vpop.f32.mrb[0].mxu0
      %v2449 = vpop.f32.mrb[0].mxu0
      %v2450 = vadd.f32 %v2254, %v2449
      %v2451 = vpop.f32.mrb[0].mxu0
      %2452 = vmatprep.mubr.bf16.mxu0 0
      %2453 = vmatmul.mubr.bf16.gmra.mrb[0].mxu0 %v2300
      %v2454 = vpop.f32.mrb[0].mxu0
      %v2455 = vadd.f32 %v2254, %v2454
      %v2456 = vpop.f32.mrb[0].mxu0
      %v2457 = vpop.f32.mrb[0].mxu0
      %v2458 = vadd.f32 %v2254, %v2457
      %v2459 = vpop.f32.mrb[0].mxu0
      %2460 = vmatprep.mubr.bf16.mxu0 0
      %2461 = vmatmul.mubr.bf16.gmra.mrb[0].mxu0 %v2302
      %v2462 = vpop.f32.mrb[0].mxu0
      %v2463 = vadd.f32 %v2254, %v2462
      %v2464 = vpop.f32.mrb[0].mxu0
      %v2465 = vpop.f32.mrb[0].mxu0
      %v2466 = vadd.f32 %v2254, %v2465
      %v2467 = vpop.f32.mrb[0].mxu0
      %2468 = vdwg.mxu0
      %vm2469 = vcmask 60416
      %2470 = vst.msk [vmem:[#allocation2] sm:$0xf] %vm2469, 0
      %2471 = vst.msk [vmem:[#allocation2 + $0x4] sm:$0xf] %vm2469, 0
      %vm2472 = vcmask 57344
      %2473 = vst.msk [vmem:[#allocation2 + $0x8] sm:$0x1] %vm2472, 0
      %s2474 = scalar_lea.vmem [#allocation2], 204
      %2475 = vst.msk [vmem:[%s2474] sm:$0xf] %vm2469, 0
      %2476 = vst.msk [vmem:[%s2474 + $0x4] sm:$0xf] %vm2469, 0
      %2477 = vst.msk [vmem:[%s2474 + $0x8] sm:$0x1] %vm2472, 0
      %s2478 = scalar_lea.vmem [#allocation2], 12
      %vm2479 = vcmask 57344
      %vm2480 = vsmask.f32 256
      %vm2481 = vmand %vm2479, %vm2480
      %v2482 = vld [vmem:[%s2478] sm:$0x1]
      %v2483 = vsel %vm2481, 0, %v2482
      %2484 = vst [vmem:[%s2478] sm:$0x1] %v2483
      %v2485 = vld [vmem:[%s2478 + $0xc] sm:$0x1]
      %v2486 = vsel %vm2481, 0, %v2485
      %2487 = vst [vmem:[%s2478 + $0xc] sm:$0x1] %v2486
      %v2488 = vld [vmem:[%s2478 + $0x18] sm:$0x1]
      %v2489 = vsel %vm2481, 0, %v2488
      %2490 = vst [vmem:[%s2478 + $0x18] sm:$0x1] %v2489
      %v2491 = vld [vmem:[%s2478 + $0x24] sm:$0x1]
      %v2492 = vsel %vm2481, 0, %v2491
      %2493 = vst [vmem:[%s2478 + $0x24] sm:$0x1] %v2492
      %v2494 = vld [vmem:[%s2478 + $0x30] sm:$0x1]
      %v2495 = vsel %vm2481, 0, %v2494
      %2496 = vst [vmem:[%s2478 + $0x30] sm:$0x1] %v2495
      %v2497 = vld [vmem:[%s2478 + $0x3c] sm:$0x1]
      %v2498 = vsel %vm2481, 0, %v2497
      %2499 = vst [vmem:[%s2478 + $0x3c] sm:$0x1] %v2498
      %v2500 = vld [vmem:[%s2478 + $0x48] sm:$0x1]
      %v2501 = vsel %vm2481, 0, %v2500
      %2502 = vst [vmem:[%s2478 + $0x48] sm:$0x1] %v2501
      %v2503 = vld [vmem:[%s2478 + $0x54] sm:$0x1]
      %v2504 = vsel %vm2481, 0, %v2503
      %2505 = vst [vmem:[%s2478 + $0x54] sm:$0x1] %v2504
      %v2506 = vld [vmem:[%s2478 + $0x60] sm:$0x1]
      %v2507 = vsel %vm2481, 0, %v2506
      %2508 = vst [vmem:[%s2478 + $0x60] sm:$0x1] %v2507
      %v2509 = vld [vmem:[%s2478 + $0x6c] sm:$0x1]
      %v2510 = vsel %vm2481, 0, %v2509
      %2511 = vst [vmem:[%s2478 + $0x6c] sm:$0x1] %v2510
      %v2512 = vld [vmem:[%s2478 + $0x78] sm:$0x1]
      %v2513 = vsel %vm2481, 0, %v2512
      %2514 = vst [vmem:[%s2478 + $0x78] sm:$0x1] %v2513
      %v2515 = vld [vmem:[%s2478 + $0x84] sm:$0x1]
      %v2516 = vsel %vm2481, 0, %v2515
      %2517 = vst [vmem:[%s2478 + $0x84] sm:$0x1] %v2516
      %v2518 = vld [vmem:[%s2478 + $0x90] sm:$0x1]
      %v2519 = vsel %vm2481, 0, %v2518
      %2520 = vst [vmem:[%s2478 + $0x90] sm:$0x1] %v2519
      %v2521 = vld [vmem:[%s2478 + $0x9c] sm:$0x1]
      %v2522 = vsel %vm2481, 0, %v2521
      %2523 = vst [vmem:[%s2478 + $0x9c] sm:$0x1] %v2522
      %v2524 = vld [vmem:[%s2478 + $0xa8] sm:$0x1]
      %v2525 = vsel %vm2481, 0, %v2524
      %2526 = vst [vmem:[%s2478 + $0xa8] sm:$0x1] %v2525
      %v2527 = vld [vmem:[%s2478 + $0xb4] sm:$0x1]
      %v2528 = vsel %vm2481, 0, %v2527
      %2529 = vst [vmem:[%s2478 + $0xb4] sm:$0x1] %v2528
      %vm2530 = vsmask.f32 7938
      %vm2531 = vmand %vm2479, %vm2530
      %v2532 = vld [vmem:[%s2478 + $0x8] sm:$0x1]
      %v2533 = vsel %vm2531, 0, %v2532
      %2534 = vst [vmem:[%s2478 + $0x8] sm:$0x1] %v2533
      %v2535 = vld [vmem:[%s2478 + $0x14] sm:$0x1]
      %v2536 = vsel %vm2531, 0, %v2535
      %2537 = vst [vmem:[%s2478 + $0x14] sm:$0x1] %v2536
      %v2538 = vld [vmem:[%s2478 + $0x20] sm:$0x1]
      %v2539 = vsel %vm2531, 0, %v2538
      %2540 = vst [vmem:[%s2478 + $0x20] sm:$0x1] %v2539
      %v2541 = vld [vmem:[%s2478 + $0x2c] sm:$0x1]
      %v2542 = vsel %vm2531, 0, %v2541
      %2543 = vst [vmem:[%s2478 + $0x2c] sm:$0x1] %v2542
      %v2544 = vld [vmem:[%s2478 + $0x38] sm:$0x1]
      %v2545 = vsel %vm2531, 0, %v2544
      %2546 = vst [vmem:[%s2478 + $0x38] sm:$0x1] %v2545
      %v2547 = vld [vmem:[%s2478 + $0x44] sm:$0x1]
      %v2548 = vsel %vm2531, 0, %v2547
      %2549 = vst [vmem:[%s2478 + $0x44] sm:$0x1] %v2548
      %v2550 = vld [vmem:[%s2478 + $0x50] sm:$0x1]
      %v2551 = vsel %vm2531, 0, %v2550
      %2552 = vst [vmem:[%s2478 + $0x50] sm:$0x1] %v2551
      %v2553 = vld [vmem:[%s2478 + $0x5c] sm:$0x1]
      %v2554 = vsel %vm2531, 0, %v2553
      %2555 = vst [vmem:[%s2478 + $0x5c] sm:$0x1] %v2554
      %v2556 = vld [vmem:[%s2478 + $0x68] sm:$0x1]
      %v2557 = vsel %vm2531, 0, %v2556
      %2558 = vst [vmem:[%s2478 + $0x68] sm:$0x1] %v2557
      %v2559 = vld [vmem:[%s2478 + $0x74] sm:$0x1]
      %v2560 = vsel %vm2531, 0, %v2559
      %2561 = vst [vmem:[%s2478 + $0x74] sm:$0x1] %v2560
      %v2562 = vld [vmem:[%s2478 + $0x80] sm:$0x1]
      %v2563 = vsel %vm2531, 0, %v2562
      %2564 = vst [vmem:[%s2478 + $0x80] sm:$0x1] %v2563
      %v2565 = vld [vmem:[%s2478 + $0x8c] sm:$0x1]
      %v2566 = vsel %vm2531, 0, %v2565
      %2567 = vst [vmem:[%s2478 + $0x8c] sm:$0x1] %v2566
      %v2568 = vld [vmem:[%s2478 + $0x98] sm:$0x1]
      %v2569 = vsel %vm2531, 0, %v2568
      %2570 = vst [vmem:[%s2478 + $0x98] sm:$0x1] %v2569
      %v2571 = vld [vmem:[%s2478 + $0xa4] sm:$0x1]
      %v2572 = vsel %vm2531, 0, %v2571
      %2573 = vst [vmem:[%s2478 + $0xa4] sm:$0x1] %v2572
      %v2574 = vld [vmem:[%s2478 + $0xb0] sm:$0x1]
      %v2575 = vsel %vm2531, 0, %v2574
      %2576 = vst [vmem:[%s2478 + $0xb0] sm:$0x1] %v2575
      %v2577 = vld [vmem:[%s2478 + $0xbc] sm:$0x1]
      %v2578 = vsel %vm2531, 0, %v2577
      %2579 = vst [vmem:[%s2478 + $0xbc] sm:$0x1] %v2578
      %v2580 = vpack.c.bf16 %v2346, %v2343
      %v2581 = vpack.c.bf16 %v2354, %v2351
      %v2582 = vpack.c.bf16 %v2362, %v2359
      %v2583 = vpack.c.bf16 %v2370, %v2367
      %v2584 = vpack.c.bf16 %v2378, %v2375
      %v2585 = vpack.c.bf16 %v2386, %v2383
      %v2586 = vpack.c.bf16 %v2394, %v2391
      %v2587 = vpack.c.bf16 %v2402, %v2399
      %v2588 = vpack.c.bf16 %v2410, %v2407
      %v2589 = vpack.c.bf16 %v2418, %v2415
      %v2590 = vpack.c.bf16 %v2426, %v2423
      %v2591 = vpack.c.bf16 %v2434, %v2431
      %v2592 = vpack.c.bf16 %v2442, %v2439
      %v2593 = vpack.c.bf16 %v2450, %v2447
      %v2594 = vpack.c.bf16 %v2458, %v2455
      %v2595 = vpack.c.bf16 %v2466, %v2463
      %v2612 = vunpack.c.l.b16 %v2580
      %v2613 = vunpack.c.h.b16 %v2580
      %v2614 = vunpack.c.l.b16 %v2581
      %v2615 = vunpack.c.h.b16 %v2581
      %v2616 = vunpack.c.l.b16 %v2582
      %v2617 = vunpack.c.h.b16 %v2582
      %v2618 = vunpack.c.l.b16 %v2583
      %v2619 = vunpack.c.h.b16 %v2583
      %v2620 = vunpack.c.l.b16 %v2584
      %v2621 = vunpack.c.h.b16 %v2584
      %v2622 = vunpack.c.l.b16 %v2585
      %v2623 = vunpack.c.h.b16 %v2585
      %v2624 = vunpack.c.l.b16 %v2586
      %v2625 = vunpack.c.h.b16 %v2586
      %v2626 = vunpack.c.l.b16 %v2587
      %v2627 = vunpack.c.h.b16 %v2587
      %v2628 = vunpack.c.l.b16 %v2588
      %v2629 = vunpack.c.h.b16 %v2588
      %v2630 = vunpack.c.l.b16 %v2589
      %v2631 = vunpack.c.h.b16 %v2589
      %v2632 = vunpack.c.l.b16 %v2590
      %v2633 = vunpack.c.h.b16 %v2590
      %v2634 = vunpack.c.l.b16 %v2591
      %v2635 = vunpack.c.h.b16 %v2591
      %v2636 = vunpack.c.l.b16 %v2592
      %v2637 = vunpack.c.h.b16 %v2592
      %v2638 = vunpack.c.l.b16 %v2593
      %v2639 = vunpack.c.h.b16 %v2593
      %v2640 = vunpack.c.l.b16 %v2594
      %v2641 = vunpack.c.h.b16 %v2594
      %v2642 = vunpack.c.l.b16 %v2595
      %v2643 = vunpack.c.h.b16 %v2595
      %v2644 = vpack.c.b16 %v2612, %v2612
      %v2645 = vpack.c.b16 %v2613, %v2613
      %v2646 = vpack.c.b16 %v2614, %v2614
      %v2647 = vpack.c.b16 %v2615, %v2615
      %v2648 = vpack.c.b16 %v2616, %v2616
      %v2649 = vpack.c.b16 %v2617, %v2617
      %v2650 = vpack.c.b16 %v2618, %v2618
      %v2651 = vpack.c.b16 %v2619, %v2619
      %v2652 = vpack.c.b16 %v2620, %v2620
      %v2653 = vpack.c.b16 %v2621, %v2621
      %v2654 = vpack.c.b16 %v2622, %v2622
      %v2655 = vpack.c.b16 %v2623, %v2623
      %v2656 = vpack.c.b16 %v2624, %v2624
      %v2657 = vpack.c.b16 %v2625, %v2625
      %v2658 = vpack.c.b16 %v2626, %v2626
      %v2659 = vpack.c.b16 %v2627, %v2627
      %v2660 = vpack.c.b16 %v2628, %v2628
      %v2661 = vpack.c.b16 %v2629, %v2629
      %v2662 = vpack.c.b16 %v2630, %v2630
      %v2663 = vpack.c.b16 %v2631, %v2631
      %v2664 = vpack.c.b16 %v2632, %v2632
      %v2665 = vpack.c.b16 %v2633, %v2633
      %v2666 = vpack.c.b16 %v2634, %v2634
      %v2667 = vpack.c.b16 %v2635, %v2635
      %v2668 = vpack.c.b16 %v2636, %v2636
      %v2669 = vpack.c.b16 %v2637, %v2637
      %v2670 = vpack.c.b16 %v2638, %v2638
      %v2671 = vpack.c.b16 %v2639, %v2639
      %v2672 = vpack.c.b16 %v2640, %v2640
      %v2673 = vpack.c.b16 %v2641, %v2641
      %v2674 = vpack.c.b16 %v2642, %v2642
      %v2675 = vpack.c.b16 %v2643, %v2643
      %vm2676 = vsmask.f32 4368
      %vm2677 = vmor %vm2480, %vm2676
      %v2679 = vshrl.u32 %v2644, 16
      %v2681 = vrot.slane %v2679, 7
      %v2682 = vshll.u32 %v2644, 16
      %v2684 = vor.u32 %v2681, %v2682
      %v2685 = vrot.slane %v2681, 4
      %v2687 = vshrl.u32 %v2645, 16
      %v2689 = vrot.slane %v2687, 7
      %v2690 = vshll.u32 %v2645, 16
      %v2692 = vor.u32 %v2689, %v2690
      %v2693 = vsel %vm2677, %v2685, %v2692
      %v2694 = vrot.slane %v2689, 4
      %v2696 = vshrl.u32 %v2646, 16
      %v2698 = vrot.slane %v2696, 7
      %v2699 = vshll.u32 %v2646, 16
      %v2701 = vor.u32 %v2698, %v2699
      %v2702 = vrot.slane %v2698, 4
      %v2704 = vshrl.u32 %v2647, 16
      %v2706 = vrot.slane %v2704, 7
      %v2707 = vshll.u32 %v2647, 16
      %v2709 = vor.u32 %v2706, %v2707
      %v2710 = vsel %vm2677, %v2702, %v2709
      %v2711 = vrot.slane %v2706, 4
      %v2713 = vshrl.u32 %v2648, 16
      %v2715 = vrot.slane %v2713, 7
      %v2716 = vshll.u32 %v2648, 16
      %v2718 = vor.u32 %v2715, %v2716
      %v2719 = vrot.slane %v2715, 4
      %v2721 = vshrl.u32 %v2649, 16
      %v2723 = vrot.slane %v2721, 7
      %v2724 = vshll.u32 %v2649, 16
      %v2726 = vor.u32 %v2723, %v2724
      %v2727 = vsel %vm2677, %v2719, %v2726
      %v2728 = vrot.slane %v2723, 4
      %v2730 = vshrl.u32 %v2650, 16
      %v2732 = vrot.slane %v2730, 7
      %v2733 = vshll.u32 %v2650, 16
      %v2735 = vor.u32 %v2732, %v2733
      %v2736 = vrot.slane %v2732, 4
      %v2738 = vshrl.u32 %v2651, 16
      %v2740 = vrot.slane %v2738, 7
      %v2741 = vshll.u32 %v2651, 16
      %v2743 = vor.u32 %v2740, %v2741
      %v2744 = vsel %vm2677, %v2736, %v2743
      %v2745 = vrot.slane %v2740, 4
      %v2747 = vshrl.u32 %v2652, 16
      %v2749 = vrot.slane %v2747, 7
      %v2750 = vshll.u32 %v2652, 16
      %v2752 = vor.u32 %v2749, %v2750
      %v2753 = vrot.slane %v2749, 4
      %v2755 = vshrl.u32 %v2653, 16
      %v2757 = vrot.slane %v2755, 7
      %v2758 = vshll.u32 %v2653, 16
      %v2760 = vor.u32 %v2757, %v2758
      %v2761 = vsel %vm2677, %v2753, %v2760
      %v2762 = vrot.slane %v2757, 4
      %v2764 = vshrl.u32 %v2654, 16
      %v2766 = vrot.slane %v2764, 7
      %v2767 = vshll.u32 %v2654, 16
      %v2769 = vor.u32 %v2766, %v2767
      %v2770 = vrot.slane %v2766, 4
      %v2772 = vshrl.u32 %v2655, 16
      %v2774 = vrot.slane %v2772, 7
      %v2775 = vshll.u32 %v2655, 16
      %v2777 = vor.u32 %v2774, %v2775
      %v2778 = vsel %vm2677, %v2770, %v2777
      %v2779 = vrot.slane %v2774, 4
      %v2781 = vshrl.u32 %v2656, 16
      %v2783 = vrot.slane %v2781, 7
      %v2784 = vshll.u32 %v2656, 16
      %v2786 = vor.u32 %v2783, %v2784
      %v2787 = vrot.slane %v2783, 4
      %v2789 = vshrl.u32 %v2657, 16
      %v2791 = vrot.slane %v2789, 7
      %v2792 = vshll.u32 %v2657, 16
      %v2794 = vor.u32 %v2791, %v2792
      %v2795 = vsel %vm2677, %v2787, %v2794
      %v2796 = vrot.slane %v2791, 4
      %v2798 = vshrl.u32 %v2658, 16
      %v2800 = vrot.slane %v2798, 7
      %v2801 = vshll.u32 %v2658, 16
      %v2803 = vor.u32 %v2800, %v2801
      %v2804 = vrot.slane %v2800, 4
      %v2806 = vshrl.u32 %v2659, 16
      %v2808 = vrot.slane %v2806, 7
      %v2809 = vshll.u32 %v2659, 16
      %v2811 = vor.u32 %v2808, %v2809
      %v2812 = vsel %vm2677, %v2804, %v2811
      %v2813 = vrot.slane %v2808, 4
      %v2815 = vshrl.u32 %v2660, 16
      %v2817 = vrot.slane %v2815, 7
      %v2818 = vshll.u32 %v2660, 16
      %v2820 = vor.u32 %v2817, %v2818
      %v2821 = vrot.slane %v2817, 4
      %v2823 = vshrl.u32 %v2661, 16
      %v2825 = vrot.slane %v2823, 7
      %v2826 = vshll.u32 %v2661, 16
      %v2828 = vor.u32 %v2825, %v2826
      %v2829 = vsel %vm2677, %v2821, %v2828
      %v2830 = vrot.slane %v2825, 4
      %v2832 = vshrl.u32 %v2662, 16
      %v2834 = vrot.slane %v2832, 7
      %v2835 = vshll.u32 %v2662, 16
      %v2837 = vor.u32 %v2834, %v2835
      %v2838 = vrot.slane %v2834, 4
      %v2840 = vshrl.u32 %v2663, 16
      %v2842 = vrot.slane %v2840, 7
      %v2843 = vshll.u32 %v2663, 16
      %v2845 = vor.u32 %v2842, %v2843
      %v2846 = vsel %vm2677, %v2838, %v2845
      %v2847 = vrot.slane %v2842, 4
      %v2849 = vshrl.u32 %v2664, 16
      %v2851 = vrot.slane %v2849, 7
      %v2852 = vshll.u32 %v2664, 16
      %v2854 = vor.u32 %v2851, %v2852
      %v2855 = vrot.slane %v2851, 4
      %v2857 = vshrl.u32 %v2665, 16
      %v2859 = vrot.slane %v2857, 7
      %v2860 = vshll.u32 %v2665, 16
      %v2862 = vor.u32 %v2859, %v2860
      %v2863 = vsel %vm2677, %v2855, %v2862
      %v2864 = vrot.slane %v2859, 4
      %v2866 = vshrl.u32 %v2666, 16
      %v2868 = vrot.slane %v2866, 7
      %v2869 = vshll.u32 %v2666, 16
      %v2871 = vor.u32 %v2868, %v2869
      %v2872 = vrot.slane %v2868, 4
      %v2874 = vshrl.u32 %v2667, 16
      %v2876 = vrot.slane %v2874, 7
      %v2877 = vshll.u32 %v2667, 16
      %v2879 = vor.u32 %v2876, %v2877
      %v2880 = vsel %vm2677, %v2872, %v2879
      %v2881 = vrot.slane %v2876, 4
      %v2883 = vshrl.u32 %v2668, 16
      %v2885 = vrot.slane %v2883, 7
      %v2886 = vshll.u32 %v2668, 16
      %v2888 = vor.u32 %v2885, %v2886
      %v2889 = vrot.slane %v2885, 4
      %v2891 = vshrl.u32 %v2669, 16
      %v2893 = vrot.slane %v2891, 7
      %v2894 = vshll.u32 %v2669, 16
      %v2896 = vor.u32 %v2893, %v2894
      %v2897 = vsel %vm2677, %v2889, %v2896
      %v2898 = vrot.slane %v2893, 4
      %v2900 = vshrl.u32 %v2670, 16
      %v2902 = vrot.slane %v2900, 7
      %v2903 = vshll.u32 %v2670, 16
      %v2905 = vor.u32 %v2902, %v2903
      %v2906 = vrot.slane %v2902, 4
      %v2908 = vshrl.u32 %v2671, 16
      %v2910 = vrot.slane %v2908, 7
      %v2911 = vshll.u32 %v2671, 16
      %v2913 = vor.u32 %v2910, %v2911
      %v2914 = vsel %vm2677, %v2906, %v2913
      %v2915 = vrot.slane %v2910, 4
      %v2917 = vshrl.u32 %v2672, 16
      %v2919 = vrot.slane %v2917, 7
      %v2920 = vshll.u32 %v2672, 16
      %v2922 = vor.u32 %v2919, %v2920
      %v2923 = vrot.slane %v2919, 4
      %v2925 = vshrl.u32 %v2673, 16
      %v2927 = vrot.slane %v2925, 7
      %v2928 = vshll.u32 %v2673, 16
      %v2930 = vor.u32 %v2927, %v2928
      %v2931 = vsel %vm2677, %v2923, %v2930
      %v2932 = vrot.slane %v2927, 4
      %v2934 = vshrl.u32 %v2674, 16
      %v2936 = vrot.slane %v2934, 7
      %v2937 = vshll.u32 %v2674, 16
      %v2939 = vor.u32 %v2936, %v2937
      %v2940 = vrot.slane %v2936, 4
      %v2942 = vshrl.u32 %v2675, 16
      %v2944 = vrot.slane %v2942, 7
      %v2945 = vshll.u32 %v2675, 16
      %v2947 = vor.u32 %v2944, %v2945
      %v2948 = vsel %vm2677, %v2940, %v2947
      %v2949 = vrot.slane %v2944, 4
      %vm2998 = vcmask 60416
      %vm2999 = vmand %vm2998, %vm2530
      %v3000 = vld [vmem:[%s2478] sm:$0xf]
      %v3001 = vsel %vm2999, %v2684, %v3000
      %3002 = vst [vmem:[%s2478] sm:$0xf] %v3001
      %3003 = vst.msk [vmem:[%s2478 + $0x4] sm:$0xf] %vm2469, %v2693
      %v3004 = vld [vmem:[%s2478 + $0x8] sm:$0x1]
      %v3005 = vsel %vm2481, %v2694, %v3004
      %3006 = vst [vmem:[%s2478 + $0x8] sm:$0x1] %v3005
      %v3007 = vld [vmem:[%s2478 + $0xc] sm:$0xf]
      %v3008 = vsel %vm2999, %v2701, %v3007
      %3009 = vst [vmem:[%s2478 + $0xc] sm:$0xf] %v3008
      %3010 = vst.msk [vmem:[%s2478 + $0x10] sm:$0xf] %vm2469, %v2710
      %v3011 = vld [vmem:[%s2478 + $0x14] sm:$0x1]
      %v3012 = vsel %vm2481, %v2711, %v3011
      %3013 = vst [vmem:[%s2478 + $0x14] sm:$0x1] %v3012
      %v3014 = vld [vmem:[%s2478 + $0x18] sm:$0xf]
      %v3015 = vsel %vm2999, %v2718, %v3014
      %3016 = vst [vmem:[%s2478 + $0x18] sm:$0xf] %v3015
      %3017 = vst.msk [vmem:[%s2478 + $0x1c] sm:$0xf] %vm2469, %v2727
      %v3018 = vld [vmem:[%s2478 + $0x20] sm:$0x1]
      %v3019 = vsel %vm2481, %v2728, %v3018
      %3020 = vst [vmem:[%s2478 + $0x20] sm:$0x1] %v3019
      %v3021 = vld [vmem:[%s2478 + $0x24] sm:$0xf]
      %v3022 = vsel %vm2999, %v2735, %v3021
      %3023 = vst [vmem:[%s2478 + $0x24] sm:$0xf] %v3022
      %3024 = vst.msk [vmem:[%s2478 + $0x28] sm:$0xf] %vm2469, %v2744
      %v3025 = vld [vmem:[%s2478 + $0x2c] sm:$0x1]
      %v3026 = vsel %vm2481, %v2745, %v3025
      %3027 = vst [vmem:[%s2478 + $0x2c] sm:$0x1] %v3026
      %v3028 = vld [vmem:[%s2478 + $0x30] sm:$0xf]
      %v3029 = vsel %vm2999, %v2752, %v3028
      %3030 = vst [vmem:[%s2478 + $0x30] sm:$0xf] %v3029
      %3031 = vst.msk [vmem:[%s2478 + $0x34] sm:$0xf] %vm2469, %v2761
      %v3032 = vld [vmem:[%s2478 + $0x38] sm:$0x1]
      %v3033 = vsel %vm2481, %v2762, %v3032
      %3034 = vst [vmem:[%s2478 + $0x38] sm:$0x1] %v3033
      %v3035 = vld [vmem:[%s2478 + $0x3c] sm:$0xf]
      %v3036 = vsel %vm2999, %v2769, %v3035
      %3037 = vst [vmem:[%s2478 + $0x3c] sm:$0xf] %v3036
      %3038 = vst.msk [vmem:[%s2478 + $0x40] sm:$0xf] %vm2469, %v2778
      %v3039 = vld [vmem:[%s2478 + $0x44] sm:$0x1]
      %v3040 = vsel %vm2481, %v2779, %v3039
      %3041 = vst [vmem:[%s2478 + $0x44] sm:$0x1] %v3040
      %v3042 = vld [vmem:[%s2478 + $0x48] sm:$0xf]
      %v3043 = vsel %vm2999, %v2786, %v3042
      %3044 = vst [vmem:[%s2478 + $0x48] sm:$0xf] %v3043
      %3045 = vst.msk [vmem:[%s2478 + $0x4c] sm:$0xf] %vm2469, %v2795
      %v3046 = vld [vmem:[%s2478 + $0x50] sm:$0x1]
      %v3047 = vsel %vm2481, %v2796, %v3046
      %3048 = vst [vmem:[%s2478 + $0x50] sm:$0x1] %v3047
      %v3049 = vld [vmem:[%s2478 + $0x54] sm:$0xf]
      %v3050 = vsel %vm2999, %v2803, %v3049
      %3051 = vst [vmem:[%s2478 + $0x54] sm:$0xf] %v3050
      %3052 = vst.msk [vmem:[%s2478 + $0x58] sm:$0xf] %vm2469, %v2812
      %v3053 = vld [vmem:[%s2478 + $0x5c] sm:$0x1]
      %v3054 = vsel %vm2481, %v2813, %v3053
      %3055 = vst [vmem:[%s2478 + $0x5c] sm:$0x1] %v3054
      %v3056 = vld [vmem:[%s2478 + $0x60] sm:$0xf]
      %v3057 = vsel %vm2999, %v2820, %v3056
      %3058 = vst [vmem:[%s2478 + $0x60] sm:$0xf] %v3057
      %3059 = vst.msk [vmem:[%s2478 + $0x64] sm:$0xf] %vm2469, %v2829
      %v3060 = vld [vmem:[%s2478 + $0x68] sm:$0x1]
      %v3061 = vsel %vm2481, %v2830, %v3060
      %3062 = vst [vmem:[%s2478 + $0x68] sm:$0x1] %v3061
      %v3063 = vld [vmem:[%s2478 + $0x6c] sm:$0xf]
      %v3064 = vsel %vm2999, %v2837, %v3063
      %3065 = vst [vmem:[%s2478 + $0x6c] sm:$0xf] %v3064
      %3066 = vst.msk [vmem:[%s2478 + $0x70] sm:$0xf] %vm2469, %v2846
      %v3067 = vld [vmem:[%s2478 + $0x74] sm:$0x1]
      %v3068 = vsel %vm2481, %v2847, %v3067
      %3069 = vst [vmem:[%s2478 + $0x74] sm:$0x1] %v3068
      %v3070 = vld [vmem:[%s2478 + $0x78] sm:$0xf]
      %v3071 = vsel %vm2999, %v2854, %v3070
      %3072 = vst [vmem:[%s2478 + $0x78] sm:$0xf] %v3071
      %3073 = vst.msk [vmem:[%s2478 + $0x7c] sm:$0xf] %vm2469, %v2863
      %v3074 = vld [vmem:[%s2478 + $0x80] sm:$0x1]
      %v3075 = vsel %vm2481, %v2864, %v3074
      %3076 = vst [vmem:[%s2478 + $0x80] sm:$0x1] %v3075
      %v3077 = vld [vmem:[%s2478 + $0x84] sm:$0xf]
      %v3078 = vsel %vm2999, %v2871, %v3077
      %3079 = vst [vmem:[%s2478 + $0x84] sm:$0xf] %v3078
      %3080 = vst.msk [vmem:[%s2478 + $0x88] sm:$0xf] %vm2469, %v2880
      %v3081 = vld [vmem:[%s2478 + $0x8c] sm:$0x1]
      %v3082 = vsel %vm2481, %v2881, %v3081
      %3083 = vst [vmem:[%s2478 + $0x8c] sm:$0x1] %v3082
      %v3084 = vld [vmem:[%s2478 + $0x90] sm:$0xf]
      %v3085 = vsel %vm2999, %v2888, %v3084
      %3086 = vst [vmem:[%s2478 + $0x90] sm:$0xf] %v3085
      %3087 = vst.msk [vmem:[%s2478 + $0x94] sm:$0xf] %vm2469, %v2897
      %v3088 = vld [vmem:[%s2478 + $0x98] sm:$0x1]
      %v3089 = vsel %vm2481, %v2898, %v3088
      %3090 = vst [vmem:[%s2478 + $0x98] sm:$0x1] %v3089
      %v3091 = vld [vmem:[%s2478 + $0x9c] sm:$0xf]
      %v3092 = vsel %vm2999, %v2905, %v3091
      %3093 = vst [vmem:[%s2478 + $0x9c] sm:$0xf] %v3092
      %3094 = vst.msk [vmem:[%s2478 + $0xa0] sm:$0xf] %vm2469, %v2914
      %v3095 = vld [vmem:[%s2478 + $0xa4] sm:$0x1]
      %v3096 = vsel %vm2481, %v2915, %v3095
      %3097 = vst [vmem:[%s2478 + $0xa4] sm:$0x1] %v3096
      %v3098 = vld [vmem:[%s2478 + $0xa8] sm:$0xf]
      %v3099 = vsel %vm2999, %v2922, %v3098
      %3100 = vst [vmem:[%s2478 + $0xa8] sm:$0xf] %v3099
      %3101 = vst.msk [vmem:[%s2478 + $0xac] sm:$0xf] %vm2469, %v2931
      %v3102 = vld [vmem:[%s2478 + $0xb0] sm:$0x1]
      %v3103 = vsel %vm2481, %v2932, %v3102
      %3104 = vst [vmem:[%s2478 + $0xb0] sm:$0x1] %v3103
      %v3105 = vld [vmem:[%s2478 + $0xb4] sm:$0xf]
      %v3106 = vsel %vm2999, %v2939, %v3105
      %3107 = vst [vmem:[%s2478 + $0xb4] sm:$0xf] %v3106
      %3108 = vst.msk [vmem:[%s2478 + $0xb8] sm:$0xf] %vm2469, %v2948
      %v3109 = vld [vmem:[%s2478 + $0xbc] sm:$0x1]
      %v3110 = vsel %vm2481, %v2949, %v3109
      %3111 = vst [vmem:[%s2478 + $0xbc] sm:$0x1] %v3110
      %v3112 = vld [vmem:[#allocation2] sm:$0xf]
      %v3113 = vld [vmem:[#allocation2 + $0x4] sm:$0xf]
      %v3114 = vld [vmem:[#allocation2 + $0xc] sm:$0xf]
      %v3115 = vld [vmem:[#allocation2 + $0x10] sm:$0xf]
      %v3116 = vld [vmem:[#allocation2 + $0x18] sm:$0xf]
      %v3117 = vld [vmem:[#allocation2 + $0x1c] sm:$0xf]
      %v3118 = vld [vmem:[#allocation2 + $0x24] sm:$0xf]
      %v3119 = vld [vmem:[#allocation2 + $0x28] sm:$0xf]
      %v3120 = vld [vmem:[#allocation2 + $0x30] sm:$0xf]
      %v3121 = vld [vmem:[#allocation2 + $0x34] sm:$0xf]
      %v3122 = vld [vmem:[#allocation2 + $0x3c] sm:$0xf]
      %v3123 = vld [vmem:[#allocation2 + $0x40] sm:$0xf]
      %v3124 = vld [vmem:[#allocation2 + $0x48] sm:$0xf]
      %v3125 = vld [vmem:[#allocation2 + $0x4c] sm:$0xf]
      %v3126 = vld [vmem:[#allocation2 + $0x54] sm:$0xf]
      %v3127 = vld [vmem:[#allocation2 + $0x58] sm:$0xf]
      %v3128 = vld [vmem:[#allocation2 + $0x60] sm:$0xf]
      %v3129 = vld [vmem:[#allocation2 + $0x64] sm:$0xf]
      %v3130 = vld [vmem:[#allocation2 + $0x6c] sm:$0xf]
      %v3131 = vld [vmem:[#allocation2 + $0x70] sm:$0xf]
      %v3132 = vld [vmem:[#allocation2 + $0x78] sm:$0xf]
      %v3133 = vld [vmem:[#allocation2 + $0x7c] sm:$0xf]
      %v3134 = vld [vmem:[#allocation2 + $0x84] sm:$0xf]
      %v3135 = vld [vmem:[#allocation2 + $0x88] sm:$0xf]
      %v3136 = vld [vmem:[#allocation2 + $0x90] sm:$0xf]
      %v3137 = vld [vmem:[#allocation2 + $0x94] sm:$0xf]
      %v3138 = vld [vmem:[#allocation2 + $0x9c] sm:$0xf]
      %v3139 = vld [vmem:[#allocation2 + $0xa0] sm:$0xf]
      %v3140 = vld [vmem:[#allocation2 + $0xa8] sm:$0xf]
      %v3141 = vld [vmem:[#allocation2 + $0xac] sm:$0xf]
      %v3142 = vld [vmem:[#allocation2 + $0xb4] sm:$0xf]
      %v3143 = vld [vmem:[#allocation2 + $0xb8] sm:$0xf]
      %v3144 = vld [vmem:[#allocation2 + $0x8] sm:$0x1]
      %v3145 = vld [vmem:[#allocation2 + $0x14] sm:$0x1]
      %v3146 = vld [vmem:[#allocation2 + $0x20] sm:$0x1]
      %v3147 = vld [vmem:[#allocation2 + $0x2c] sm:$0x1]
      %v3148 = vld [vmem:[#allocation2 + $0x38] sm:$0x1]
      %v3149 = vld [vmem:[#allocation2 + $0x44] sm:$0x1]
      %v3150 = vld [vmem:[#allocation2 + $0x50] sm:$0x1]
      %v3151 = vld [vmem:[#allocation2 + $0x5c] sm:$0x1]
      %v3152 = vld [vmem:[#allocation2 + $0x68] sm:$0x1]
      %v3153 = vld [vmem:[#allocation2 + $0x74] sm:$0x1]
      %v3154 = vld [vmem:[#allocation2 + $0x80] sm:$0x1]
      %v3155 = vld [vmem:[#allocation2 + $0x8c] sm:$0x1]
      %v3156 = vld [vmem:[#allocation2 + $0x98] sm:$0x1]
      %v3157 = vld [vmem:[#allocation2 + $0xa4] sm:$0x1]
      %v3158 = vld [vmem:[#allocation2 + $0xb0] sm:$0x1]
      %v3159 = vld [vmem:[#allocation2 + $0xbc] sm:$0x1]
      %v3160 = vld [vmem:[#allocation2] sm:$0xe]
      %v3161 = vld [vmem:[#allocation2 + $0xc] sm:$0xe]
      %v3162 = vld [vmem:[#allocation2 + $0x18] sm:$0xe]
      %v3163 = vld [vmem:[#allocation2 + $0x24] sm:$0xe]
      %v3164 = vld [vmem:[#allocation2 + $0x30] sm:$0xe]
      %v3165 = vld [vmem:[#allocation2 + $0x3c] sm:$0xe]
      %v3166 = vld [vmem:[#allocation2 + $0x48] sm:$0xe]
      %v3167 = vld [vmem:[#allocation2 + $0x54] sm:$0xe]
      %v3168 = vld [vmem:[#allocation2 + $0x60] sm:$0xe]
      %v3169 = vld [vmem:[#allocation2 + $0x6c] sm:$0xe]
      %v3170 = vld [vmem:[#allocation2 + $0x78] sm:$0xe]
      %v3171 = vld [vmem:[#allocation2 + $0x84] sm:$0xe]
      %v3172 = vld [vmem:[#allocation2 + $0x90] sm:$0xe]
      %v3173 = vld [vmem:[#allocation2 + $0x9c] sm:$0xe]
      %v3174 = vld [vmem:[#allocation2 + $0xa8] sm:$0xe]
      %v3175 = vld [vmem:[#allocation2 + $0xb4] sm:$0xe]
      %v3176 = vld [vmem:[%s2478] sm:$0xf]
      %v3177 = vld [vmem:[%s2478 + $0x4] sm:$0xf]
      %v3178 = vld [vmem:[%s2478 + $0xc] sm:$0xf]
      %v3179 = vld [vmem:[%s2478 + $0x10] sm:$0xf]
      %v3180 = vld [vmem:[%s2478 + $0x18] sm:$0xf]
      %v3181 = vld [vmem:[%s2478 + $0x1c] sm:$0xf]
      %v3182 = vld [vmem:[%s2478 + $0x24] sm:$0xf]
      %v3183 = vld [vmem:[%s2478 + $0x28] sm:$0xf]
      %v3184 = vld [vmem:[%s2478 + $0x30] sm:$0xf]
      %v3185 = vld [vmem:[%s2478 + $0x34] sm:$0xf]
      %v3186 = vld [vmem:[%s2478 + $0x3c] sm:$0xf]
      %v3187 = vld [vmem:[%s2478 + $0x40] sm:$0xf]
      %v3188 = vld [vmem:[%s2478 + $0x48] sm:$0xf]
      %v3189 = vld [vmem:[%s2478 + $0x4c] sm:$0xf]
      %v3190 = vld [vmem:[%s2478 + $0x54] sm:$0xf]
      %v3191 = vld [vmem:[%s2478 + $0x58] sm:$0xf]
      %v3192 = vld [vmem:[%s2478 + $0x60] sm:$0xf]
      %v3193 = vld [vmem:[%s2478 + $0x64] sm:$0xf]
      %v3194 = vld [vmem:[%s2478 + $0x6c] sm:$0xf]
      %v3195 = vld [vmem:[%s2478 + $0x70] sm:$0xf]
      %v3196 = vld [vmem:[%s2478 + $0x78] sm:$0xf]
      %v3197 = vld [vmem:[%s2478 + $0x7c] sm:$0xf]
      %v3198 = vld [vmem:[%s2478 + $0x84] sm:$0xf]
      %v3199 = vld [vmem:[%s2478 + $0x88] sm:$0xf]
      %v3200 = vld [vmem:[%s2478 + $0x90] sm:$0xf]
      %v3201 = vld [vmem:[%s2478 + $0x94] sm:$0xf]
      %v3202 = vld [vmem:[%s2478 + $0x9c] sm:$0xf]
      %v3203 = vld [vmem:[%s2478 + $0xa0] sm:$0xf]
      %v3204 = vld [vmem:[%s2478 + $0xa8] sm:$0xf]
      %v3205 = vld [vmem:[%s2478 + $0xac] sm:$0xf]
      %v3206 = vld [vmem:[%s2478 + $0xb4] sm:$0xf]
      %v3207 = vld [vmem:[%s2478 + $0xb8] sm:$0xf]
      %v3208 = vld [vmem:[%s2478 + $0x8] sm:$0x1]
      %v3209 = vld [vmem:[%s2478 + $0x14] sm:$0x1]
      %v3210 = vld [vmem:[%s2478 + $0x20] sm:$0x1]
      %v3211 = vld [vmem:[%s2478 + $0x2c] sm:$0x1]
      %v3212 = vld [vmem:[%s2478 + $0x38] sm:$0x1]
      %v3213 = vld [vmem:[%s2478 + $0x44] sm:$0x1]
      %v3214 = vld [vmem:[%s2478 + $0x50] sm:$0x1]
      %v3215 = vld [vmem:[%s2478 + $0x5c] sm:$0x1]
      %v3216 = vld [vmem:[%s2478 + $0x68] sm:$0x1]
      %v3217 = vld [vmem:[%s2478 + $0x74] sm:$0x1]
      %v3218 = vld [vmem:[%s2478 + $0x80] sm:$0x1]
      %v3219 = vld [vmem:[%s2478 + $0x8c] sm:$0x1]
      %v3220 = vld [vmem:[%s2478 + $0x98] sm:$0x1]
      %v3221 = vld [vmem:[%s2478 + $0xa4] sm:$0x1]
      %v3222 = vld [vmem:[%s2478 + $0xb0] sm:$0x1]
      %v3223 = vld [vmem:[%s2478 + $0xbc] sm:$0x1]
      %v3224 = vld [vmem:[%s2478] sm:$0xe]
      %v3225 = vld [vmem:[%s2478 + $0xc] sm:$0xe]
      %v3226 = vld [vmem:[%s2478 + $0x18] sm:$0xe]
      %v3227 = vld [vmem:[%s2478 + $0x24] sm:$0xe]
      %v3228 = vld [vmem:[%s2478 + $0x30] sm:$0xe]
      %v3229 = vld [vmem:[%s2478 + $0x3c] sm:$0xe]
      %v3230 = vld [vmem:[%s2478 + $0x48] sm:$0xe]
      %v3231 = vld [vmem:[%s2478 + $0x54] sm:$0xe]
      %v3232 = vld [vmem:[%s2478 + $0x60] sm:$0xe]
      %v3233 = vld [vmem:[%s2478 + $0x6c] sm:$0xe]
      %v3234 = vld [vmem:[%s2478 + $0x78] sm:$0xe]
      %v3235 = vld [vmem:[%s2478 + $0x84] sm:$0xe]
      %v3236 = vld [vmem:[%s2478 + $0x90] sm:$0xe]
      %v3237 = vld [vmem:[%s2478 + $0x9c] sm:$0xe]
      %v3238 = vld [vmem:[%s2478 + $0xa8] sm:$0xe]
      %v3239 = vld [vmem:[%s2478 + $0xb4] sm:$0xe]
      %s3240 = scalar_lea.vmem [#allocation2], 24
      %v3241 = vld [vmem:[%s3240] sm:$0xf]
      %v3242 = vld [vmem:[%s3240 + $0x4] sm:$0xf]
      %v3243 = vld [vmem:[%s3240 + $0xc] sm:$0xf]
      %v3244 = vld [vmem:[%s3240 + $0x10] sm:$0xf]
      %v3245 = vld [vmem:[%s3240 + $0x18] sm:$0xf]
      %v3246 = vld [vmem:[%s3240 + $0x1c] sm:$0xf]
      %v3247 = vld [vmem:[%s3240 + $0x24] sm:$0xf]
      %v3248 = vld [vmem:[%s3240 + $0x28] sm:$0xf]
      %v3249 = vld [vmem:[%s3240 + $0x30] sm:$0xf]
      %v3250 = vld [vmem:[%s3240 + $0x34] sm:$0xf]
      %v3251 = vld [vmem:[%s3240 + $0x3c] sm:$0xf]
      %v3252 = vld [vmem:[%s3240 + $0x40] sm:$0xf]
      %v3253 = vld [vmem:[%s3240 + $0x48] sm:$0xf]
      %v3254 = vld [vmem:[%s3240 + $0x4c] sm:$0xf]
      %v3255 = vld [vmem:[%s3240 + $0x54] sm:$0xf]
      %v3256 = vld [vmem:[%s3240 + $0x58] sm:$0xf]
      %v3257 = vld [vmem:[%s3240 + $0x60] sm:$0xf]
      %v3258 = vld [vmem:[%s3240 + $0x64] sm:$0xf]
      %v3259 = vld [vmem:[%s3240 + $0x6c] sm:$0xf]
      %v3260 = vld [vmem:[%s3240 + $0x70] sm:$0xf]
      %v3261 = vld [vmem:[%s3240 + $0x78] sm:$0xf]
      %v3262 = vld [vmem:[%s3240 + $0x7c] sm:$0xf]
      %v3263 = vld [vmem:[%s3240 + $0x84] sm:$0xf]
      %v3264 = vld [vmem:[%s3240 + $0x88] sm:$0xf]
      %v3265 = vld [vmem:[%s3240 + $0x90] sm:$0xf]
      %v3266 = vld [vmem:[%s3240 + $0x94] sm:$0xf]
      %v3267 = vld [vmem:[%s3240 + $0x9c] sm:$0xf]
      %v3268 = vld [vmem:[%s3240 + $0xa0] sm:$0xf]
      %v3269 = vld [vmem:[%s3240 + $0xa8] sm:$0xf]
      %v3270 = vld [vmem:[%s3240 + $0xac] sm:$0xf]
      %v3271 = vld [vmem:[%s3240 + $0xb4] sm:$0xf]
      %v3272 = vld [vmem:[%s3240 + $0xb8] sm:$0xf]
      %v3273 = vld [vmem:[%s3240 + $0x8] sm:$0x1]
      %v3274 = vld [vmem:[%s3240 + $0x14] sm:$0x1]
      %v3275 = vld [vmem:[%s3240 + $0x20] sm:$0x1]
      %v3276 = vld [vmem:[%s3240 + $0x2c] sm:$0x1]
      %v3277 = vld [vmem:[%s3240 + $0x38] sm:$0x1]
      %v3278 = vld [vmem:[%s3240 + $0x44] sm:$0x1]
      %v3279 = vld [vmem:[%s3240 + $0x50] sm:$0x1]
      %v3280 = vld [vmem:[%s3240 + $0x5c] sm:$0x1]
      %v3281 = vld [vmem:[%s3240 + $0x68] sm:$0x1]
      %v3282 = vld [vmem:[%s3240 + $0x74] sm:$0x1]
      %v3283 = vld [vmem:[%s3240 + $0x80] sm:$0x1]
      %v3284 = vld [vmem:[%s3240 + $0x8c] sm:$0x1]
      %v3285 = vld [vmem:[%s3240 + $0x98] sm:$0x1]
      %v3286 = vld [vmem:[%s3240 + $0xa4] sm:$0x1]
      %v3287 = vld [vmem:[%s3240 + $0xb0] sm:$0x1]
      %v3288 = vld [vmem:[%s3240 + $0xbc] sm:$0x1]
      %v3289 = vld [vmem:[%s3240] sm:$0xe]
      %v3290 = vld [vmem:[%s3240 + $0xc] sm:$0xe]
      %v3291 = vld [vmem:[%s3240 + $0x18] sm:$0xe]
      %v3292 = vld [vmem:[%s3240 + $0x24] sm:$0xe]
      %v3293 = vld [vmem:[%s3240 + $0x30] sm:$0xe]
      %v3294 = vld [vmem:[%s3240 + $0x3c] sm:$0xe]
      %v3295 = vld [vmem:[%s3240 + $0x48] sm:$0xe]
      %v3296 = vld [vmem:[%s3240 + $0x54] sm:$0xe]
      %v3297 = vld [vmem:[%s3240 + $0x60] sm:$0xe]
      %v3298 = vld [vmem:[%s3240 + $0x6c] sm:$0xe]
      %v3299 = vld [vmem:[%s3240 + $0x78] sm:$0xe]
      %v3300 = vld [vmem:[%s3240 + $0x84] sm:$0xe]
      %v3301 = vld [vmem:[%s3240 + $0x90] sm:$0xe]
      %v3302 = vld [vmem:[%s3240 + $0x9c] sm:$0xe]
      %v3303 = vld [vmem:[%s3240 + $0xa8] sm:$0xe]
      %v3304 = vld [vmem:[%s3240 + $0xb4] sm:$0xe]
      %v3337 = vunpack.c.l.b16 %v3112
      %v3338 = vunpack.c.l.b16 %v3113
      %v3339 = vunpack.c.l.b16 %v3114
      %v3340 = vunpack.c.l.b16 %v3115
      %v3341 = vunpack.c.l.b16 %v3116
      %v3342 = vunpack.c.l.b16 %v3117
      %v3343 = vunpack.c.l.b16 %v3118
      %v3344 = vunpack.c.l.b16 %v3119
      %v3345 = vunpack.c.l.b16 %v3120
      %v3346 = vunpack.c.l.b16 %v3121
      %v3347 = vunpack.c.l.b16 %v3122
      %v3348 = vunpack.c.l.b16 %v3123
      %v3349 = vunpack.c.l.b16 %v3124
      %v3350 = vunpack.c.l.b16 %v3125
      %v3351 = vunpack.c.l.b16 %v3126
      %v3352 = vunpack.c.l.b16 %v3127
      %v3353 = vunpack.c.l.b16 %v3128
      %v3354 = vunpack.c.l.b16 %v3129
      %v3355 = vunpack.c.l.b16 %v3130
      %v3356 = vunpack.c.l.b16 %v3131
      %v3357 = vunpack.c.l.b16 %v3132
      %v3358 = vunpack.c.l.b16 %v3133
      %v3359 = vunpack.c.l.b16 %v3134
      %v3360 = vunpack.c.l.b16 %v3135
      %v3361 = vunpack.c.l.b16 %v3136
      %v3362 = vunpack.c.l.b16 %v3137
      %v3363 = vunpack.c.l.b16 %v3138
      %v3364 = vunpack.c.l.b16 %v3139
      %v3365 = vunpack.c.l.b16 %v3140
      %v3366 = vunpack.c.l.b16 %v3141
      %v3367 = vunpack.c.l.b16 %v3142
      %v3368 = vunpack.c.l.b16 %v3143
      %v3369 = vpack.c.b16 %v3338, %v3337
      %v3370 = vpack.c.b16 %v3340, %v3339
      %v3371 = vpack.c.b16 %v3342, %v3341
      %v3372 = vpack.c.b16 %v3344, %v3343
      %v3373 = vpack.c.b16 %v3346, %v3345
      %v3374 = vpack.c.b16 %v3348, %v3347
      %v3375 = vpack.c.b16 %v3350, %v3349
      %v3376 = vpack.c.b16 %v3352, %v3351
      %v3377 = vpack.c.b16 %v3354, %v3353
      %v3378 = vpack.c.b16 %v3356, %v3355
      %v3379 = vpack.c.b16 %v3358, %v3357
      %v3380 = vpack.c.b16 %v3360, %v3359
      %v3381 = vpack.c.b16 %v3362, %v3361
      %v3382 = vpack.c.b16 %v3364, %v3363
      %v3383 = vpack.c.b16 %v3366, %v3365
      %v3384 = vpack.c.b16 %v3368, %v3367
      %v3401 = vunpack.c.l.b16 %v3144
      %v3402 = vunpack.c.l.b16 %v3145
      %v3403 = vunpack.c.l.b16 %v3146
      %v3404 = vunpack.c.l.b16 %v3147
      %v3405 = vunpack.c.l.b16 %v3148
      %v3406 = vunpack.c.l.b16 %v3149
      %v3407 = vunpack.c.l.b16 %v3150
      %v3408 = vunpack.c.l.b16 %v3151
      %v3409 = vunpack.c.l.b16 %v3152
      %v3410 = vunpack.c.l.b16 %v3153
      %v3411 = vunpack.c.l.b16 %v3154
      %v3412 = vunpack.c.l.b16 %v3155
      %v3413 = vunpack.c.l.b16 %v3156
      %v3414 = vunpack.c.l.b16 %v3157
      %v3415 = vunpack.c.l.b16 %v3158
      %v3416 = vunpack.c.l.b16 %v3159
      %v3417 = vpack.c.b16 %v3401, %v3401
      %v3418 = vpack.c.b16 %v3402, %v3402
      %v3419 = vpack.c.b16 %v3403, %v3403
      %v3420 = vpack.c.b16 %v3404, %v3404
      %v3421 = vpack.c.b16 %v3405, %v3405
      %v3422 = vpack.c.b16 %v3406, %v3406
      %v3423 = vpack.c.b16 %v3407, %v3407
      %v3424 = vpack.c.b16 %v3408, %v3408
      %v3425 = vpack.c.b16 %v3409, %v3409
      %v3426 = vpack.c.b16 %v3410, %v3410
      %v3427 = vpack.c.b16 %v3411, %v3411
      %v3428 = vpack.c.b16 %v3412, %v3412
      %v3429 = vpack.c.b16 %v3413, %v3413
      %v3430 = vpack.c.b16 %v3414, %v3414
      %v3431 = vpack.c.b16 %v3415, %v3415
      %v3432 = vpack.c.b16 %v3416, %v3416
      %v3434 = vshrl.u32 %v3369, 16
      %v3436 = vshll.u32 %v3369, 16
      %v3438 = vrot.slane %v3436, 1
      %v3439 = vor.u32 %v3434, %v3438
      %v3441 = vshll.u32 %v3417, 16
      %v3443 = vrot.slane %v3441, 1
      %v3444 = vsel %vm602, %v3439, %v3443
      %v3446 = vshrl.u32 %v3370, 16
      %v3448 = vshll.u32 %v3370, 16
      %v3450 = vrot.slane %v3448, 1
      %v3451 = vor.u32 %v3446, %v3450
      %v3453 = vshll.u32 %v3418, 16
      %v3455 = vrot.slane %v3453, 1
      %v3456 = vsel %vm602, %v3451, %v3455
      %v3458 = vshrl.u32 %v3371, 16
      %v3460 = vshll.u32 %v3371, 16
      %v3462 = vrot.slane %v3460, 1
      %v3463 = vor.u32 %v3458, %v3462
      %v3465 = vshll.u32 %v3419, 16
      %v3467 = vrot.slane %v3465, 1
      %v3468 = vsel %vm602, %v3463, %v3467
      %v3470 = vshrl.u32 %v3372, 16
      %v3472 = vshll.u32 %v3372, 16
      %v3474 = vrot.slane %v3472, 1
      %v3475 = vor.u32 %v3470, %v3474
      %v3477 = vshll.u32 %v3420, 16
      %v3479 = vrot.slane %v3477, 1
      %v3480 = vsel %vm602, %v3475, %v3479
      %v3482 = vshrl.u32 %v3373, 16
      %v3484 = vshll.u32 %v3373, 16
      %v3486 = vrot.slane %v3484, 1
      %v3487 = vor.u32 %v3482, %v3486
      %v3489 = vshll.u32 %v3421, 16
      %v3491 = vrot.slane %v3489, 1
      %v3492 = vsel %vm602, %v3487, %v3491
      %v3494 = vshrl.u32 %v3374, 16
      %v3496 = vshll.u32 %v3374, 16
      %v3498 = vrot.slane %v3496, 1
      %v3499 = vor.u32 %v3494, %v3498
      %v3501 = vshll.u32 %v3422, 16
      %v3503 = vrot.slane %v3501, 1
      %v3504 = vsel %vm602, %v3499, %v3503
      %v3506 = vshrl.u32 %v3375, 16
      %v3508 = vshll.u32 %v3375, 16
      %v3510 = vrot.slane %v3508, 1
      %v3511 = vor.u32 %v3506, %v3510
      %v3513 = vshll.u32 %v3423, 16
      %v3515 = vrot.slane %v3513, 1
      %v3516 = vsel %vm602, %v3511, %v3515
      %v3518 = vshrl.u32 %v3376, 16
      %v3520 = vshll.u32 %v3376, 16
      %v3522 = vrot.slane %v3520, 1
      %v3523 = vor.u32 %v3518, %v3522
      %v3525 = vshll.u32 %v3424, 16
      %v3527 = vrot.slane %v3525, 1
      %v3528 = vsel %vm602, %v3523, %v3527
      %v3530 = vshrl.u32 %v3377, 16
      %v3532 = vshll.u32 %v3377, 16
      %v3534 = vrot.slane %v3532, 1
      %v3535 = vor.u32 %v3530, %v3534
      %v3537 = vshll.u32 %v3425, 16
      %v3539 = vrot.slane %v3537, 1
      %v3540 = vsel %vm602, %v3535, %v3539
      %v3542 = vshrl.u32 %v3378, 16
      %v3544 = vshll.u32 %v3378, 16
      %v3546 = vrot.slane %v3544, 1
      %v3547 = vor.u32 %v3542, %v3546
      %v3549 = vshll.u32 %v3426, 16
      %v3551 = vrot.slane %v3549, 1
      %v3552 = vsel %vm602, %v3547, %v3551
      %v3554 = vshrl.u32 %v3379, 16
      %v3556 = vshll.u32 %v3379, 16
      %v3558 = vrot.slane %v3556, 1
      %v3559 = vor.u32 %v3554, %v3558
      %v3561 = vshll.u32 %v3427, 16
      %v3563 = vrot.slane %v3561, 1
      %v3564 = vsel %vm602, %v3559, %v3563
      %v3566 = vshrl.u32 %v3380, 16
      %v3568 = vshll.u32 %v3380, 16
      %v3570 = vrot.slane %v3568, 1
      %v3571 = vor.u32 %v3566, %v3570
      %v3573 = vshll.u32 %v3428, 16
      %v3575 = vrot.slane %v3573, 1
      %v3576 = vsel %vm602, %v3571, %v3575
      %v3578 = vshrl.u32 %v3381, 16
      %v3580 = vshll.u32 %v3381, 16
      %v3582 = vrot.slane %v3580, 1
      %v3583 = vor.u32 %v3578, %v3582
      %v3585 = vshll.u32 %v3429, 16
      %v3587 = vrot.slane %v3585, 1
      %v3588 = vsel %vm602, %v3583, %v3587
      %v3590 = vshrl.u32 %v3382, 16
      %v3592 = vshll.u32 %v3382, 16
      %v3594 = vrot.slane %v3592, 1
      %v3595 = vor.u32 %v3590, %v3594
      %v3597 = vshll.u32 %v3430, 16
      %v3599 = vrot.slane %v3597, 1
      %v3600 = vsel %vm602, %v3595, %v3599
      %v3602 = vshrl.u32 %v3383, 16
      %v3604 = vshll.u32 %v3383, 16
      %v3606 = vrot.slane %v3604, 1
      %v3607 = vor.u32 %v3602, %v3606
      %v3609 = vshll.u32 %v3431, 16
      %v3611 = vrot.slane %v3609, 1
      %v3612 = vsel %vm602, %v3607, %v3611
      %v3614 = vshrl.u32 %v3384, 16
      %v3616 = vshll.u32 %v3384, 16
      %v3618 = vrot.slane %v3616, 1
      %v3619 = vor.u32 %v3614, %v3618
      %v3621 = vshll.u32 %v3432, 16
      %v3623 = vrot.slane %v3621, 1
      %v3624 = vsel %vm602, %v3619, %v3623
      %3625 = vrot.lane.b32.xlu0 %v3444, 8
      %v3626 = vpop.permute.xlu0 %3625
      %3627 = vrot.lane.b32.xlu0 %v3456, 8
      %v3628 = vpop.permute.xlu0 %3627
      %3629 = vrot.lane.b32.xlu0 %v3468, 8
      %v3630 = vpop.permute.xlu0 %3629
      %3631 = vrot.lane.b32.xlu0 %v3480, 8
      %v3632 = vpop.permute.xlu0 %3631
      %3633 = vrot.lane.b32.xlu0 %v3492, 8
      %v3634 = vpop.permute.xlu0 %3633
      %3635 = vrot.lane.b32.xlu0 %v3504, 8
      %v3636 = vpop.permute.xlu0 %3635
      %3637 = vrot.lane.b32.xlu0 %v3516, 8
      %v3638 = vpop.permute.xlu0 %3637
      %3639 = vrot.lane.b32.xlu0 %v3528, 8
      %v3640 = vpop.permute.xlu0 %3639
      %3641 = vrot.lane.b32.xlu0 %v3540, 8
      %v3642 = vpop.permute.xlu0 %3641
      %3643 = vrot.lane.b32.xlu0 %v3552, 8
      %v3644 = vpop.permute.xlu0 %3643
      %3645 = vrot.lane.b32.xlu0 %v3564, 8
      %v3646 = vpop.permute.xlu0 %3645
      %3647 = vrot.lane.b32.xlu0 %v3576, 8
      %v3648 = vpop.permute.xlu0 %3647
      %3649 = vrot.lane.b32.xlu0 %v3588, 8
      %v3650 = vpop.permute.xlu0 %3649
      %3651 = vrot.lane.b32.xlu0 %v3600, 8
      %v3652 = vpop.permute.xlu0 %3651
      %3653 = vrot.lane.b32.xlu0 %v3612, 8
      %v3654 = vpop.permute.xlu0 %3653
      %3655 = vrot.lane.b32.xlu0 %v3624, 8
      %v3656 = vpop.permute.xlu0 %3655
      %v3673 = vunpack.c.l.b16 %v3160
      %v3674 = vunpack.c.l.b16 %v3161
      %v3675 = vunpack.c.l.b16 %v3162
      %v3676 = vunpack.c.l.b16 %v3163
      %v3677 = vunpack.c.l.b16 %v3164
      %v3678 = vunpack.c.l.b16 %v3165
      %v3679 = vunpack.c.l.b16 %v3166
      %v3680 = vunpack.c.l.b16 %v3167
      %v3681 = vunpack.c.l.b16 %v3168
      %v3682 = vunpack.c.l.b16 %v3169
      %v3683 = vunpack.c.l.b16 %v3170
      %v3684 = vunpack.c.l.b16 %v3171
      %v3685 = vunpack.c.l.b16 %v3172
      %v3686 = vunpack.c.l.b16 %v3173
      %v3687 = vunpack.c.l.b16 %v3174
      %v3688 = vunpack.c.l.b16 %v3175
      %v3689 = vpack.c.b16 %v3338, %v3673
      %v3690 = vpack.c.b16 %v3340, %v3674
      %v3691 = vpack.c.b16 %v3342, %v3675
      %v3692 = vpack.c.b16 %v3344, %v3676
      %v3693 = vpack.c.b16 %v3346, %v3677
      %v3694 = vpack.c.b16 %v3348, %v3678
      %v3695 = vpack.c.b16 %v3350, %v3679
      %v3696 = vpack.c.b16 %v3352, %v3680
      %v3697 = vpack.c.b16 %v3354, %v3681
      %v3698 = vpack.c.b16 %v3356, %v3682
      %v3699 = vpack.c.b16 %v3358, %v3683
      %v3700 = vpack.c.b16 %v3360, %v3684
      %v3701 = vpack.c.b16 %v3362, %v3685
      %v3702 = vpack.c.b16 %v3364, %v3686
      %v3703 = vpack.c.b16 %v3366, %v3687
      %v3704 = vpack.c.b16 %v3368, %v3688
      %v3705 = vrot.slane %v3689, 1
      %v3706 = vrot.slane %v3417, 1
      %v3707 = vsel %vm875, %v3705, %v3706
      %v3708 = vrot.slane %v3690, 1
      %v3709 = vrot.slane %v3418, 1
      %v3710 = vsel %vm875, %v3708, %v3709
      %v3711 = vrot.slane %v3691, 1
      %v3712 = vrot.slane %v3419, 1
      %v3713 = vsel %vm875, %v3711, %v3712
      %v3714 = vrot.slane %v3692, 1
      %v3715 = vrot.slane %v3420, 1
      %v3716 = vsel %vm875, %v3714, %v3715
      %v3717 = vrot.slane %v3693, 1
      %v3718 = vrot.slane %v3421, 1
      %v3719 = vsel %vm875, %v3717, %v3718
      %v3720 = vrot.slane %v3694, 1
      %v3721 = vrot.slane %v3422, 1
      %v3722 = vsel %vm875, %v3720, %v3721
      %v3723 = vrot.slane %v3695, 1
      %v3724 = vrot.slane %v3423, 1
      %v3725 = vsel %vm875, %v3723, %v3724
      %v3726 = vrot.slane %v3696, 1
      %v3727 = vrot.slane %v3424, 1
      %v3728 = vsel %vm875, %v3726, %v3727
      %v3729 = vrot.slane %v3697, 1
      %v3730 = vrot.slane %v3425, 1
      %v3731 = vsel %vm875, %v3729, %v3730
      %v3732 = vrot.slane %v3698, 1
      %v3733 = vrot.slane %v3426, 1
      %v3734 = vsel %vm875, %v3732, %v3733
      %v3735 = vrot.slane %v3699, 1
      %v3736 = vrot.slane %v3427, 1
      %v3737 = vsel %vm875, %v3735, %v3736
      %v3738 = vrot.slane %v3700, 1
      %v3739 = vrot.slane %v3428, 1
      %v3740 = vsel %vm875, %v3738, %v3739
      %v3741 = vrot.slane %v3701, 1
      %v3742 = vrot.slane %v3429, 1
      %v3743 = vsel %vm875, %v3741, %v3742
      %v3744 = vrot.slane %v3702, 1
      %v3745 = vrot.slane %v3430, 1
      %v3746 = vsel %vm875, %v3744, %v3745
      %v3747 = vrot.slane %v3703, 1
      %v3748 = vrot.slane %v3431, 1
      %v3749 = vsel %vm875, %v3747, %v3748
      %v3750 = vrot.slane %v3704, 1
      %v3751 = vrot.slane %v3432, 1
      %v3752 = vsel %vm875, %v3750, %v3751
      %3753 = vrot.lane.b32.xlu0 %v3707, 16
      %v3754 = vpop.permute.xlu0 %3753
      %3755 = vrot.lane.b32.xlu0 %v3710, 16
      %v3756 = vpop.permute.xlu0 %3755
      %3757 = vrot.lane.b32.xlu0 %v3713, 16
      %v3758 = vpop.permute.xlu0 %3757
      %3759 = vrot.lane.b32.xlu0 %v3716, 16
      %v3760 = vpop.permute.xlu0 %3759
      %3761 = vrot.lane.b32.xlu0 %v3719, 16
      %v3762 = vpop.permute.xlu0 %3761
      %3763 = vrot.lane.b32.xlu0 %v3722, 16
      %v3764 = vpop.permute.xlu0 %3763
      %3765 = vrot.lane.b32.xlu0 %v3725, 16
      %v3766 = vpop.permute.xlu0 %3765
      %3767 = vrot.lane.b32.xlu0 %v3728, 16
      %v3768 = vpop.permute.xlu0 %3767
      %3769 = vrot.lane.b32.xlu0 %v3731, 16
      %v3770 = vpop.permute.xlu0 %3769
      %3771 = vrot.lane.b32.xlu0 %v3734, 16
      %v3772 = vpop.permute.xlu0 %3771
      %3773 = vrot.lane.b32.xlu0 %v3737, 16
      %v3774 = vpop.permute.xlu0 %3773
      %3775 = vrot.lane.b32.xlu0 %v3740, 16
      %v3776 = vpop.permute.xlu0 %3775
      %3777 = vrot.lane.b32.xlu0 %v3743, 16
      %v3778 = vpop.permute.xlu0 %3777
      %3779 = vrot.lane.b32.xlu0 %v3746, 16
      %v3780 = vpop.permute.xlu0 %3779
      %3781 = vrot.lane.b32.xlu0 %v3749, 16
      %v3782 = vpop.permute.xlu0 %3781
      %3783 = vrot.lane.b32.xlu0 %v3752, 16
      %v3784 = vpop.permute.xlu0 %3783
      %v3817 = vunpack.c.l.b16 %v3176
      %v3818 = vunpack.c.l.b16 %v3177
      %v3819 = vunpack.c.l.b16 %v3178
      %v3820 = vunpack.c.l.b16 %v3179
      %v3821 = vunpack.c.l.b16 %v3180
      %v3822 = vunpack.c.l.b16 %v3181
      %v3823 = vunpack.c.l.b16 %v3182
      %v3824 = vunpack.c.l.b16 %v3183
      %v3825 = vunpack.c.l.b16 %v3184
      %v3826 = vunpack.c.l.b16 %v3185
      %v3827 = vunpack.c.l.b16 %v3186
      %v3828 = vunpack.c.l.b16 %v3187
      %v3829 = vunpack.c.l.b16 %v3188
      %v3830 = vunpack.c.l.b16 %v3189
      %v3831 = vunpack.c.l.b16 %v3190
      %v3832 = vunpack.c.l.b16 %v3191
      %v3833 = vunpack.c.l.b16 %v3192
      %v3834 = vunpack.c.l.b16 %v3193
      %v3835 = vunpack.c.l.b16 %v3194
      %v3836 = vunpack.c.l.b16 %v3195
      %v3837 = vunpack.c.l.b16 %v3196
      %v3838 = vunpack.c.l.b16 %v3197
      %v3839 = vunpack.c.l.b16 %v3198
      %v3840 = vunpack.c.l.b16 %v3199
      %v3841 = vunpack.c.l.b16 %v3200
      %v3842 = vunpack.c.l.b16 %v3201
      %v3843 = vunpack.c.l.b16 %v3202
      %v3844 = vunpack.c.l.b16 %v3203
      %v3845 = vunpack.c.l.b16 %v3204
      %v3846 = vunpack.c.l.b16 %v3205
      %v3847 = vunpack.c.l.b16 %v3206
      %v3848 = vunpack.c.l.b16 %v3207
      %v3849 = vpack.c.b16 %v3818, %v3817
      %v3850 = vpack.c.b16 %v3820, %v3819
      %v3851 = vpack.c.b16 %v3822, %v3821
      %v3852 = vpack.c.b16 %v3824, %v3823
      %v3853 = vpack.c.b16 %v3826, %v3825
      %v3854 = vpack.c.b16 %v3828, %v3827
      %v3855 = vpack.c.b16 %v3830, %v3829
      %v3856 = vpack.c.b16 %v3832, %v3831
      %v3857 = vpack.c.b16 %v3834, %v3833
      %v3858 = vpack.c.b16 %v3836, %v3835
      %v3859 = vpack.c.b16 %v3838, %v3837
      %v3860 = vpack.c.b16 %v3840, %v3839
      %v3861 = vpack.c.b16 %v3842, %v3841
      %v3862 = vpack.c.b16 %v3844, %v3843
      %v3863 = vpack.c.b16 %v3846, %v3845
      %v3864 = vpack.c.b16 %v3848, %v3847
      %3865 = vrot.lane.b32.xlu0 %v3849, 24
      %v3866 = vpop.permute.xlu0 %3865
      %3867 = vrot.lane.b32.xlu0 %v3850, 24
      %v3868 = vpop.permute.xlu0 %3867
      %3869 = vrot.lane.b32.xlu0 %v3851, 24
      %v3870 = vpop.permute.xlu0 %3869
      %3871 = vrot.lane.b32.xlu0 %v3852, 24
      %v3872 = vpop.permute.xlu0 %3871
      %3873 = vrot.lane.b32.xlu0 %v3853, 24
      %v3874 = vpop.permute.xlu0 %3873
      %3875 = vrot.lane.b32.xlu0 %v3854, 24
      %v3876 = vpop.permute.xlu0 %3875
      %3877 = vrot.lane.b32.xlu0 %v3855, 24
      %v3878 = vpop.permute.xlu0 %3877
      %3879 = vrot.lane.b32.xlu0 %v3856, 24
      %v3880 = vpop.permute.xlu0 %3879
      %3881 = vrot.lane.b32.xlu0 %v3857, 24
      %v3882 = vpop.permute.xlu0 %3881
      %3883 = vrot.lane.b32.xlu0 %v3858, 24
      %v3884 = vpop.permute.xlu0 %3883
      %3885 = vrot.lane.b32.xlu0 %v3859, 24
      %v3886 = vpop.permute.xlu0 %3885
      %3887 = vrot.lane.b32.xlu0 %v3860, 24
      %v3888 = vpop.permute.xlu0 %3887
      %3889 = vrot.lane.b32.xlu0 %v3861, 24
      %v3890 = vpop.permute.xlu0 %3889
      %3891 = vrot.lane.b32.xlu0 %v3862, 24
      %v3892 = vpop.permute.xlu0 %3891
      %3893 = vrot.lane.b32.xlu0 %v3863, 24
      %v3894 = vpop.permute.xlu0 %3893
      %3895 = vrot.lane.b32.xlu0 %v3864, 24
      %v3896 = vpop.permute.xlu0 %3895
      %v3913 = vunpack.c.l.b16 %v3208
      %v3914 = vunpack.c.l.b16 %v3209
      %v3915 = vunpack.c.l.b16 %v3210
      %v3916 = vunpack.c.l.b16 %v3211
      %v3917 = vunpack.c.l.b16 %v3212
      %v3918 = vunpack.c.l.b16 %v3213
      %v3919 = vunpack.c.l.b16 %v3214
      %v3920 = vunpack.c.l.b16 %v3215
      %v3921 = vunpack.c.l.b16 %v3216
      %v3922 = vunpack.c.l.b16 %v3217
      %v3923 = vunpack.c.l.b16 %v3218
      %v3924 = vunpack.c.l.b16 %v3219
      %v3925 = vunpack.c.l.b16 %v3220
      %v3926 = vunpack.c.l.b16 %v3221
      %v3927 = vunpack.c.l.b16 %v3222
      %v3928 = vunpack.c.l.b16 %v3223
      %v3929 = vpack.c.b16 %v3913, %v3913
      %v3930 = vpack.c.b16 %v3914, %v3914
      %v3931 = vpack.c.b16 %v3915, %v3915
      %v3932 = vpack.c.b16 %v3916, %v3916
      %v3933 = vpack.c.b16 %v3917, %v3917
      %v3934 = vpack.c.b16 %v3918, %v3918
      %v3935 = vpack.c.b16 %v3919, %v3919
      %v3936 = vpack.c.b16 %v3920, %v3920
      %v3937 = vpack.c.b16 %v3921, %v3921
      %v3938 = vpack.c.b16 %v3922, %v3922
      %v3939 = vpack.c.b16 %v3923, %v3923
      %v3940 = vpack.c.b16 %v3924, %v3924
      %v3941 = vpack.c.b16 %v3925, %v3925
      %v3942 = vpack.c.b16 %v3926, %v3926
      %v3943 = vpack.c.b16 %v3927, %v3927
      %v3944 = vpack.c.b16 %v3928, %v3928
      %v3946 = vshrl.u32 %v3849, 16
      %v3948 = vshll.u32 %v3849, 16
      %v3950 = vrot.slane %v3948, 1
      %v3951 = vor.u32 %v3946, %v3950
      %v3953 = vshll.u32 %v3929, 16
      %v3955 = vrot.slane %v3953, 1
      %v3956 = vsel %vm602, %v3951, %v3955
      %v3958 = vshrl.u32 %v3850, 16
      %v3960 = vshll.u32 %v3850, 16
      %v3962 = vrot.slane %v3960, 1
      %v3963 = vor.u32 %v3958, %v3962
      %v3965 = vshll.u32 %v3930, 16
      %v3967 = vrot.slane %v3965, 1
      %v3968 = vsel %vm602, %v3963, %v3967
      %v3970 = vshrl.u32 %v3851, 16
      %v3972 = vshll.u32 %v3851, 16
      %v3974 = vrot.slane %v3972, 1
      %v3975 = vor.u32 %v3970, %v3974
      %v3977 = vshll.u32 %v3931, 16
      %v3979 = vrot.slane %v3977, 1
      %v3980 = vsel %vm602, %v3975, %v3979
      %v3982 = vshrl.u32 %v3852, 16
      %v3984 = vshll.u32 %v3852, 16
      %v3986 = vrot.slane %v3984, 1
      %v3987 = vor.u32 %v3982, %v3986
      %v3989 = vshll.u32 %v3932, 16
      %v3991 = vrot.slane %v3989, 1
      %v3992 = vsel %vm602, %v3987, %v3991
      %v3994 = vshrl.u32 %v3853, 16
      %v3996 = vshll.u32 %v3853, 16
      %v3998 = vrot.slane %v3996, 1
      %v3999 = vor.u32 %v3994, %v3998
      %v4001 = vshll.u32 %v3933, 16
      %v4003 = vrot.slane %v4001, 1
      %v4004 = vsel %vm602, %v3999, %v4003
      %v4006 = vshrl.u32 %v3854, 16
      %v4008 = vshll.u32 %v3854, 16
      %v4010 = vrot.slane %v4008, 1
      %v4011 = vor.u32 %v4006, %v4010
      %v4013 = vshll.u32 %v3934, 16
      %v4015 = vrot.slane %v4013, 1
      %v4016 = vsel %vm602, %v4011, %v4015
      %v4018 = vshrl.u32 %v3855, 16
      %v4020 = vshll.u32 %v3855, 16
      %v4022 = vrot.slane %v4020, 1
      %v4023 = vor.u32 %v4018, %v4022
      %v4025 = vshll.u32 %v3935, 16
      %v4027 = vrot.slane %v4025, 1
      %v4028 = vsel %vm602, %v4023, %v4027
      %v4030 = vshrl.u32 %v3856, 16
      %v4032 = vshll.u32 %v3856, 16
      %v4034 = vrot.slane %v4032, 1
      %v4035 = vor.u32 %v4030, %v4034
      %v4037 = vshll.u32 %v3936, 16
      %v4039 = vrot.slane %v4037, 1
      %v4040 = vsel %vm602, %v4035, %v4039
      %v4042 = vshrl.u32 %v3857, 16
      %v4044 = vshll.u32 %v3857, 16
      %v4046 = vrot.slane %v4044, 1
      %v4047 = vor.u32 %v4042, %v4046
      %v4049 = vshll.u32 %v3937, 16
      %v4051 = vrot.slane %v4049, 1
      %v4052 = vsel %vm602, %v4047, %v4051
      %v4054 = vshrl.u32 %v3858, 16
      %v4056 = vshll.u32 %v3858, 16
      %v4058 = vrot.slane %v4056, 1
      %v4059 = vor.u32 %v4054, %v4058
      %v4061 = vshll.u32 %v3938, 16
      %v4063 = vrot.slane %v4061, 1
      %v4064 = vsel %vm602, %v4059, %v4063
      %v4066 = vshrl.u32 %v3859, 16
      %v4068 = vshll.u32 %v3859, 16
      %v4070 = vrot.slane %v4068, 1
      %v4071 = vor.u32 %v4066, %v4070
      %v4073 = vshll.u32 %v3939, 16
      %v4075 = vrot.slane %v4073, 1
      %v4076 = vsel %vm602, %v4071, %v4075
      %v4078 = vshrl.u32 %v3860, 16
      %v4080 = vshll.u32 %v3860, 16
      %v4082 = vrot.slane %v4080, 1
      %v4083 = vor.u32 %v4078, %v4082
      %v4085 = vshll.u32 %v3940, 16
      %v4087 = vrot.slane %v4085, 1
      %v4088 = vsel %vm602, %v4083, %v4087
      %v4090 = vshrl.u32 %v3861, 16
      %v4092 = vshll.u32 %v3861, 16
      %v4094 = vrot.slane %v4092, 1
      %v4095 = vor.u32 %v4090, %v4094
      %v4097 = vshll.u32 %v3941, 16
      %v4099 = vrot.slane %v4097, 1
      %v4100 = vsel %vm602, %v4095, %v4099
      %v4102 = vshrl.u32 %v3862, 16
      %v4104 = vshll.u32 %v3862, 16
      %v4106 = vrot.slane %v4104, 1
      %v4107 = vor.u32 %v4102, %v4106
      %v4109 = vshll.u32 %v3942, 16
      %v4111 = vrot.slane %v4109, 1
      %v4112 = vsel %vm602, %v4107, %v4111
      %v4114 = vshrl.u32 %v3863, 16
      %v4116 = vshll.u32 %v3863, 16
      %v4118 = vrot.slane %v4116, 1
      %v4119 = vor.u32 %v4114, %v4118
      %v4121 = vshll.u32 %v3943, 16
      %v4123 = vrot.slane %v4121, 1
      %v4124 = vsel %vm602, %v4119, %v4123
      %v4126 = vshrl.u32 %v3864, 16
      %v4128 = vshll.u32 %v3864, 16
      %v4130 = vrot.slane %v4128, 1
      %v4131 = vor.u32 %v4126, %v4130
      %v4133 = vshll.u32 %v3944, 16
      %v4135 = vrot.slane %v4133, 1
      %v4136 = vsel %vm602, %v4131, %v4135
      %4137 = vrot.lane.b32.xlu0 %v3956, 32
      %v4138 = vpop.permute.xlu0 %4137
      %4139 = vrot.lane.b32.xlu0 %v3968, 32
      %v4140 = vpop.permute.xlu0 %4139
      %4141 = vrot.lane.b32.xlu0 %v3980, 32
      %v4142 = vpop.permute.xlu0 %4141
      %4143 = vrot.lane.b32.xlu0 %v3992, 32
      %v4144 = vpop.permute.xlu0 %4143
      %4145 = vrot.lane.b32.xlu0 %v4004, 32
      %v4146 = vpop.permute.xlu0 %4145
      %4147 = vrot.lane.b32.xlu0 %v4016, 32
      %v4148 = vpop.permute.xlu0 %4147
      %4149 = vrot.lane.b32.xlu0 %v4028, 32
      %v4150 = vpop.permute.xlu0 %4149
      %4151 = vrot.lane.b32.xlu0 %v4040, 32
      %v4152 = vpop.permute.xlu0 %4151
      %4153 = vrot.lane.b32.xlu0 %v4052, 32
      %v4154 = vpop.permute.xlu0 %4153
      %4155 = vrot.lane.b32.xlu0 %v4064, 32
      %v4156 = vpop.permute.xlu0 %4155
      %4157 = vrot.lane.b32.xlu0 %v4076, 32
      %v4158 = vpop.permute.xlu0 %4157
      %4159 = vrot.lane.b32.xlu0 %v4088, 32
      %v4160 = vpop.permute.xlu0 %4159
      %4161 = vrot.lane.b32.xlu0 %v4100, 32
      %v4162 = vpop.permute.xlu0 %4161
      %4163 = vrot.lane.b32.xlu0 %v4112, 32
      %v4164 = vpop.permute.xlu0 %4163
      %4165 = vrot.lane.b32.xlu0 %v4124, 32
      %v4166 = vpop.permute.xlu0 %4165
      %4167 = vrot.lane.b32.xlu0 %v4136, 32
      %v4168 = vpop.permute.xlu0 %4167
      %v4185 = vunpack.c.l.b16 %v3224
      %v4186 = vunpack.c.l.b16 %v3225
      %v4187 = vunpack.c.l.b16 %v3226
      %v4188 = vunpack.c.l.b16 %v3227
      %v4189 = vunpack.c.l.b16 %v3228
      %v4190 = vunpack.c.l.b16 %v3229
      %v4191 = vunpack.c.l.b16 %v3230
      %v4192 = vunpack.c.l.b16 %v3231
      %v4193 = vunpack.c.l.b16 %v3232
      %v4194 = vunpack.c.l.b16 %v3233
      %v4195 = vunpack.c.l.b16 %v3234
      %v4196 = vunpack.c.l.b16 %v3235
      %v4197 = vunpack.c.l.b16 %v3236
      %v4198 = vunpack.c.l.b16 %v3237
      %v4199 = vunpack.c.l.b16 %v3238
      %v4200 = vunpack.c.l.b16 %v3239
      %v4201 = vpack.c.b16 %v3818, %v4185
      %v4202 = vpack.c.b16 %v3820, %v4186
      %v4203 = vpack.c.b16 %v3822, %v4187
      %v4204 = vpack.c.b16 %v3824, %v4188
      %v4205 = vpack.c.b16 %v3826, %v4189
      %v4206 = vpack.c.b16 %v3828, %v4190
      %v4207 = vpack.c.b16 %v3830, %v4191
      %v4208 = vpack.c.b16 %v3832, %v4192
      %v4209 = vpack.c.b16 %v3834, %v4193
      %v4210 = vpack.c.b16 %v3836, %v4194
      %v4211 = vpack.c.b16 %v3838, %v4195
      %v4212 = vpack.c.b16 %v3840, %v4196
      %v4213 = vpack.c.b16 %v3842, %v4197
      %v4214 = vpack.c.b16 %v3844, %v4198
      %v4215 = vpack.c.b16 %v3846, %v4199
      %v4216 = vpack.c.b16 %v3848, %v4200
      %v4217 = vrot.slane %v4201, 1
      %v4218 = vrot.slane %v3929, 1
      %v4219 = vsel %vm875, %v4217, %v4218
      %v4220 = vrot.slane %v4202, 1
      %v4221 = vrot.slane %v3930, 1
      %v4222 = vsel %vm875, %v4220, %v4221
      %v4223 = vrot.slane %v4203, 1
      %v4224 = vrot.slane %v3931, 1
      %v4225 = vsel %vm875, %v4223, %v4224
      %v4226 = vrot.slane %v4204, 1
      %v4227 = vrot.slane %v3932, 1
      %v4228 = vsel %vm875, %v4226, %v4227
      %v4229 = vrot.slane %v4205, 1
      %v4230 = vrot.slane %v3933, 1
      %v4231 = vsel %vm875, %v4229, %v4230
      %v4232 = vrot.slane %v4206, 1
      %v4233 = vrot.slane %v3934, 1
      %v4234 = vsel %vm875, %v4232, %v4233
      %v4235 = vrot.slane %v4207, 1
      %v4236 = vrot.slane %v3935, 1
      %v4237 = vsel %vm875, %v4235, %v4236
      %v4238 = vrot.slane %v4208, 1
      %v4239 = vrot.slane %v3936, 1
      %v4240 = vsel %vm875, %v4238, %v4239
      %v4241 = vrot.slane %v4209, 1
      %v4242 = vrot.slane %v3937, 1
      %v4243 = vsel %vm875, %v4241, %v4242
      %v4244 = vrot.slane %v4210, 1
      %v4245 = vrot.slane %v3938, 1
      %v4246 = vsel %vm875, %v4244, %v4245
      %v4247 = vrot.slane %v4211, 1
      %v4248 = vrot.slane %v3939, 1
      %v4249 = vsel %vm875, %v4247, %v4248
      %v4250 = vrot.slane %v4212, 1
      %v4251 = vrot.slane %v3940, 1
      %v4252 = vsel %vm875, %v4250, %v4251
      %v4253 = vrot.slane %v4213, 1
      %v4254 = vrot.slane %v3941, 1
      %v4255 = vsel %vm875, %v4253, %v4254
      %v4256 = vrot.slane %v4214, 1
      %v4257 = vrot.slane %v3942, 1
      %v4258 = vsel %vm875, %v4256, %v4257
      %v4259 = vrot.slane %v4215, 1
      %v4260 = vrot.slane %v3943, 1
      %v4261 = vsel %vm875, %v4259, %v4260
      %v4262 = vrot.slane %v4216, 1
      %v4263 = vrot.slane %v3944, 1
      %v4264 = vsel %vm875, %v4262, %v4263
      %4265 = vrot.lane.b32.xlu0 %v4219, 40
      %v4266 = vpop.permute.xlu0 %4265
      %4267 = vrot.lane.b32.xlu0 %v4222, 40
      %v4268 = vpop.permute.xlu0 %4267
      %4269 = vrot.lane.b32.xlu0 %v4225, 40
      %v4270 = vpop.permute.xlu0 %4269
      %4271 = vrot.lane.b32.xlu0 %v4228, 40
      %v4272 = vpop.permute.xlu0 %4271
      %4273 = vrot.lane.b32.xlu0 %v4231, 40
      %v4274 = vpop.permute.xlu0 %4273
      %4275 = vrot.lane.b32.xlu0 %v4234, 40
      %v4276 = vpop.permute.xlu0 %4275
      %4277 = vrot.lane.b32.xlu0 %v4237, 40
      %v4278 = vpop.permute.xlu0 %4277
      %4279 = vrot.lane.b32.xlu0 %v4240, 40
      %v4280 = vpop.permute.xlu0 %4279
      %4281 = vrot.lane.b32.xlu0 %v4243, 40
      %v4282 = vpop.permute.xlu0 %4281
      %4283 = vrot.lane.b32.xlu0 %v4246, 40
      %v4284 = vpop.permute.xlu0 %4283
      %4285 = vrot.lane.b32.xlu0 %v4249, 40
      %v4286 = vpop.permute.xlu0 %4285
      %4287 = vrot.lane.b32.xlu0 %v4252, 40
      %v4288 = vpop.permute.xlu0 %4287
      %4289 = vrot.lane.b32.xlu0 %v4255, 40
      %v4290 = vpop.permute.xlu0 %4289
      %4291 = vrot.lane.b32.xlu0 %v4258, 40
      %v4292 = vpop.permute.xlu0 %4291
      %4293 = vrot.lane.b32.xlu0 %v4261, 40
      %v4294 = vpop.permute.xlu0 %4293
      %4295 = vrot.lane.b32.xlu0 %v4264, 40
      %v4296 = vpop.permute.xlu0 %4295
      %v4329 = vunpack.c.l.b16 %v3241
      %v4330 = vunpack.c.l.b16 %v3242
      %v4331 = vunpack.c.l.b16 %v3243
      %v4332 = vunpack.c.l.b16 %v3244
      %v4333 = vunpack.c.l.b16 %v3245
      %v4334 = vunpack.c.l.b16 %v3246
      %v4335 = vunpack.c.l.b16 %v3247
      %v4336 = vunpack.c.l.b16 %v3248
      %v4337 = vunpack.c.l.b16 %v3249
      %v4338 = vunpack.c.l.b16 %v3250
      %v4339 = vunpack.c.l.b16 %v3251
      %v4340 = vunpack.c.l.b16 %v3252
      %v4341 = vunpack.c.l.b16 %v3253
      %v4342 = vunpack.c.l.b16 %v3254
      %v4343 = vunpack.c.l.b16 %v3255
      %v4344 = vunpack.c.l.b16 %v3256
      %v4345 = vunpack.c.l.b16 %v3257
      %v4346 = vunpack.c.l.b16 %v3258
      %v4347 = vunpack.c.l.b16 %v3259
      %v4348 = vunpack.c.l.b16 %v3260
      %v4349 = vunpack.c.l.b16 %v3261
      %v4350 = vunpack.c.l.b16 %v3262
      %v4351 = vunpack.c.l.b16 %v3263
      %v4352 = vunpack.c.l.b16 %v3264
      %v4353 = vunpack.c.l.b16 %v3265
      %v4354 = vunpack.c.l.b16 %v3266
      %v4355 = vunpack.c.l.b16 %v3267
      %v4356 = vunpack.c.l.b16 %v3268
      %v4357 = vunpack.c.l.b16 %v3269
      %v4358 = vunpack.c.l.b16 %v3270
      %v4359 = vunpack.c.l.b16 %v3271
      %v4360 = vunpack.c.l.b16 %v3272
      %v4361 = vpack.c.b16 %v4330, %v4329
      %v4362 = vpack.c.b16 %v4332, %v4331
      %v4363 = vpack.c.b16 %v4334, %v4333
      %v4364 = vpack.c.b16 %v4336, %v4335
      %v4365 = vpack.c.b16 %v4338, %v4337
      %v4366 = vpack.c.b16 %v4340, %v4339
      %v4367 = vpack.c.b16 %v4342, %v4341
      %v4368 = vpack.c.b16 %v4344, %v4343
      %v4369 = vpack.c.b16 %v4346, %v4345
      %v4370 = vpack.c.b16 %v4348, %v4347
      %v4371 = vpack.c.b16 %v4350, %v4349
      %v4372 = vpack.c.b16 %v4352, %v4351
      %v4373 = vpack.c.b16 %v4354, %v4353
      %v4374 = vpack.c.b16 %v4356, %v4355
      %v4375 = vpack.c.b16 %v4358, %v4357
      %v4376 = vpack.c.b16 %v4360, %v4359
      %4377 = vrot.lane.b32.xlu0 %v4361, 48
      %v4378 = vpop.permute.xlu0 %4377
      %4379 = vrot.lane.b32.xlu0 %v4362, 48
      %v4380 = vpop.permute.xlu0 %4379
      %4381 = vrot.lane.b32.xlu0 %v4363, 48
      %v4382 = vpop.permute.xlu0 %4381
      %4383 = vrot.lane.b32.xlu0 %v4364, 48
      %v4384 = vpop.permute.xlu0 %4383
      %4385 = vrot.lane.b32.xlu0 %v4365, 48
      %v4386 = vpop.permute.xlu0 %4385
      %4387 = vrot.lane.b32.xlu0 %v4366, 48
      %v4388 = vpop.permute.xlu0 %4387
      %4389 = vrot.lane.b32.xlu0 %v4367, 48
      %v4390 = vpop.permute.xlu0 %4389
      %4391 = vrot.lane.b32.xlu0 %v4368, 48
      %v4392 = vpop.permute.xlu0 %4391
      %4393 = vrot.lane.b32.xlu0 %v4369, 48
      %v4394 = vpop.permute.xlu0 %4393
      %4395 = vrot.lane.b32.xlu0 %v4370, 48
      %v4396 = vpop.permute.xlu0 %4395
      %4397 = vrot.lane.b32.xlu0 %v4371, 48
      %v4398 = vpop.permute.xlu0 %4397
      %4399 = vrot.lane.b32.xlu0 %v4372, 48
      %v4400 = vpop.permute.xlu0 %4399
      %4401 = vrot.lane.b32.xlu0 %v4373, 48
      %v4402 = vpop.permute.xlu0 %4401
      %4403 = vrot.lane.b32.xlu0 %v4374, 48
      %v4404 = vpop.permute.xlu0 %4403
      %4405 = vrot.lane.b32.xlu0 %v4375, 48
      %v4406 = vpop.permute.xlu0 %4405
      %4407 = vrot.lane.b32.xlu0 %v4376, 48
      %v4408 = vpop.permute.xlu0 %4407
      %v4425 = vunpack.c.l.b16 %v3273
      %v4426 = vunpack.c.l.b16 %v3274
      %v4427 = vunpack.c.l.b16 %v3275
      %v4428 = vunpack.c.l.b16 %v3276
      %v4429 = vunpack.c.l.b16 %v3277
      %v4430 = vunpack.c.l.b16 %v3278
      %v4431 = vunpack.c.l.b16 %v3279
      %v4432 = vunpack.c.l.b16 %v3280
      %v4433 = vunpack.c.l.b16 %v3281
      %v4434 = vunpack.c.l.b16 %v3282
      %v4435 = vunpack.c.l.b16 %v3283
      %v4436 = vunpack.c.l.b16 %v3284
      %v4437 = vunpack.c.l.b16 %v3285
      %v4438 = vunpack.c.l.b16 %v3286
      %v4439 = vunpack.c.l.b16 %v3287
      %v4440 = vunpack.c.l.b16 %v3288
      %v4441 = vpack.c.b16 %v4425, %v4425
      %v4442 = vpack.c.b16 %v4426, %v4426
      %v4443 = vpack.c.b16 %v4427, %v4427
      %v4444 = vpack.c.b16 %v4428, %v4428
      %v4445 = vpack.c.b16 %v4429, %v4429
      %v4446 = vpack.c.b16 %v4430, %v4430
      %v4447 = vpack.c.b16 %v4431, %v4431
      %v4448 = vpack.c.b16 %v4432, %v4432
      %v4449 = vpack.c.b16 %v4433, %v4433
      %v4450 = vpack.c.b16 %v4434, %v4434
      %v4451 = vpack.c.b16 %v4435, %v4435
      %v4452 = vpack.c.b16 %v4436, %v4436
      %v4453 = vpack.c.b16 %v4437, %v4437
      %v4454 = vpack.c.b16 %v4438, %v4438
      %v4455 = vpack.c.b16 %v4439, %v4439
      %v4456 = vpack.c.b16 %v4440, %v4440
      %v4458 = vshrl.u32 %v4361, 16
      %v4460 = vshll.u32 %v4361, 16
      %v4462 = vrot.slane %v4460, 1
      %v4463 = vor.u32 %v4458, %v4462
      %v4465 = vshll.u32 %v4441, 16
      %v4467 = vrot.slane %v4465, 1
      %v4468 = vsel %vm602, %v4463, %v4467
      %v4470 = vshrl.u32 %v4362, 16
      %v4472 = vshll.u32 %v4362, 16
      %v4474 = vrot.slane %v4472, 1
      %v4475 = vor.u32 %v4470, %v4474
      %v4477 = vshll.u32 %v4442, 16
      %v4479 = vrot.slane %v4477, 1
      %v4480 = vsel %vm602, %v4475, %v4479
      %v4482 = vshrl.u32 %v4363, 16
      %v4484 = vshll.u32 %v4363, 16
      %v4486 = vrot.slane %v4484, 1
      %v4487 = vor.u32 %v4482, %v4486
      %v4489 = vshll.u32 %v4443, 16
      %v4491 = vrot.slane %v4489, 1
      %v4492 = vsel %vm602, %v4487, %v4491
      %v4494 = vshrl.u32 %v4364, 16
      %v4496 = vshll.u32 %v4364, 16
      %v4498 = vrot.slane %v4496, 1
      %v4499 = vor.u32 %v4494, %v4498
      %v4501 = vshll.u32 %v4444, 16
      %v4503 = vrot.slane %v4501, 1
      %v4504 = vsel %vm602, %v4499, %v4503
      %v4506 = vshrl.u32 %v4365, 16
      %v4508 = vshll.u32 %v4365, 16
      %v4510 = vrot.slane %v4508, 1
      %v4511 = vor.u32 %v4506, %v4510
      %v4513 = vshll.u32 %v4445, 16
      %v4515 = vrot.slane %v4513, 1
      %v4516 = vsel %vm602, %v4511, %v4515
      %v4518 = vshrl.u32 %v4366, 16
      %v4520 = vshll.u32 %v4366, 16
      %v4522 = vrot.slane %v4520, 1
      %v4523 = vor.u32 %v4518, %v4522
      %v4525 = vshll.u32 %v4446, 16
      %v4527 = vrot.slane %v4525, 1
      %v4528 = vsel %vm602, %v4523, %v4527
      %v4530 = vshrl.u32 %v4367, 16
      %v4532 = vshll.u32 %v4367, 16
      %v4534 = vrot.slane %v4532, 1
      %v4535 = vor.u32 %v4530, %v4534
      %v4537 = vshll.u32 %v4447, 16
      %v4539 = vrot.slane %v4537, 1
      %v4540 = vsel %vm602, %v4535, %v4539
      %v4542 = vshrl.u32 %v4368, 16
      %v4544 = vshll.u32 %v4368, 16
      %v4546 = vrot.slane %v4544, 1
      %v4547 = vor.u32 %v4542, %v4546
      %v4549 = vshll.u32 %v4448, 16
      %v4551 = vrot.slane %v4549, 1
      %v4552 = vsel %vm602, %v4547, %v4551
      %v4554 = vshrl.u32 %v4369, 16
      %v4556 = vshll.u32 %v4369, 16
      %v4558 = vrot.slane %v4556, 1
      %v4559 = vor.u32 %v4554, %v4558
      %v4561 = vshll.u32 %v4449, 16
      %v4563 = vrot.slane %v4561, 1
      %v4564 = vsel %vm602, %v4559, %v4563
      %v4566 = vshrl.u32 %v4370, 16
      %v4568 = vshll.u32 %v4370, 16
      %v4570 = vrot.slane %v4568, 1
      %v4571 = vor.u32 %v4566, %v4570
      %v4573 = vshll.u32 %v4450, 16
      %v4575 = vrot.slane %v4573, 1
      %v4576 = vsel %vm602, %v4571, %v4575
      %v4578 = vshrl.u32 %v4371, 16
      %v4580 = vshll.u32 %v4371, 16
      %v4582 = vrot.slane %v4580, 1
      %v4583 = vor.u32 %v4578, %v4582
      %v4585 = vshll.u32 %v4451, 16
      %v4587 = vrot.slane %v4585, 1
      %v4588 = vsel %vm602, %v4583, %v4587
      %v4590 = vshrl.u32 %v4372, 16
      %v4592 = vshll.u32 %v4372, 16
      %v4594 = vrot.slane %v4592, 1
      %v4595 = vor.u32 %v4590, %v4594
      %v4597 = vshll.u32 %v4452, 16
      %v4599 = vrot.slane %v4597, 1
      %v4600 = vsel %vm602, %v4595, %v4599
      %v4602 = vshrl.u32 %v4373, 16
      %v4604 = vshll.u32 %v4373, 16
      %v4606 = vrot.slane %v4604, 1
      %v4607 = vor.u32 %v4602, %v4606
      %v4609 = vshll.u32 %v4453, 16
      %v4611 = vrot.slane %v4609, 1
      %v4612 = vsel %vm602, %v4607, %v4611
      %v4614 = vshrl.u32 %v4374, 16
      %v4616 = vshll.u32 %v4374, 16
      %v4618 = vrot.slane %v4616, 1
      %v4619 = vor.u32 %v4614, %v4618
      %v4621 = vshll.u32 %v4454, 16
      %v4623 = vrot.slane %v4621, 1
      %v4624 = vsel %vm602, %v4619, %v4623
      %v4626 = vshrl.u32 %v4375, 16
      %v4628 = vshll.u32 %v4375, 16
      %v4630 = vrot.slane %v4628, 1
      %v4631 = vor.u32 %v4626, %v4630
      %v4633 = vshll.u32 %v4455, 16
      %v4635 = vrot.slane %v4633, 1
      %v4636 = vsel %vm602, %v4631, %v4635
      %v4638 = vshrl.u32 %v4376, 16
      %v4640 = vshll.u32 %v4376, 16
      %v4642 = vrot.slane %v4640, 1
      %v4643 = vor.u32 %v4638, %v4642
      %v4645 = vshll.u32 %v4456, 16
      %v4647 = vrot.slane %v4645, 1
      %v4648 = vsel %vm602, %v4643, %v4647
      %4649 = vrot.lane.b32.xlu0 %v4468, 56
      %v4650 = vpop.permute.xlu0 %4649
      %4651 = vrot.lane.b32.xlu0 %v4480, 56
      %v4652 = vpop.permute.xlu0 %4651
      %4653 = vrot.lane.b32.xlu0 %v4492, 56
      %v4654 = vpop.permute.xlu0 %4653
      %4655 = vrot.lane.b32.xlu0 %v4504, 56
      %v4656 = vpop.permute.xlu0 %4655
      %4657 = vrot.lane.b32.xlu0 %v4516, 56
      %v4658 = vpop.permute.xlu0 %4657
      %4659 = vrot.lane.b32.xlu0 %v4528, 56
      %v4660 = vpop.permute.xlu0 %4659
      %4661 = vrot.lane.b32.xlu0 %v4540, 56
      %v4662 = vpop.permute.xlu0 %4661
      %4663 = vrot.lane.b32.xlu0 %v4552, 56
      %v4664 = vpop.permute.xlu0 %4663
      %4665 = vrot.lane.b32.xlu0 %v4564, 56
      %v4666 = vpop.permute.xlu0 %4665
      %4667 = vrot.lane.b32.xlu0 %v4576, 56
      %v4668 = vpop.permute.xlu0 %4667
      %4669 = vrot.lane.b32.xlu0 %v4588, 56
      %v4670 = vpop.permute.xlu0 %4669
      %4671 = vrot.lane.b32.xlu0 %v4600, 56
      %v4672 = vpop.permute.xlu0 %4671
      %4673 = vrot.lane.b32.xlu0 %v4612, 56
      %v4674 = vpop.permute.xlu0 %4673
      %4675 = vrot.lane.b32.xlu0 %v4624, 56
      %v4676 = vpop.permute.xlu0 %4675
      %4677 = vrot.lane.b32.xlu0 %v4636, 56
      %v4678 = vpop.permute.xlu0 %4677
      %4679 = vrot.lane.b32.xlu0 %v4648, 56
      %v4680 = vpop.permute.xlu0 %4679
      %v4697 = vunpack.c.l.b16 %v3289
      %v4698 = vunpack.c.l.b16 %v3290
      %v4699 = vunpack.c.l.b16 %v3291
      %v4700 = vunpack.c.l.b16 %v3292
      %v4701 = vunpack.c.l.b16 %v3293
      %v4702 = vunpack.c.l.b16 %v3294
      %v4703 = vunpack.c.l.b16 %v3295
      %v4704 = vunpack.c.l.b16 %v3296
      %v4705 = vunpack.c.l.b16 %v3297
      %v4706 = vunpack.c.l.b16 %v3298
      %v4707 = vunpack.c.l.b16 %v3299
      %v4708 = vunpack.c.l.b16 %v3300
      %v4709 = vunpack.c.l.b16 %v3301
      %v4710 = vunpack.c.l.b16 %v3302
      %v4711 = vunpack.c.l.b16 %v3303
      %v4712 = vunpack.c.l.b16 %v3304
      %v4713 = vpack.c.b16 %v4330, %v4697
      %v4714 = vpack.c.b16 %v4332, %v4698
      %v4715 = vpack.c.b16 %v4334, %v4699
      %v4716 = vpack.c.b16 %v4336, %v4700
      %v4717 = vpack.c.b16 %v4338, %v4701
      %v4718 = vpack.c.b16 %v4340, %v4702
      %v4719 = vpack.c.b16 %v4342, %v4703
      %v4720 = vpack.c.b16 %v4344, %v4704
      %v4721 = vpack.c.b16 %v4346, %v4705
      %v4722 = vpack.c.b16 %v4348, %v4706
      %v4723 = vpack.c.b16 %v4350, %v4707
      %v4724 = vpack.c.b16 %v4352, %v4708
      %v4725 = vpack.c.b16 %v4354, %v4709
      %v4726 = vpack.c.b16 %v4356, %v4710
      %v4727 = vpack.c.b16 %v4358, %v4711
      %v4728 = vpack.c.b16 %v4360, %v4712
      %v4729 = vrot.slane %v4713, 1
      %v4730 = vrot.slane %v4441, 1
      %v4731 = vsel %vm875, %v4729, %v4730
      %v4732 = vrot.slane %v4714, 1
      %v4733 = vrot.slane %v4442, 1
      %v4734 = vsel %vm875, %v4732, %v4733
      %v4735 = vrot.slane %v4715, 1
      %v4736 = vrot.slane %v4443, 1
      %v4737 = vsel %vm875, %v4735, %v4736
      %v4738 = vrot.slane %v4716, 1
      %v4739 = vrot.slane %v4444, 1
      %v4740 = vsel %vm875, %v4738, %v4739
      %v4741 = vrot.slane %v4717, 1
      %v4742 = vrot.slane %v4445, 1
      %v4743 = vsel %vm875, %v4741, %v4742
      %v4744 = vrot.slane %v4718, 1
      %v4745 = vrot.slane %v4446, 1
      %v4746 = vsel %vm875, %v4744, %v4745
      %v4747 = vrot.slane %v4719, 1
      %v4748 = vrot.slane %v4447, 1
      %v4749 = vsel %vm875, %v4747, %v4748
      %v4750 = vrot.slane %v4720, 1
      %v4751 = vrot.slane %v4448, 1
      %v4752 = vsel %vm875, %v4750, %v4751
      %v4753 = vrot.slane %v4721, 1
      %v4754 = vrot.slane %v4449, 1
      %v4755 = vsel %vm875, %v4753, %v4754
      %v4756 = vrot.slane %v4722, 1
      %v4757 = vrot.slane %v4450, 1
      %v4758 = vsel %vm875, %v4756, %v4757
      %v4759 = vrot.slane %v4723, 1
      %v4760 = vrot.slane %v4451, 1
      %v4761 = vsel %vm875, %v4759, %v4760
      %v4762 = vrot.slane %v4724, 1
      %v4763 = vrot.slane %v4452, 1
      %v4764 = vsel %vm875, %v4762, %v4763
      %v4765 = vrot.slane %v4725, 1
      %v4766 = vrot.slane %v4453, 1
      %v4767 = vsel %vm875, %v4765, %v4766
      %v4768 = vrot.slane %v4726, 1
      %v4769 = vrot.slane %v4454, 1
      %v4770 = vsel %vm875, %v4768, %v4769
      %v4771 = vrot.slane %v4727, 1
      %v4772 = vrot.slane %v4455, 1
      %v4773 = vsel %vm875, %v4771, %v4772
      %v4774 = vrot.slane %v4728, 1
      %v4775 = vrot.slane %v4456, 1
      %v4776 = vsel %vm875, %v4774, %v4775
      %4777 = vrot.lane.b32.xlu0 %v4731, 64
      %v4778 = vpop.permute.xlu0 %4777
      %4779 = vrot.lane.b32.xlu0 %v4734, 64
      %v4780 = vpop.permute.xlu0 %4779
      %4781 = vrot.lane.b32.xlu0 %v4737, 64
      %v4782 = vpop.permute.xlu0 %4781
      %4783 = vrot.lane.b32.xlu0 %v4740, 64
      %v4784 = vpop.permute.xlu0 %4783
      %4785 = vrot.lane.b32.xlu0 %v4743, 64
      %v4786 = vpop.permute.xlu0 %4785
      %4787 = vrot.lane.b32.xlu0 %v4746, 64
      %v4788 = vpop.permute.xlu0 %4787
      %4789 = vrot.lane.b32.xlu0 %v4749, 64
      %v4790 = vpop.permute.xlu0 %4789
      %4791 = vrot.lane.b32.xlu0 %v4752, 64
      %v4792 = vpop.permute.xlu0 %4791
      %4793 = vrot.lane.b32.xlu0 %v4755, 64
      %v4794 = vpop.permute.xlu0 %4793
      %4795 = vrot.lane.b32.xlu0 %v4758, 64
      %v4796 = vpop.permute.xlu0 %4795
      %4797 = vrot.lane.b32.xlu0 %v4761, 64
      %v4798 = vpop.permute.xlu0 %4797
      %4799 = vrot.lane.b32.xlu0 %v4764, 64
      %v4800 = vpop.permute.xlu0 %4799
      %4801 = vrot.lane.b32.xlu0 %v4767, 64
      %v4802 = vpop.permute.xlu0 %4801
      %4803 = vrot.lane.b32.xlu0 %v4770, 64
      %v4804 = vpop.permute.xlu0 %4803
      %4805 = vrot.lane.b32.xlu0 %v4773, 64
      %v4806 = vpop.permute.xlu0 %4805
      %4807 = vrot.lane.b32.xlu0 %v4776, 64
      %v4808 = vpop.permute.xlu0 %4807
      %v4810 = vsel %vm2013, %v3369, %v3626
      %v4812 = vsel %vm2013, %v3370, %v3628
      %v4814 = vsel %vm2013, %v3371, %v3630
      %v4816 = vsel %vm2013, %v3372, %v3632
      %v4818 = vsel %vm2013, %v3373, %v3634
      %v4820 = vsel %vm2013, %v3374, %v3636
      %v4822 = vsel %vm2013, %v3375, %v3638
      %v4824 = vsel %vm2013, %v3376, %v3640
      %v4826 = vsel %vm2013, %v3377, %v3642
      %v4828 = vsel %vm2013, %v3378, %v3644
      %v4830 = vsel %vm2013, %v3379, %v3646
      %v4832 = vsel %vm2013, %v3380, %v3648
      %v4834 = vsel %vm2013, %v3381, %v3650
      %v4836 = vsel %vm2013, %v3382, %v3652
      %v4838 = vsel %vm2013, %v3383, %v3654
      %v4840 = vsel %vm2013, %v3384, %v3656
      %v4842 = vsel %vm2079, %v4810, %v3754
      %v4844 = vsel %vm2079, %v4812, %v3756
      %v4846 = vsel %vm2079, %v4814, %v3758
      %v4848 = vsel %vm2079, %v4816, %v3760
      %v4850 = vsel %vm2079, %v4818, %v3762
      %v4852 = vsel %vm2079, %v4820, %v3764
      %v4854 = vsel %vm2079, %v4822, %v3766
      %v4856 = vsel %vm2079, %v4824, %v3768
      %v4858 = vsel %vm2079, %v4826, %v3770
      %v4860 = vsel %vm2079, %v4828, %v3772
      %v4862 = vsel %vm2079, %v4830, %v3774
      %v4864 = vsel %vm2079, %v4832, %v3776
      %v4866 = vsel %vm2079, %v4834, %v3778
      %v4868 = vsel %vm2079, %v4836, %v3780
      %v4870 = vsel %vm2079, %v4838, %v3782
      %v4872 = vsel %vm2079, %v4840, %v3784
      %v4874 = vsel %vm2145, %v4842, %v3866
      %v4876 = vsel %vm2145, %v4844, %v3868
      %v4878 = vsel %vm2145, %v4846, %v3870
      %v4880 = vsel %vm2145, %v4848, %v3872
      %v4882 = vsel %vm2145, %v4850, %v3874
      %v4884 = vsel %vm2145, %v4852, %v3876
      %v4886 = vsel %vm2145, %v4854, %v3878
      %v4888 = vsel %vm2145, %v4856, %v3880
      %v4890 = vsel %vm2145, %v4858, %v3882
      %v4892 = vsel %vm2145, %v4860, %v3884
      %v4894 = vsel %vm2145, %v4862, %v3886
      %v4896 = vsel %vm2145, %v4864, %v3888
      %v4898 = vsel %vm2145, %v4866, %v3890
      %v4900 = vsel %vm2145, %v4868, %v3892
      %v4902 = vsel %vm2145, %v4870, %v3894
      %v4904 = vsel %vm2145, %v4872, %v3896
      %v4906 = vsel %vm2211, %v4874, %v4138
      %v4908 = vsel %vm2211, %v4876, %v4140
      %v4910 = vsel %vm2211, %v4878, %v4142
      %v4912 = vsel %vm2211, %v4880, %v4144
      %v4914 = vsel %vm2211, %v4882, %v4146
      %v4916 = vsel %vm2211, %v4884, %v4148
      %v4918 = vsel %vm2211, %v4886, %v4150
      %v4920 = vsel %vm2211, %v4888, %v4152
      %v4922 = vsel %vm2211, %v4890, %v4154
      %v4924 = vsel %vm2211, %v4892, %v4156
      %v4926 = vsel %vm2211, %v4894, %v4158
      %v4928 = vsel %vm2211, %v4896, %v4160
      %v4930 = vsel %vm2211, %v4898, %v4162
      %v4932 = vsel %vm2211, %v4900, %v4164
      %v4934 = vsel %vm2211, %v4902, %v4166
      %v4936 = vsel %vm2211, %v4904, %v4168
      %vm4937 = vcmask 326656
      %v4939 = vsel %vm4937, %v4906, %v4266
      %v4941 = vsel %vm4937, %v4908, %v4268
      %v4943 = vsel %vm4937, %v4910, %v4270
      %v4945 = vsel %vm4937, %v4912, %v4272
      %v4947 = vsel %vm4937, %v4914, %v4274
      %v4949 = vsel %vm4937, %v4916, %v4276
      %v4951 = vsel %vm4937, %v4918, %v4278
      %v4953 = vsel %vm4937, %v4920, %v4280
      %v4955 = vsel %vm4937, %v4922, %v4282
      %v4957 = vsel %vm4937, %v4924, %v4284
      %v4959 = vsel %vm4937, %v4926, %v4286
      %v4961 = vsel %vm4937, %v4928, %v4288
      %v4963 = vsel %vm4937, %v4930, %v4290
      %v4965 = vsel %vm4937, %v4932, %v4292
      %v4967 = vsel %vm4937, %v4934, %v4294
      %v4969 = vsel %vm4937, %v4936, %v4296
      %vm4970 = vcmask 392192
      %v4972 = vsel %vm4970, %v4939, %v4378
      %v4974 = vsel %vm4970, %v4941, %v4380
      %v4976 = vsel %vm4970, %v4943, %v4382
      %v4978 = vsel %vm4970, %v4945, %v4384
      %v4980 = vsel %vm4970, %v4947, %v4386
      %v4982 = vsel %vm4970, %v4949, %v4388
      %v4984 = vsel %vm4970, %v4951, %v4390
      %v4986 = vsel %vm4970, %v4953, %v4392
      %v4988 = vsel %vm4970, %v4955, %v4394
      %v4990 = vsel %vm4970, %v4957, %v4396
      %v4992 = vsel %vm4970, %v4959, %v4398
      %v4994 = vsel %vm4970, %v4961, %v4400
      %v4996 = vsel %vm4970, %v4963, %v4402
      %v4998 = vsel %vm4970, %v4965, %v4404
      %v5000 = vsel %vm4970, %v4967, %v4406
      %v5002 = vsel %vm4970, %v4969, %v4408
      %vm5003 = vcmask 457728
      %v5005 = vsel %vm5003, %v4972, %v4650
      %v5007 = vsel %vm5003, %v4974, %v4652
      %v5009 = vsel %vm5003, %v4976, %v4654
      %v5011 = vsel %vm5003, %v4978, %v4656
      %v5013 = vsel %vm5003, %v4980, %v4658
      %v5015 = vsel %vm5003, %v4982, %v4660
      %v5017 = vsel %vm5003, %v4984, %v4662
      %v5019 = vsel %vm5003, %v4986, %v4664
      %v5021 = vsel %vm5003, %v4988, %v4666
      %v5023 = vsel %vm5003, %v4990, %v4668
      %v5025 = vsel %vm5003, %v4992, %v4670
      %v5027 = vsel %vm5003, %v4994, %v4672
      %v5029 = vsel %vm5003, %v4996, %v4674
      %v5031 = vsel %vm5003, %v4998, %v4676
      %v5033 = vsel %vm5003, %v5000, %v4678
      %v5035 = vsel %vm5003, %v5002, %v4680
      %vm5036 = vcmask 523264
      %v5038 = vsel %vm5036, %v5005, %v4778
      %v5040 = vsel %vm5036, %v5007, %v4780
      %v5042 = vsel %vm5036, %v5009, %v4782
      %v5044 = vsel %vm5036, %v5011, %v4784
      %v5046 = vsel %vm5036, %v5013, %v4786
      %v5048 = vsel %vm5036, %v5015, %v4788
      %v5050 = vsel %vm5036, %v5017, %v4790
      %v5052 = vsel %vm5036, %v5019, %v4792
      %v5054 = vsel %vm5036, %v5021, %v4794
      %v5056 = vsel %vm5036, %v5023, %v4796
      %v5058 = vsel %vm5036, %v5025, %v4798
      %v5060 = vsel %vm5036, %v5027, %v4800
      %v5062 = vsel %vm5036, %v5029, %v4802
      %v5064 = vsel %vm5036, %v5031, %v4804
      %v5066 = vsel %vm5036, %v5033, %v4806
      %v5068 = vsel %vm5036, %v5035, %v4808
      %v5069 = vld [vmem:[%s3] sm:$0xf]
      %v5070 = vld [vmem:[%s3 + $0x4] sm:$0xf]
      %v5071 = vld [vmem:[%s3 + $0x8] sm:$0xf]
      %v5072 = vld [vmem:[%s3 + $0xc] sm:$0xf]
      %v5073 = vld [vmem:[%s3 + $0x10] sm:$0xf]
      %v5074 = vld [vmem:[%s3 + $0x14] sm:$0xf]
      %v5075 = vld [vmem:[%s3 + $0x18] sm:$0xf]
      %v5076 = vld [vmem:[%s3 + $0x1c] sm:$0xf]
      %v5077 = vld [vmem:[%s3 + $0x20] sm:$0xf]
      %v5078 = vld [vmem:[%s4] sm:$0x1]
      %v5080 = vlaneseq
      %v5081 = vshrl.u32 %v5080, 7
      %v5082 = vsub.s32 0, %v5081
      %v5083 = vrot.slane %v5078, %v5082
      %v5094 = vunpack.c.l.b16 %v5069
      %v5095 = vunpack.c.l.b16 %v5070
      %v5096 = vunpack.c.l.b16 %v5071
      %v5097 = vunpack.c.l.b16 %v5072
      %v5098 = vunpack.c.l.b16 %v5073
      %v5099 = vunpack.c.l.b16 %v5074
      %v5100 = vunpack.c.l.b16 %v5075
      %v5101 = vunpack.c.l.b16 %v5076
      %v5102 = vunpack.c.l.b16 %v5077
      %v5103 = vpack.c.b16 %v5095, %v5094
      %v5104 = vpack.c.b16 %v5097, %v5096
      %v5105 = vpack.c.b16 %v5099, %v5098
      %v5106 = vpack.c.b16 %v5101, %v5100
      %v5107 = vpack.c.b16 %v5102, %v5102
      %vm5112 = vcmask 588800
      %v5113 = vsel %vm5112, %v5038, 0
      %v5115 = vsel %vm5112, %v5040, 0
      %v5117 = vsel %vm5112, %v5042, 0
      %v5119 = vsel %vm5112, %v5044, 0
      %v5121 = vsel %vm5112, %v5046, 0
      %v5123 = vsel %vm5112, %v5048, 0
      %v5125 = vsel %vm5112, %v5050, 0
      %v5127 = vsel %vm5112, %v5052, 0
      %v5129 = vsel %vm5112, %v5054, 0
      %v5131 = vsel %vm5112, %v5056, 0
      %v5133 = vsel %vm5112, %v5058, 0
      %v5135 = vsel %vm5112, %v5060, 0
      %v5137 = vsel %vm5112, %v5062, 0
      %v5139 = vsel %vm5112, %v5064, 0
      %v5141 = vsel %vm5112, %v5066, 0
      %v5143 = vsel %vm5112, %v5068, 0
      %vm5145 = vcmask 1043456
      %v5147 = vsel %vm5145, %v5107, 0
      %5149 = vmatprep.subr.bf16.mxu0 0
      %5150 = vmatpush1.bf16.msra.mxu0 %v5103
      %5151 = vmatprep.subr.bf16.mxu0 0
      %5152 = vmatpush1.bf16.msra.mxu0 %v5104
      %5153 = vmatprep.subr.bf16.mxu0 0
      %5154 = vmatpush1.bf16.msra.mxu0 %v5105
      %5155 = vmatprep.subr.bf16.mxu0 0
      %5156 = vmatpush1.bf16.msra.mxu0 %v5106
      %5157 = vmatprep.subr.bf16.mxu0 0
      %5158 = vmatpush1.bf16.msra.mxu0 %v5147
      %5159 = vmatprep.subr.bf16.mxu0 0
      %5160 = vmatpush1.bf16.msra.mxu0 0
      %5161 = vmatprep.subr.bf16.mxu0 0
      %5162 = vmatpush1.bf16.msra.mxu0 0
      %5163 = vmatprep.subr.bf16.mxu0 0
      %5164 = vmatpush1.bf16.msra.mxu0 0
      %5165 = vmatprep.subr.bf16.mxu0 0
      %5166 = vmatpush1.bf16.msra.mxu0 0
      %5167 = vmatprep.subr.bf16.mxu0 0
      %5168 = vmatpush1.bf16.msra.mxu0 0
      %5169 = vmatprep.subr.bf16.mxu0 0
      %5170 = vmatpush1.bf16.msra.mxu0 0
      %5171 = vmatprep.subr.bf16.mxu0 0
      %5172 = vmatpush1.bf16.msra.mxu0 0
      %5173 = vmatprep.subr.bf16.mxu0 0
      %5174 = vmatpush1.bf16.msra.mxu0 0
      %5175 = vmatprep.subr.bf16.mxu0 0
      %5176 = vmatpush1.bf16.msra.mxu0 0
      %5177 = vmatprep.subr.bf16.mxu0 0
      %5178 = vmatpush1.bf16.msra.mxu0 0
      %5179 = vmatprep.subr.bf16.mxu0 0
      %5180 = vmatpush1.bf16.msra.mxu0 0
      %5181 = vmatprep.mubr.bf16.mxu0 0
      %5182 = vmatmul.mubr.bf16.gmra.mrb[0].mxu0 %v5113
      %v5183 = vpop.f32.mrb[0].mxu0
      %v5184 = vadd.f32 %v5083, %v5183
      %v5185 = vpop.f32.mrb[0].mxu0
      %v5186 = vpop.f32.mrb[0].mxu0
      %v5187 = vadd.f32 %v5083, %v5186
      %v5188 = vpop.f32.mrb[0].mxu0
      %5189 = vmatprep.mubr.bf16.mxu0 0
      %5190 = vmatmul.mubr.bf16.gmra.mrb[0].mxu0 %v5115
      %v5191 = vpop.f32.mrb[0].mxu0
      %v5192 = vadd.f32 %v5083, %v5191
      %v5193 = vpop.f32.mrb[0].mxu0
      %v5194 = vpop.f32.mrb[0].mxu0
      %v5195 = vadd.f32 %v5083, %v5194
      %v5196 = vpop.f32.mrb[0].mxu0
      %5197 = vmatprep.mubr.bf16.mxu0 0
      %5198 = vmatmul.mubr.bf16.gmra.mrb[0].mxu0 %v5117
      %v5199 = vpop.f32.mrb[0].mxu0
      %v5200 = vadd.f32 %v5083, %v5199
      %v5201 = vpop.f32.mrb[0].mxu0
      %v5202 = vpop.f32.mrb[0].mxu0
      %v5203 = vadd.f32 %v5083, %v5202
      %v5204 = vpop.f32.mrb[0].mxu0
      %5205 = vmatprep.mubr.bf16.mxu0 0
      %5206 = vmatmul.mubr.bf16.gmra.mrb[0].mxu0 %v5119
      %v5207 = vpop.f32.mrb[0].mxu0
      %v5208 = vadd.f32 %v5083, %v5207
      %v5209 = vpop.f32.mrb[0].mxu0
      %v5210 = vpop.f32.mrb[0].mxu0
      %v5211 = vadd.f32 %v5083, %v5210
      %v5212 = vpop.f32.mrb[0].mxu0
      %5213 = vmatprep.mubr.bf16.mxu0 0
      %5214 = vmatmul.mubr.bf16.gmra.mrb[0].mxu0 %v5121
      %v5215 = vpop.f32.mrb[0].mxu0
      %v5216 = vadd.f32 %v5083, %v5215
      %v5217 = vpop.f32.mrb[0].mxu0
      %v5218 = vpop.f32.mrb[0].mxu0
      %v5219 = vadd.f32 %v5083, %v5218
      %v5220 = vpop.f32.mrb[0].mxu0
      %5221 = vmatprep.mubr.bf16.mxu0 0
      %5222 = vmatmul.mubr.bf16.gmra.mrb[0].mxu0 %v5123
      %v5223 = vpop.f32.mrb[0].mxu0
      %v5224 = vadd.f32 %v5083, %v5223
      %v5225 = vpop.f32.mrb[0].mxu0
      %v5226 = vpop.f32.mrb[0].mxu0
      %v5227 = vadd.f32 %v5083, %v5226
      %v5228 = vpop.f32.mrb[0].mxu0
      %5229 = vmatprep.mubr.bf16.mxu0 0
      %5230 = vmatmul.mubr.bf16.gmra.mrb[0].mxu0 %v5125
      %v5231 = vpop.f32.mrb[0].mxu0
      %v5232 = vadd.f32 %v5083, %v5231
      %v5233 = vpop.f32.mrb[0].mxu0
      %v5234 = vpop.f32.mrb[0].mxu0
      %v5235 = vadd.f32 %v5083, %v5234
      %v5236 = vpop.f32.mrb[0].mxu0
      %5237 = vmatprep.mubr.bf16.mxu0 0
      %5238 = vmatmul.mubr.bf16.gmra.mrb[0].mxu0 %v5127
      %v5239 = vpop.f32.mrb[0].mxu0
      %v5240 = vadd.f32 %v5083, %v5239
      %v5241 = vpop.f32.mrb[0].mxu0
      %v5242 = vpop.f32.mrb[0].mxu0
      %v5243 = vadd.f32 %v5083, %v5242
      %v5244 = vpop.f32.mrb[0].mxu0
      %5245 = vmatprep.mubr.bf16.mxu0 0
      %5246 = vmatmul.mubr.bf16.gmra.mrb[0].mxu0 %v5129
      %v5247 = vpop.f32.mrb[0].mxu0
      %v5248 = vadd.f32 %v5083, %v5247
      %v5249 = vpop.f32.mrb[0].mxu0
      %v5250 = vpop.f32.mrb[0].mxu0
      %v5251 = vadd.f32 %v5083, %v5250
      %v5252 = vpop.f32.mrb[0].mxu0
      %5253 = vmatprep.mubr.bf16.mxu0 0
      %5254 = vmatmul.mubr.bf16.gmra.mrb[0].mxu0 %v5131
      %v5255 = vpop.f32.mrb[0].mxu0
      %v5256 = vadd.f32 %v5083, %v5255
      %v5257 = vpop.f32.mrb[0].mxu0
      %v5258 = vpop.f32.mrb[0].mxu0
      %v5259 = vadd.f32 %v5083, %v5258
      %v5260 = vpop.f32.mrb[0].mxu0
      %5261 = vmatprep.mubr.bf16.mxu0 0
      %5262 = vmatmul.mubr.bf16.gmra.mrb[0].mxu0 %v5133
      %v5263 = vpop.f32.mrb[0].mxu0
      %v5264 = vadd.f32 %v5083, %v5263
      %v5265 = vpop.f32.mrb[0].mxu0
      %v5266 = vpop.f32.mrb[0].mxu0
      %v5267 = vadd.f32 %v5083, %v5266
      %v5268 = vpop.f32.mrb[0].mxu0
      %5269 = vmatprep.mubr.bf16.mxu0 0
      %5270 = vmatmul.mubr.bf16.gmra.mrb[0].mxu0 %v5135
      %v5271 = vpop.f32.mrb[0].mxu0
      %v5272 = vadd.f32 %v5083, %v5271
      %v5273 = vpop.f32.mrb[0].mxu0
      %v5274 = vpop.f32.mrb[0].mxu0
      %v5275 = vadd.f32 %v5083, %v5274
      %v5276 = vpop.f32.mrb[0].mxu0
      %5277 = vmatprep.mubr.bf16.mxu0 0
      %5278 = vmatmul.mubr.bf16.gmra.mrb[0].mxu0 %v5137
      %v5279 = vpop.f32.mrb[0].mxu0
      %v5280 = vadd.f32 %v5083, %v5279
      %v5281 = vpop.f32.mrb[0].mxu0
      %v5282 = vpop.f32.mrb[0].mxu0
      %v5283 = vadd.f32 %v5083, %v5282
      %v5284 = vpop.f32.mrb[0].mxu0
      %5285 = vmatprep.mubr.bf16.mxu0 0
      %5286 = vmatmul.mubr.bf16.gmra.mrb[0].mxu0 %v5139
      %v5287 = vpop.f32.mrb[0].mxu0
      %v5288 = vadd.f32 %v5083, %v5287
      %v5289 = vpop.f32.mrb[0].mxu0
      %v5290 = vpop.f32.mrb[0].mxu0
      %v5291 = vadd.f32 %v5083, %v5290
      %v5292 = vpop.f32.mrb[0].mxu0
      %5293 = vmatprep.mubr.bf16.mxu0 0
      %5294 = vmatmul.mubr.bf16.gmra.mrb[0].mxu0 %v5141
      %v5295 = vpop.f32.mrb[0].mxu0
      %v5296 = vadd.f32 %v5083, %v5295
      %v5297 = vpop.f32.mrb[0].mxu0
      %v5298 = vpop.f32.mrb[0].mxu0
      %v5299 = vadd.f32 %v5083, %v5298
      %v5300 = vpop.f32.mrb[0].mxu0
      %5301 = vmatprep.mubr.bf16.mxu0 0
      %5302 = vmatmul.mubr.bf16.gmra.mrb[0].mxu0 %v5143
      %v5303 = vpop.f32.mrb[0].mxu0
      %v5304 = vadd.f32 %v5083, %v5303
      %v5305 = vpop.f32.mrb[0].mxu0
      %v5306 = vpop.f32.mrb[0].mxu0
      %v5307 = vadd.f32 %v5083, %v5306
      %v5308 = vpop.f32.mrb[0].mxu0
      %5309 = vdwg.mxu0
      %v5310 = vld [vmem:[%s344] sm:$0xf]
      %v5311 = vld [vmem:[%s344 + $0x4] sm:$0xf]
      %v5312 = vld [vmem:[%s344 + $0x8] sm:$0x1]
      %v5313 = vld [vmem:[%s344 + $0xc] sm:$0xf]
      %v5314 = vld [vmem:[%s344 + $0x10] sm:$0xf]
      %v5315 = vld [vmem:[%s344 + $0x14] sm:$0x1]
      %v5316 = vld [vmem:[%s344 + $0x18] sm:$0xf]
      %v5317 = vld [vmem:[%s344 + $0x1c] sm:$0xf]
      %v5318 = vld [vmem:[%s344 + $0x20] sm:$0x1]
      %v5319 = vld [vmem:[%s344 + $0x24] sm:$0xf]
      %v5320 = vld [vmem:[%s344 + $0x28] sm:$0xf]
      %v5321 = vld [vmem:[%s344 + $0x2c] sm:$0x1]
      %v5322 = vld [vmem:[%s344 + $0x30] sm:$0xf]
      %v5323 = vld [vmem:[%s344 + $0x34] sm:$0xf]
      %v5324 = vld [vmem:[%s344 + $0x38] sm:$0x1]
      %v5325 = vld [vmem:[%s344 + $0x3c] sm:$0xf]
      %v5326 = vld [vmem:[%s344 + $0x40] sm:$0xf]
      %v5327 = vld [vmem:[%s344 + $0x44] sm:$0x1]
      %v5328 = vld [vmem:[%s344 + $0x48] sm:$0xf]
      %v5329 = vld [vmem:[%s344 + $0x4c] sm:$0xf]
      %v5330 = vld [vmem:[%s344 + $0x50] sm:$0x1]
      %v5331 = vld [vmem:[%s344 + $0x54] sm:$0xf]
      %v5332 = vld [vmem:[%s344 + $0x58] sm:$0xf]
      %v5333 = vld [vmem:[%s344 + $0x5c] sm:$0x1]
      %v5334 = vld [vmem:[%s344 + $0x60] sm:$0xf]
      %v5335 = vld [vmem:[%s344 + $0x64] sm:$0xf]
      %v5336 = vld [vmem:[%s344 + $0x68] sm:$0x1]
      %v5337 = vld [vmem:[%s344 + $0x6c] sm:$0xf]
      %v5338 = vld [vmem:[%s344 + $0x70] sm:$0xf]
      %v5339 = vld [vmem:[%s344 + $0x74] sm:$0x1]
      %v5340 = vld [vmem:[%s344 + $0x78] sm:$0xf]
      %v5341 = vld [vmem:[%s344 + $0x7c] sm:$0xf]
      %v5342 = vld [vmem:[%s344 + $0x80] sm:$0x1]
      %v5343 = vld [vmem:[%s344 + $0x84] sm:$0xf]
      %v5344 = vld [vmem:[%s344 + $0x88] sm:$0xf]
      %v5345 = vld [vmem:[%s344 + $0x8c] sm:$0x1]
      %v5346 = vld [vmem:[%s344 + $0x90] sm:$0xf]
      %v5347 = vld [vmem:[%s344 + $0x94] sm:$0xf]
      %v5348 = vld [vmem:[%s344 + $0x98] sm:$0x1]
      %v5349 = vld [vmem:[%s344 + $0x9c] sm:$0xf]
      %v5350 = vld [vmem:[%s344 + $0xa0] sm:$0xf]
      %v5351 = vld [vmem:[%s344 + $0xa4] sm:$0x1]
      %v5352 = vld [vmem:[%s344 + $0xa8] sm:$0xf]
      %v5353 = vld [vmem:[%s344 + $0xac] sm:$0xf]
      %v5354 = vld [vmem:[%s344 + $0xb0] sm:$0x1]
      %v5355 = vld [vmem:[%s344 + $0xb4] sm:$0xf]
      %v5356 = vld [vmem:[%s344 + $0xb8] sm:$0xf]
      %v5357 = vld [vmem:[%s344 + $0xbc] sm:$0x1]
      %vm5358 = vsmask.f32 3328
      %vm5359 = vsmask.f32 7440
      %vm5360 = vmor %vm5358, %vm5359
      %v5362 = vshrl.u32 %v5310, 16
      %v5364 = vrot.slane %v5362, 4
      %v5365 = vshll.u32 %v5310, 16
      %v5367 = vrot.slane %v5365, 5
      %v5368 = vor.u32 %v5364, %v5367
      %v5369 = vrot.slane %v5368, 4
      %v5371 = vshll.u32 %v5311, 16
      %v5373 = vrot.slane %v5371, 5
      %v5374 = vsel %vm5360, %v5369, %v5373
      %v5375 = vshrl.u32 %v5311, 16
      %v5377 = vrot.slane %v5375, 4
      %v5378 = vor.u32 %v5377, %v5373
      %v5379 = vrot.slane %v5378, 4
      %v5381 = vshll.u32 %v5312, 16
      %v5383 = vrot.slane %v5381, 5
      %v5384 = vsel %vm5360, %v5379, %v5383
      %v5386 = vshrl.u32 %v5313, 16
      %v5388 = vrot.slane %v5386, 4
      %v5389 = vshll.u32 %v5313, 16
      %v5391 = vrot.slane %v5389, 5
      %v5392 = vor.u32 %v5388, %v5391
      %v5393 = vrot.slane %v5392, 4
      %v5395 = vshll.u32 %v5314, 16
      %v5397 = vrot.slane %v5395, 5
      %v5398 = vsel %vm5360, %v5393, %v5397
      %v5399 = vshrl.u32 %v5314, 16
      %v5401 = vrot.slane %v5399, 4
      %v5402 = vor.u32 %v5401, %v5397
      %v5403 = vrot.slane %v5402, 4
      %v5405 = vshll.u32 %v5315, 16
      %v5407 = vrot.slane %v5405, 5
      %v5408 = vsel %vm5360, %v5403, %v5407
      %v5410 = vshrl.u32 %v5316, 16
      %v5412 = vrot.slane %v5410, 4
      %v5413 = vshll.u32 %v5316, 16
      %v5415 = vrot.slane %v5413, 5
      %v5416 = vor.u32 %v5412, %v5415
      %v5417 = vrot.slane %v5416, 4
      %v5419 = vshll.u32 %v5317, 16
      %v5421 = vrot.slane %v5419, 5
      %v5422 = vsel %vm5360, %v5417, %v5421
      %v5423 = vshrl.u32 %v5317, 16
      %v5425 = vrot.slane %v5423, 4
      %v5426 = vor.u32 %v5425, %v5421
      %v5427 = vrot.slane %v5426, 4
      %v5429 = vshll.u32 %v5318, 16
      %v5431 = vrot.slane %v5429, 5
      %v5432 = vsel %vm5360, %v5427, %v5431
      %v5434 = vshrl.u32 %v5319, 16
      %v5436 = vrot.slane %v5434, 4
      %v5437 = vshll.u32 %v5319, 16
      %v5439 = vrot.slane %v5437, 5
      %v5440 = vor.u32 %v5436, %v5439
      %v5441 = vrot.slane %v5440, 4
      %v5443 = vshll.u32 %v5320, 16
      %v5445 = vrot.slane %v5443, 5
      %v5446 = vsel %vm5360, %v5441, %v5445
      %v5447 = vshrl.u32 %v5320, 16
      %v5449 = vrot.slane %v5447, 4
      %v5450 = vor.u32 %v5449, %v5445
      %v5451 = vrot.slane %v5450, 4
      %v5453 = vshll.u32 %v5321, 16
      %v5455 = vrot.slane %v5453, 5
      %v5456 = vsel %vm5360, %v5451, %v5455
      %v5458 = vshrl.u32 %v5322, 16
      %v5460 = vrot.slane %v5458, 4
      %v5461 = vshll.u32 %v5322, 16
      %v5463 = vrot.slane %v5461, 5
      %v5464 = vor.u32 %v5460, %v5463
      %v5465 = vrot.slane %v5464, 4
      %v5467 = vshll.u32 %v5323, 16
      %v5469 = vrot.slane %v5467, 5
      %v5470 = vsel %vm5360, %v5465, %v5469
      %v5471 = vshrl.u32 %v5323, 16
      %v5473 = vrot.slane %v5471, 4
      %v5474 = vor.u32 %v5473, %v5469
      %v5475 = vrot.slane %v5474, 4
      %v5477 = vshll.u32 %v5324, 16
      %v5479 = vrot.slane %v5477, 5
      %v5480 = vsel %vm5360, %v5475, %v5479
      %v5482 = vshrl.u32 %v5325, 16
      %v5484 = vrot.slane %v5482, 4
      %v5485 = vshll.u32 %v5325, 16
      %v5487 = vrot.slane %v5485, 5
      %v5488 = vor.u32 %v5484, %v5487
      %v5489 = vrot.slane %v5488, 4
      %v5491 = vshll.u32 %v5326, 16
      %v5493 = vrot.slane %v5491, 5
      %v5494 = vsel %vm5360, %v5489, %v5493
      %v5495 = vshrl.u32 %v5326, 16
      %v5497 = vrot.slane %v5495, 4
      %v5498 = vor.u32 %v5497, %v5493
      %v5499 = vrot.slane %v5498, 4
      %v5501 = vshll.u32 %v5327, 16
      %v5503 = vrot.slane %v5501, 5
      %v5504 = vsel %vm5360, %v5499, %v5503
      %v5506 = vshrl.u32 %v5328, 16
      %v5508 = vrot.slane %v5506, 4
      %v5509 = vshll.u32 %v5328, 16
      %v5511 = vrot.slane %v5509, 5
      %v5512 = vor.u32 %v5508, %v5511
      %v5513 = vrot.slane %v5512, 4
      %v5515 = vshll.u32 %v5329, 16
      %v5517 = vrot.slane %v5515, 5
      %v5518 = vsel %vm5360, %v5513, %v5517
      %v5519 = vshrl.u32 %v5329, 16
      %v5521 = vrot.slane %v5519, 4
      %v5522 = vor.u32 %v5521, %v5517
      %v5523 = vrot.slane %v5522, 4
      %v5525 = vshll.u32 %v5330, 16
      %v5527 = vrot.slane %v5525, 5
      %v5528 = vsel %vm5360, %v5523, %v5527
      %v5530 = vshrl.u32 %v5331, 16
      %v5532 = vrot.slane %v5530, 4
      %v5533 = vshll.u32 %v5331, 16
      %v5535 = vrot.slane %v5533, 5
      %v5536 = vor.u32 %v5532, %v5535
      %v5537 = vrot.slane %v5536, 4
      %v5539 = vshll.u32 %v5332, 16
      %v5541 = vrot.slane %v5539, 5
      %v5542 = vsel %vm5360, %v5537, %v5541
      %v5543 = vshrl.u32 %v5332, 16
      %v5545 = vrot.slane %v5543, 4
      %v5546 = vor.u32 %v5545, %v5541
      %v5547 = vrot.slane %v5546, 4
      %v5549 = vshll.u32 %v5333, 16
      %v5551 = vrot.slane %v5549, 5
      %v5552 = vsel %vm5360, %v5547, %v5551
      %v5554 = vshrl.u32 %v5334, 16
      %v5556 = vrot.slane %v5554, 4
      %v5557 = vshll.u32 %v5334, 16
      %v5559 = vrot.slane %v5557, 5
      %v5560 = vor.u32 %v5556, %v5559
      %v5561 = vrot.slane %v5560, 4
      %v5563 = vshll.u32 %v5335, 16
      %v5565 = vrot.slane %v5563, 5
      %v5566 = vsel %vm5360, %v5561, %v5565
      %v5567 = vshrl.u32 %v5335, 16
      %v5569 = vrot.slane %v5567, 4
      %v5570 = vor.u32 %v5569, %v5565
      %v5571 = vrot.slane %v5570, 4
      %v5573 = vshll.u32 %v5336, 16
      %v5575 = vrot.slane %v5573, 5
      %v5576 = vsel %vm5360, %v5571, %v5575
      %v5578 = vshrl.u32 %v5337, 16
      %v5580 = vrot.slane %v5578, 4
      %v5581 = vshll.u32 %v5337, 16
      %v5583 = vrot.slane %v5581, 5
      %v5584 = vor.u32 %v5580, %v5583
      %v5585 = vrot.slane %v5584, 4
      %v5587 = vshll.u32 %v5338, 16
      %v5589 = vrot.slane %v5587, 5
      %v5590 = vsel %vm5360, %v5585, %v5589
      %v5591 = vshrl.u32 %v5338, 16
      %v5593 = vrot.slane %v5591, 4
      %v5594 = vor.u32 %v5593, %v5589
      %v5595 = vrot.slane %v5594, 4
      %v5597 = vshll.u32 %v5339, 16
      %v5599 = vrot.slane %v5597, 5
      %v5600 = vsel %vm5360, %v5595, %v5599
      %v5602 = vshrl.u32 %v5340, 16
      %v5604 = vrot.slane %v5602, 4
      %v5605 = vshll.u32 %v5340, 16
      %v5607 = vrot.slane %v5605, 5
      %v5608 = vor.u32 %v5604, %v5607
      %v5609 = vrot.slane %v5608, 4
      %v5611 = vshll.u32 %v5341, 16
      %v5613 = vrot.slane %v5611, 5
      %v5614 = vsel %vm5360, %v5609, %v5613
      %v5615 = vshrl.u32 %v5341, 16
      %v5617 = vrot.slane %v5615, 4
      %v5618 = vor.u32 %v5617, %v5613
      %v5619 = vrot.slane %v5618, 4
      %v5621 = vshll.u32 %v5342, 16
      %v5623 = vrot.slane %v5621, 5
      %v5624 = vsel %vm5360, %v5619, %v5623
      %v5626 = vshrl.u32 %v5343, 16
      %v5628 = vrot.slane %v5626, 4
      %v5629 = vshll.u32 %v5343, 16
      %v5631 = vrot.slane %v5629, 5
      %v5632 = vor.u32 %v5628, %v5631
      %v5633 = vrot.slane %v5632, 4
      %v5635 = vshll.u32 %v5344, 16
      %v5637 = vrot.slane %v5635, 5
      %v5638 = vsel %vm5360, %v5633, %v5637
      %v5639 = vshrl.u32 %v5344, 16
      %v5641 = vrot.slane %v5639, 4
      %v5642 = vor.u32 %v5641, %v5637
      %v5643 = vrot.slane %v5642, 4
      %v5645 = vshll.u32 %v5345, 16
      %v5647 = vrot.slane %v5645, 5
      %v5648 = vsel %vm5360, %v5643, %v5647
      %v5650 = vshrl.u32 %v5346, 16
      %v5652 = vrot.slane %v5650, 4
      %v5653 = vshll.u32 %v5346, 16
      %v5655 = vrot.slane %v5653, 5
      %v5656 = vor.u32 %v5652, %v5655
      %v5657 = vrot.slane %v5656, 4
      %v5659 = vshll.u32 %v5347, 16
      %v5661 = vrot.slane %v5659, 5
      %v5662 = vsel %vm5360, %v5657, %v5661
      %v5663 = vshrl.u32 %v5347, 16
      %v5665 = vrot.slane %v5663, 4
      %v5666 = vor.u32 %v5665, %v5661
      %v5667 = vrot.slane %v5666, 4
      %v5669 = vshll.u32 %v5348, 16
      %v5671 = vrot.slane %v5669, 5
      %v5672 = vsel %vm5360, %v5667, %v5671
      %v5674 = vshrl.u32 %v5349, 16
      %v5676 = vrot.slane %v5674, 4
      %v5677 = vshll.u32 %v5349, 16
      %v5679 = vrot.slane %v5677, 5
      %v5680 = vor.u32 %v5676, %v5679
      %v5681 = vrot.slane %v5680, 4
      %v5683 = vshll.u32 %v5350, 16
      %v5685 = vrot.slane %v5683, 5
      %v5686 = vsel %vm5360, %v5681, %v5685
      %v5687 = vshrl.u32 %v5350, 16
      %v5689 = vrot.slane %v5687, 4
      %v5690 = vor.u32 %v5689, %v5685
      %v5691 = vrot.slane %v5690, 4
      %v5693 = vshll.u32 %v5351, 16
      %v5695 = vrot.slane %v5693, 5
      %v5696 = vsel %vm5360, %v5691, %v5695
      %v5698 = vshrl.u32 %v5352, 16
      %v5700 = vrot.slane %v5698, 4
      %v5701 = vshll.u32 %v5352, 16
      %v5703 = vrot.slane %v5701, 5
      %v5704 = vor.u32 %v5700, %v5703
      %v5705 = vrot.slane %v5704, 4
      %v5707 = vshll.u32 %v5353, 16
      %v5709 = vrot.slane %v5707, 5
      %v5710 = vsel %vm5360, %v5705, %v5709
      %v5711 = vshrl.u32 %v5353, 16
      %v5713 = vrot.slane %v5711, 4
      %v5714 = vor.u32 %v5713, %v5709
      %v5715 = vrot.slane %v5714, 4
      %v5717 = vshll.u32 %v5354, 16
      %v5719 = vrot.slane %v5717, 5
      %v5720 = vsel %vm5360, %v5715, %v5719
      %v5722 = vshrl.u32 %v5355, 16
      %v5724 = vrot.slane %v5722, 4
      %v5725 = vshll.u32 %v5355, 16
      %v5727 = vrot.slane %v5725, 5
      %v5728 = vor.u32 %v5724, %v5727
      %v5729 = vrot.slane %v5728, 4
      %v5731 = vshll.u32 %v5356, 16
      %v5733 = vrot.slane %v5731, 5
      %v5734 = vsel %vm5360, %v5729, %v5733
      %v5735 = vshrl.u32 %v5356, 16
      %v5737 = vrot.slane %v5735, 4
      %v5738 = vor.u32 %v5737, %v5733
      %v5739 = vrot.slane %v5738, 4
      %v5741 = vshll.u32 %v5357, 16
      %v5743 = vrot.slane %v5741, 5
      %v5744 = vsel %vm5360, %v5739, %v5743
      %v5745 = vld [vmem:[%s5] sm:$0x3]
      %v5746 = vld [vmem:[%s6] sm:$0x1]
      %v5748 = vlaneseq
      %v5749 = vshrl.u32 %v5748, 7
      %v5750 = vsub.s32 0, %v5749
      %v5751 = vrot.slane %v5746, %v5750
      %v5753 = vunpack.c.l.b16 %v5374
      %v5754 = vunpack.c.l.b16 %v5384
      %v5755 = vunpack.c.l.b16 %v5398
      %v5756 = vunpack.c.l.b16 %v5408
      %v5757 = vunpack.c.l.b16 %v5422
      %v5758 = vunpack.c.l.b16 %v5432
      %v5759 = vunpack.c.l.b16 %v5446
      %v5760 = vunpack.c.l.b16 %v5456
      %v5761 = vunpack.c.l.b16 %v5470
      %v5762 = vunpack.c.l.b16 %v5480
      %v5763 = vunpack.c.l.b16 %v5494
      %v5764 = vunpack.c.l.b16 %v5504
      %v5765 = vunpack.c.l.b16 %v5518
      %v5766 = vunpack.c.l.b16 %v5528
      %v5767 = vunpack.c.l.b16 %v5542
      %v5768 = vunpack.c.l.b16 %v5552
      %v5769 = vunpack.c.l.b16 %v5566
      %v5770 = vunpack.c.l.b16 %v5576
      %v5771 = vunpack.c.l.b16 %v5590
      %v5772 = vunpack.c.l.b16 %v5600
      %v5773 = vunpack.c.l.b16 %v5614
      %v5774 = vunpack.c.l.b16 %v5624
      %v5775 = vunpack.c.l.b16 %v5638
      %v5776 = vunpack.c.l.b16 %v5648
      %v5777 = vunpack.c.l.b16 %v5662
      %v5778 = vunpack.c.l.b16 %v5672
      %v5779 = vunpack.c.l.b16 %v5686
      %v5780 = vunpack.c.l.b16 %v5696
      %v5781 = vunpack.c.l.b16 %v5710
      %v5782 = vunpack.c.l.b16 %v5720
      %v5783 = vunpack.c.l.b16 %v5734
      %v5784 = vunpack.c.l.b16 %v5744
      %v5785 = vpack.c.b16 %v5754, %v5753
      %v5786 = vpack.c.b16 %v5756, %v5755
      %v5787 = vpack.c.b16 %v5758, %v5757
      %v5788 = vpack.c.b16 %v5760, %v5759
      %v5789 = vpack.c.b16 %v5762, %v5761
      %v5790 = vpack.c.b16 %v5764, %v5763
      %v5791 = vpack.c.b16 %v5766, %v5765
      %v5792 = vpack.c.b16 %v5768, %v5767
      %v5793 = vpack.c.b16 %v5770, %v5769
      %v5794 = vpack.c.b16 %v5772, %v5771
      %v5795 = vpack.c.b16 %v5774, %v5773
      %v5796 = vpack.c.b16 %v5776, %v5775
      %v5797 = vpack.c.b16 %v5778, %v5777
      %v5798 = vpack.c.b16 %v5780, %v5779
      %v5799 = vpack.c.b16 %v5782, %v5781
      %v5800 = vpack.c.b16 %v5784, %v5783
      %v5802 = vsel %vm1980, %v5785, 0
      %v5805 = vsel %vm1980, %v5786, 0
      %v5808 = vsel %vm1980, %v5787, 0
      %v5811 = vsel %vm1980, %v5788, 0
      %v5814 = vsel %vm1980, %v5789, 0
      %v5817 = vsel %vm1980, %v5790, 0
      %v5820 = vsel %vm1980, %v5791, 0
      %v5823 = vsel %vm1980, %v5792, 0
      %v5826 = vsel %vm1980, %v5793, 0
      %v5829 = vsel %vm1980, %v5794, 0
      %v5832 = vsel %vm1980, %v5795, 0
      %v5835 = vsel %vm1980, %v5796, 0
      %v5838 = vsel %vm1980, %v5797, 0
      %v5841 = vsel %vm1980, %v5798, 0
      %v5844 = vsel %vm1980, %v5799, 0
      %v5847 = vsel %vm1980, %v5800, 0
      %v5850 = vsel %vm2304, %v5745, 0
      %5852 = vmatprep.subr.bf16.mxu0 0
      %5853 = vmatpush1.bf16.msra.mxu0 %v5850
      %5854 = vmatprep.subr.bf16.mxu0 0
      %5855 = vmatpush1.bf16.msra.mxu0 0
      %5856 = vmatprep.subr.bf16.mxu0 0
      %5857 = vmatpush1.bf16.msra.mxu0 0
      %5858 = vmatprep.subr.bf16.mxu0 0
      %5859 = vmatpush1.bf16.msra.mxu0 0
      %5860 = vmatprep.subr.bf16.mxu0 0
      %5861 = vmatpush1.bf16.msra.mxu0 0
      %5862 = vmatprep.subr.bf16.mxu0 0
      %5863 = vmatpush1.bf16.msra.mxu0 0
      %5864 = vmatprep.subr.bf16.mxu0 0
      %5865 = vmatpush1.bf16.msra.mxu0 0
      %5866 = vmatprep.subr.bf16.mxu0 0
      %5867 = vmatpush1.bf16.msra.mxu0 0
      %5868 = vmatprep.subr.bf16.mxu0 0
      %5869 = vmatpush1.bf16.msra.mxu0 0
      %5870 = vmatprep.subr.bf16.mxu0 0
      %5871 = vmatpush1.bf16.msra.mxu0 0
      %5872 = vmatprep.subr.bf16.mxu0 0
      %5873 = vmatpush1.bf16.msra.mxu0 0
      %5874 = vmatprep.subr.bf16.mxu0 0
      %5875 = vmatpush1.bf16.msra.mxu0 0
      %5876 = vmatprep.subr.bf16.mxu0 0
      %5877 = vmatpush1.bf16.msra.mxu0 0
      %5878 = vmatprep.subr.bf16.mxu0 0
      %5879 = vmatpush1.bf16.msra.mxu0 0
      %5880 = vmatprep.subr.bf16.mxu0 0
      %5881 = vmatpush1.bf16.msra.mxu0 0
      %5882 = vmatprep.subr.bf16.mxu0 0
      %5883 = vmatpush1.bf16.msra.mxu0 0
      %5884 = vmatprep.mubr.bf16.mxu0 0
      %5885 = vmatmul.mubr.bf16.gmra.mrb[0].mxu0 %v5802
      %v5886 = vpop.f32.mrb[0].mxu0
      %v5887 = vadd.f32 %v5751, %v5886
      %v5888 = vpop.f32.mrb[0].mxu0
      %v5889 = vpop.f32.mrb[0].mxu0
      %v5890 = vadd.f32 %v5751, %v5889
      %v5891 = vpop.f32.mrb[0].mxu0
      %5892 = vmatprep.mubr.bf16.mxu0 0
      %5893 = vmatmul.mubr.bf16.gmra.mrb[0].mxu0 %v5805
      %v5894 = vpop.f32.mrb[0].mxu0
      %v5895 = vadd.f32 %v5751, %v5894
      %v5896 = vpop.f32.mrb[0].mxu0
      %v5897 = vpop.f32.mrb[0].mxu0
      %v5898 = vadd.f32 %v5751, %v5897
      %v5899 = vpop.f32.mrb[0].mxu0
      %5900 = vmatprep.mubr.bf16.mxu0 0
      %5901 = vmatmul.mubr.bf16.gmra.mrb[0].mxu0 %v5808
      %v5902 = vpop.f32.mrb[0].mxu0
      %v5903 = vadd.f32 %v5751, %v5902
      %v5904 = vpop.f32.mrb[0].mxu0
      %v5905 = vpop.f32.mrb[0].mxu0
      %v5906 = vadd.f32 %v5751, %v5905
      %v5907 = vpop.f32.mrb[0].mxu0
      %5908 = vmatprep.mubr.bf16.mxu0 0
      %5909 = vmatmul.mubr.bf16.gmra.mrb[0].mxu0 %v5811
      %v5910 = vpop.f32.mrb[0].mxu0
      %v5911 = vadd.f32 %v5751, %v5910
      %v5912 = vpop.f32.mrb[0].mxu0
      %v5913 = vpop.f32.mrb[0].mxu0
      %v5914 = vadd.f32 %v5751, %v5913
      %v5915 = vpop.f32.mrb[0].mxu0
      %5916 = vmatprep.mubr.bf16.mxu0 0
      %5917 = vmatmul.mubr.bf16.gmra.mrb[0].mxu0 %v5814
      %v5918 = vpop.f32.mrb[0].mxu0
      %v5919 = vadd.f32 %v5751, %v5918
      %v5920 = vpop.f32.mrb[0].mxu0
      %v5921 = vpop.f32.mrb[0].mxu0
      %v5922 = vadd.f32 %v5751, %v5921
      %v5923 = vpop.f32.mrb[0].mxu0
      %5924 = vmatprep.mubr.bf16.mxu0 0
      %5925 = vmatmul.mubr.bf16.gmra.mrb[0].mxu0 %v5817
      %v5926 = vpop.f32.mrb[0].mxu0
      %v5927 = vadd.f32 %v5751, %v5926
      %v5928 = vpop.f32.mrb[0].mxu0
      %v5929 = vpop.f32.mrb[0].mxu0
      %v5930 = vadd.f32 %v5751, %v5929
      %v5931 = vpop.f32.mrb[0].mxu0
      %5932 = vmatprep.mubr.bf16.mxu0 0
      %5933 = vmatmul.mubr.bf16.gmra.mrb[0].mxu0 %v5820
      %v5934 = vpop.f32.mrb[0].mxu0
      %v5935 = vadd.f32 %v5751, %v5934
      %v5936 = vpop.f32.mrb[0].mxu0
      %v5937 = vpop.f32.mrb[0].mxu0
      %v5938 = vadd.f32 %v5751, %v5937
      %v5939 = vpop.f32.mrb[0].mxu0
      %5940 = vmatprep.mubr.bf16.mxu0 0
      %5941 = vmatmul.mubr.bf16.gmra.mrb[0].mxu0 %v5823
      %v5942 = vpop.f32.mrb[0].mxu0
      %v5943 = vadd.f32 %v5751, %v5942
      %v5944 = vpop.f32.mrb[0].mxu0
      %v5945 = vpop.f32.mrb[0].mxu0
      %v5946 = vadd.f32 %v5751, %v5945
      %v5947 = vpop.f32.mrb[0].mxu0
      %5948 = vmatprep.mubr.bf16.mxu0 0
      %5949 = vmatmul.mubr.bf16.gmra.mrb[0].mxu0 %v5826
      %v5950 = vpop.f32.mrb[0].mxu0
      %v5951 = vadd.f32 %v5751, %v5950
      %v5952 = vpop.f32.mrb[0].mxu0
      %v5953 = vpop.f32.mrb[0].mxu0
      %v5954 = vadd.f32 %v5751, %v5953
      %v5955 = vpop.f32.mrb[0].mxu0
      %5956 = vmatprep.mubr.bf16.mxu0 0
      %5957 = vmatmul.mubr.bf16.gmra.mrb[0].mxu0 %v5829
      %v5958 = vpop.f32.mrb[0].mxu0
      %v5959 = vadd.f32 %v5751, %v5958
      %v5960 = vpop.f32.mrb[0].mxu0
      %v5961 = vpop.f32.mrb[0].mxu0
      %v5962 = vadd.f32 %v5751, %v5961
      %v5963 = vpop.f32.mrb[0].mxu0
      %5964 = vmatprep.mubr.bf16.mxu0 0
      %5965 = vmatmul.mubr.bf16.gmra.mrb[0].mxu0 %v5832
      %v5966 = vpop.f32.mrb[0].mxu0
      %v5967 = vadd.f32 %v5751, %v5966
      %v5968 = vpop.f32.mrb[0].mxu0
      %v5969 = vpop.f32.mrb[0].mxu0
      %v5970 = vadd.f32 %v5751, %v5969
      %v5971 = vpop.f32.mrb[0].mxu0
      %5972 = vmatprep.mubr.bf16.mxu0 0
      %5973 = vmatmul.mubr.bf16.gmra.mrb[0].mxu0 %v5835
      %v5974 = vpop.f32.mrb[0].mxu0
      %v5975 = vadd.f32 %v5751, %v5974
      %v5976 = vpop.f32.mrb[0].mxu0
      %v5977 = vpop.f32.mrb[0].mxu0
      %v5978 = vadd.f32 %v5751, %v5977
      %v5979 = vpop.f32.mrb[0].mxu0
      %5980 = vmatprep.mubr.bf16.mxu0 0
      %5981 = vmatmul.mubr.bf16.gmra.mrb[0].mxu0 %v5838
      %v5982 = vpop.f32.mrb[0].mxu0
      %v5983 = vadd.f32 %v5751, %v5982
      %v5984 = vpop.f32.mrb[0].mxu0
      %v5985 = vpop.f32.mrb[0].mxu0
      %v5986 = vadd.f32 %v5751, %v5985
      %v5987 = vpop.f32.mrb[0].mxu0
      %5988 = vmatprep.mubr.bf16.mxu0 0
      %5989 = vmatmul.mubr.bf16.gmra.mrb[0].mxu0 %v5841
      %v5990 = vpop.f32.mrb[0].mxu0
      %v5991 = vadd.f32 %v5751, %v5990
      %v5992 = vpop.f32.mrb[0].mxu0
      %v5993 = vpop.f32.mrb[0].mxu0
      %v5994 = vadd.f32 %v5751, %v5993
      %v5995 = vpop.f32.mrb[0].mxu0
      %5996 = vmatprep.mubr.bf16.mxu0 0
      %5997 = vmatmul.mubr.bf16.gmra.mrb[0].mxu0 %v5844
      %v5998 = vpop.f32.mrb[0].mxu0
      %v5999 = vadd.f32 %v5751, %v5998
      %v6000 = vpop.f32.mrb[0].mxu0
      %v6001 = vpop.f32.mrb[0].mxu0
      %v6002 = vadd.f32 %v5751, %v6001
      %v6003 = vpop.f32.mrb[0].mxu0
      %6004 = vmatprep.mubr.bf16.mxu0 0
      %6005 = vmatmul.mubr.bf16.gmra.mrb[0].mxu0 %v5847
      %v6006 = vpop.f32.mrb[0].mxu0
      %v6007 = vadd.f32 %v5751, %v6006
      %v6008 = vpop.f32.mrb[0].mxu0
      %v6009 = vpop.f32.mrb[0].mxu0
      %v6010 = vadd.f32 %v5751, %v6009
      %v6011 = vpop.f32.mrb[0].mxu0
      %6012 = vdwg.mxu0
      %v6013 = vadd.f32 %v5184, %v5887
      %v6014 = vadd.f32 %v5187, %v5890
      %v6015 = vadd.f32 %v5192, %v5895
      %v6016 = vadd.f32 %v5195, %v5898
      %v6017 = vadd.f32 %v5200, %v5903
      %v6018 = vadd.f32 %v5203, %v5906
      %v6019 = vadd.f32 %v5208, %v5911
      %v6020 = vadd.f32 %v5211, %v5914
      %v6021 = vadd.f32 %v5216, %v5919
      %v6022 = vadd.f32 %v5219, %v5922
      %v6023 = vadd.f32 %v5224, %v5927
      %v6024 = vadd.f32 %v5227, %v5930
      %v6025 = vadd.f32 %v5232, %v5935
      %v6026 = vadd.f32 %v5235, %v5938
      %v6027 = vadd.f32 %v5240, %v5943
      %v6028 = vadd.f32 %v5243, %v5946
      %v6029 = vadd.f32 %v5248, %v5951
      %v6030 = vadd.f32 %v5251, %v5954
      %v6031 = vadd.f32 %v5256, %v5959
      %v6032 = vadd.f32 %v5259, %v5962
      %v6033 = vadd.f32 %v5264, %v5967
      %v6034 = vadd.f32 %v5267, %v5970
      %v6035 = vadd.f32 %v5272, %v5975
      %v6036 = vadd.f32 %v5275, %v5978
      %v6037 = vadd.f32 %v5280, %v5983
      %v6038 = vadd.f32 %v5283, %v5986
      %v6039 = vadd.f32 %v5288, %v5991
      %v6040 = vadd.f32 %v5291, %v5994
      %v6041 = vadd.f32 %v5296, %v5999
      %v6042 = vadd.f32 %v5299, %v6002
      %v6043 = vadd.f32 %v5304, %v6007
      %v6044 = vadd.f32 %v5307, %v6010
      %6045 = vst.msk [vmem:[%s278] sm:$0xff] %vm2013, %v6013
      %6046 = vst.msk [vmem:[%s278 + $0x8] sm:$0xff] %vm2013, %v6014
      %6047 = vst.msk [vmem:[%s278 + $0x10] sm:$0xff] %vm2013, %v6015
      %6048 = vst.msk [vmem:[%s278 + $0x18] sm:$0xff] %vm2013, %v6016
      %6049 = vst.msk [vmem:[%s278 + $0x20] sm:$0xff] %vm2013, %v6017
      %6050 = vst.msk [vmem:[%s278 + $0x28] sm:$0xff] %vm2013, %v6018
      %6051 = vst.msk [vmem:[%s278 + $0x30] sm:$0xff] %vm2013, %v6019
      %6052 = vst.msk [vmem:[%s278 + $0x38] sm:$0xff] %vm2013, %v6020
      %6053 = vst.msk [vmem:[%s278 + $0x40] sm:$0xff] %vm2013, %v6021
      %6054 = vst.msk [vmem:[%s278 + $0x48] sm:$0xff] %vm2013, %v6022
      %6055 = vst.msk [vmem:[%s278 + $0x50] sm:$0xff] %vm2013, %v6023
      %6056 = vst.msk [vmem:[%s278 + $0x58] sm:$0xff] %vm2013, %v6024
      %6057 = vst.msk [vmem:[%s278 + $0x60] sm:$0xff] %vm2013, %v6025
      %6058 = vst.msk [vmem:[%s278 + $0x68] sm:$0xff] %vm2013, %v6026
      %6059 = vst.msk [vmem:[%s278 + $0x70] sm:$0xff] %vm2013, %v6027
      %6060 = vst.msk [vmem:[%s278 + $0x78] sm:$0xff] %vm2013, %v6028
      %6061 = vst.msk [vmem:[%s278 + $0x80] sm:$0xff] %vm2013, %v6029
      %6062 = vst.msk [vmem:[%s278 + $0x88] sm:$0xff] %vm2013, %v6030
      %6063 = vst.msk [vmem:[%s278 + $0x90] sm:$0xff] %vm2013, %v6031
      %6064 = vst.msk [vmem:[%s278 + $0x98] sm:$0xff] %vm2013, %v6032
      %6065 = vst.msk [vmem:[%s278 + $0xa0] sm:$0xff] %vm2013, %v6033
      %6066 = vst.msk [vmem:[%s278 + $0xa8] sm:$0xff] %vm2013, %v6034
      %6067 = vst.msk [vmem:[%s278 + $0xb0] sm:$0xff] %vm2013, %v6035
      %6068 = vst.msk [vmem:[%s278 + $0xb8] sm:$0xff] %vm2013, %v6036
      %6069 = vst.msk [vmem:[%s278 + $0xc0] sm:$0xff] %vm2013, %v6037
      %6070 = vst.msk [vmem:[%s278 + $0xc8] sm:$0xff] %vm2013, %v6038
      %6071 = vst.msk [vmem:[%s278 + $0xd0] sm:$0xff] %vm2013, %v6039
      %6072 = vst.msk [vmem:[%s278 + $0xd8] sm:$0xff] %vm2013, %v6040
      %6073 = vst.msk [vmem:[%s278 + $0xe0] sm:$0xff] %vm2013, %v6041
      %6074 = vst.msk [vmem:[%s278 + $0xe8] sm:$0xff] %vm2013, %v6042
      %6075 = vst.msk [vmem:[%s278 + $0xf0] sm:$0xff] %vm2013, %v6043
      %6076 = vst.msk [vmem:[%s278 + $0xf8] sm:$0xff] %vm2013, %v6044
      %p6077 = scmp.lt.s32.totalorder %s18, 1
      %s6078 = scalar_select %p6077, %s18, 1
      %s6079 = smul.addr %s6078, 32
      %s6080 = smul.addr %s6079, 8
      %s6081 = scalar_lea.vmem %s7, %s6080
      // Predicated region
      $region49: #{tpu_custom_call.1} parent=47 // pred_check
        %p6082 = pneg %p188
      $region50: #{tpu_custom_call.1} parent=47 // pred_check_branch
        %6084 = sbr.rel (%p6082) target = $region52
      $region51: #{tpu_custom_call.1} parent=47 // pred_region
        _
      $region52: #{tpu_custom_call.1} parent=47 // pred_fallthru
        _
    $region48: #{tpu_custom_call.1} parent=5 // pred_fallthru
      _
    %p6085 = scmp.le.s32.totalorder 2, %s13
    // Predicated region
    $region53: #{tpu_custom_call.1} parent=5 // pred_check
      %p6086 = pneg %p6085
    $region54: #{tpu_custom_call.1} parent=5 // pred_check_branch
      %6088 = sbr.rel (%p6086) target = $region56
    $region55: #{tpu_custom_call.1} parent=5 // pred_region
      %s6089 = ssub.s32 %s13, 2
      // Predicated region
      $region57: #{tpu_custom_call.1} parent=55 // pred_check
        %p6090 = pneg %p194
      $region58: #{tpu_custom_call.1} parent=55 // pred_check_branch
        %6092 = sbr.rel (%p6090) target = $region60
      $region59: #{tpu_custom_call.1} parent=55 // pred_region
        %p6093 = scmp.lt.s32.totalorder %s19, 1
        %s6094 = scalar_select %p6093, %s19, 1
        %s6095 = smul.addr %s6094, 32
        %s6096 = smul.addr %s6095, 8
        %s6097 = scalar_lea.vmem %s7, %s6096
      $region60: #{tpu_custom_call.1} parent=55 // pred_fallthru
        _
    $region56: #{tpu_custom_call.1} parent=5 // pred_fallthru
      _
  $region6: #{tpu_custom_call.1} parent=0 // loop_footer
    %s17 = sadd.s32 1, %s13
  $region7: #{tpu_custom_call.1} parent=0 // loop_footer_branch
    %12 = sbr.rel target = $region3
  $region8: #{tpu_custom_call.1} parent=0 // loop_exit
    _

</llo_original>
